<compile_context>
chip_gen: v7x
topology: tpu7x:2x2x1
jax: 0.10.0
libtpu: 0.0.40
codegen_flags: <defaults>
</compile_context>

<pallas_src>
import functools

import jax
import jax.numpy as jnp
from jax.experimental import pallas as pl
from jax.experimental.pallas import tpu as pltpu


# ----------------------------- Pallas kernel --------------------------------

def _fused_lstm_kernel(*refs, num_layers, T, B, H):
    """Fused multi-layer LSTM + Linear(last hidden).

    refs layout (as passed positionally by pallas_call):
      inputs : x_ref (T*B, I),
               [wih_ref (in,4H), whh_ref (H,4H), b_ref (1,4H)] * num_layers,
               wlin_ref (H, O), blin_ref (1, O)
      outputs: o_ref (B, O)
      scratch: seq_sc (T*B, H), proj_sc (T*B, 4H), h_sc (B, H), c_sc (B, H)
    """
    x_ref = refs[0]
    idx = 1
    layer_refs = []
    for _ in range(num_layers):
        layer_refs.append((refs[idx], refs[idx + 1], refs[idx + 2]))
        idx += 3
    wlin_ref, blin_ref = refs[idx], refs[idx + 1]
    o_ref = refs[idx + 2]
    seq_sc, proj_sc, h_sc, c_sc = refs[idx + 3: idx + 7]

    for layer in range(num_layers):
        wih_ref, whh_ref, b_ref = layer_refs[layer]

        # ---- Phase 1 (hoisted): input projection for ALL timesteps at once.
        x_all = x_ref[...] if layer == 0 else seq_sc[...]        # (T*B, in)
        proj_sc[...] = (
            jnp.dot(x_all, wih_ref[...], preferred_element_type=jnp.float32)
            + b_ref[...]
        )                                                        # (T*B, 4H)

        # ---- Phase 2: serial recurrence; only h @ W_hh per step.
        h_sc[...] = jnp.zeros_like(h_sc)
        c_sc[...] = jnp.zeros_like(c_sc)
        whh = whh_ref[...]                  # resident across the time loop
        write_seq = layer < num_layers - 1  # last layer never stores its seq

        def step(t, carry, *, _whh=whh, _write_seq=write_seq):
            row = pl.multiple_of(t * B, B)                       # B-aligned (B>=8)
            gates = proj_sc[pl.ds(row, B), :] + jnp.dot(
                h_sc[...], _whh, preferred_element_type=jnp.float32)
            sig = jax.nn.sigmoid(gates)       # one full-tile EUP pass
            i_g = sig[:, 0 * H:1 * H]
            f_g = sig[:, 1 * H:2 * H]
            o_g = sig[:, 3 * H:4 * H]
            g_g = jnp.tanh(gates[:, 2 * H:3 * H])
            c_new = f_g * c_sc[...] + i_g * g_g
            h_new = o_g * jnp.tanh(c_new)
            c_sc[...] = c_new
            h_sc[...] = h_new
            if _write_seq:
                seq_sc[pl.ds(row, B), :] = h_new
            return carry

        jax.lax.fori_loop(0, T, step, 0, unroll=True)

    # ---- Final Linear, applied only to the last timestep's hidden state.
    o_ref[...] = (
        jnp.dot(h_sc[...], wlin_ref[...], preferred_element_type=jnp.float32)
        + blin_ref[...]
    ).astype(o_ref.dtype)


# ------------------------------ Wrapper --------------------------------------

def prepare_kernel_params(params):
    """Pre-transpose weights & pre-combine biases once (not per forward call)."""
    flat = []
    for (w_ih, w_hh, b_ih, b_hh) in params["lstm"]:
        h4 = w_ih.shape[0]
        flat.append(jnp.transpose(w_ih))              # (in, 4H)
        flat.append(jnp.transpose(w_hh))              # (H, 4H)
        flat.append((b_ih + b_hh).reshape(1, h4))     # (1, 4H)
    w_lin, b_lin = params["linear"]
    flat.append(jnp.transpose(w_lin))                 # (H, O)
    flat.append(b_lin.reshape(1, -1))                 # (1, O)
    return tuple(flat)


@functools.partial(
    jax.jit, static_argnames=("num_layers", "hidden_size", "output_size"))
def lstm_model_forward(x_btf, kernel_params, num_layers, hidden_size,
                       output_size):
    """Mirrors the PyTorch module: pred = Linear(LSTM(x)[:, -1, :])."""
    B, T, I = x_btf.shape
    H, O = hidden_size, output_size
    B_pad = max(8, ((B + 7) // 8) * 8)   # sublane-dense batch inside the kernel

    # glue: batch-first -> time-major, pad batch, flatten to (T*B_pad, I)
    x = jnp.transpose(x_btf, (1, 0, 2)).astype(jnp.float32)     # (T, B, I)
    x = jnp.pad(x, ((0, 0), (0, B_pad - B), (0, 0)))
    x2d = x.reshape(T * B_pad, I)

    n_in = 1 + 3 * num_layers + 2
    kernel = functools.partial(
        _fused_lstm_kernel, num_layers=num_layers, T=T, B=B_pad, H=H)

    out = pl.pallas_call(
        kernel,
        out_shape=jax.ShapeDtypeStruct((B_pad, O), jnp.float32),
        in_specs=[pl.BlockSpec(memory_space=pltpu.MemorySpace.VMEM)] * n_in,
        out_specs=pl.BlockSpec(memory_space=pltpu.MemorySpace.VMEM),
        scratch_shapes=[
            pltpu.VMEM((T * B_pad, H), jnp.float32),       # inter-layer sequence
            pltpu.VMEM((T * B_pad, 4 * H), jnp.float32),   # hoisted input proj
            pltpu.VMEM((B_pad, H), jnp.float32),           # h state
            pltpu.VMEM((B_pad, H), jnp.float32),           # c state
        ],
    )(x2d, *kernel_params)
    return out[:B]


# --------------------------- Parameter init ----------------------------------

def init_params(key, input_size, hidden_size, num_layers, output_size):
    params = {"lstm": [], "linear": None}
    std = 1.0 / jnp.sqrt(hidden_size)
    for layer in range(num_layers):
        in_sz = input_size if layer == 0 else hidden_size
        key, k1, k2, k3, k4 = jax.random.split(key, 5)
        w_ih = jax.random.uniform(k1, (4 * hidden_size, in_sz),
                                  jnp.float32, -std, std)
        w_hh = jax.random.uniform(k2, (4 * hidden_size, hidden_size),
                                  jnp.float32, -std, std)
        b_ih = jax.random.uniform(k3, (4 * hidden_size,), jnp.float32, -std, std)
        b_hh = jax.random.uniform(k4, (4 * hidden_size,), jnp.float32, -std, std)
        params["lstm"].append((w_ih, w_hh, b_ih, b_hh))
    key, k5, k6 = jax.random.split(key, 3)
    w_lin = jax.random.uniform(k5, (output_size, hidden_size),
                               jnp.float32, -std, std)
    b_lin = jax.random.uniform(k6, (output_size,), jnp.float32, -std, std)
    params["linear"] = (w_lin, b_lin)
    return params


# ------------------------- Pure-JAX reference --------------------------------

def _ref_forward(x_btf, params, num_layers, hidden_size):
    B = x_btf.shape[0]
    h_seq = x_btf
    for layer in range(num_layers):
        w_ih, w_hh, b_ih, b_hh = params["lstm"][layer]

        def step(carry, x_t):
            h, c = carry
            gates = x_t @ w_ih.T + h @ w_hh.T + b_ih + b_hh
            i, f, g, o = jnp.split(gates, 4, axis=-1)
            i, f, o = jax.nn.sigmoid(i), jax.nn.sigmoid(f), jax.nn.sigmoid(o)
            g = jnp.tanh(g)
            c = f * c + i * g
            h = o * jnp.tanh(c)
            return (h, c), h

        h0 = jnp.zeros((B, hidden_size), jnp.float32)
        c0 = jnp.zeros((B, hidden_size), jnp.float32)
        _, ys = jax.lax.scan(step, (h0, c0), jnp.transpose(h_seq, (1, 0, 2)))
        h_seq = jnp.transpose(ys, (1, 0, 2))
    w_lin, b_lin = params["linear"]
    pred = h_seq @ w_lin.T + b_lin
    return pred[:, -1, :]


# --------------------------------- Main ---------------------------------------

if __name__ == "__main__":
    batch_size = 2
    seq_len = 8
    input_size = 8
    hidden_size = 32
    num_layers = 2
    output_size = 4

    key = jax.random.PRNGKey(0)
    key, pkey, xkey = jax.random.split(key, 3)
    params = init_params(pkey, input_size, hidden_size, num_layers, output_size)
    kparams = prepare_kernel_params(params)   # one-time weight prep (no per-call transposes)

    x = jax.random.normal(xkey, (batch_size, seq_len, input_size), jnp.float32)

    pred = lstm_model_forward(x, kparams, num_layers, hidden_size, output_size)
    pred = jax.block_until_ready(pred)

    ref = _ref_forward(x, params, num_layers, hidden_size)
    assert pred.shape == (batch_size, output_size)
    assert jnp.allclose(pred, ref, atol=1e-5, rtol=1e-5), (pred, ref)

    print("KERNEL_OK")
</pallas_src>

<mosaic_0001>
module attributes {stable_mosaic.version = 11 : i64} {
  func.func @_fused_lstm_kernel(%arg0: memref<64x8xf32, #tpu.memory_space<vmem>>, %arg1: memref<8x128xf32, #tpu.memory_space<vmem>>, %arg2: memref<32x128xf32, #tpu.memory_space<vmem>>, %arg3: memref<1x128xf32, #tpu.memory_space<vmem>>, %arg4: memref<32x128xf32, #tpu.memory_space<vmem>>, %arg5: memref<32x128xf32, #tpu.memory_space<vmem>>, %arg6: memref<1x128xf32, #tpu.memory_space<vmem>>, %arg7: memref<32x4xf32, #tpu.memory_space<vmem>>, %arg8: memref<1x4xf32, #tpu.memory_space<vmem>>, %arg9: memref<8x4xf32, #tpu.memory_space<vmem>>, %arg10: memref<64x32xf32, #tpu.memory_space<vmem>>, %arg11: memref<64x128xf32, #tpu.memory_space<vmem>>, %arg12: memref<8x32xf32, #tpu.memory_space<vmem>>, %arg13: memref<8x32xf32, #tpu.memory_space<vmem>>) attributes {dimension_semantics = [], scalar_prefetch = 0 : i64, scratch_operands = 4 : i64, tpu.core_type = #tpu.core_type<tc>} {
    %c0 = arith.constant 0 : index
    %c0_0 = arith.constant 0 : index
    %0 = vector.load %arg0[%c0, %c0_0] : memref<64x8xf32, #tpu.memory_space<vmem>>, vector<64x8xf32>
    %c0_1 = arith.constant 0 : index
    %c0_2 = arith.constant 0 : index
    %1 = vector.load %arg1[%c0_1, %c0_2] : memref<8x128xf32, #tpu.memory_space<vmem>>, vector<8x128xf32>
    %cst = arith.constant dense<0.000000e+00> : vector<64x128xf32>
    %2 = tpu.matmul %0, %1, %cst {dimension_numbers = #tpu.dot_dimension_numbers<[1], [0], [0], [1], [0, 0, 1, 1], [], []>} : vector<64x8xf32>, vector<8x128xf32>, vector<64x128xf32> -> vector<64x128xf32>
    %c0_3 = arith.constant 0 : index
    %c0_4 = arith.constant 0 : index
    %3 = vector.load %arg3[%c0_3, %c0_4] : memref<1x128xf32, #tpu.memory_space<vmem>>, vector<1x128xf32>
    %4 = vector.broadcast %3 : vector<1x128xf32> to vector<64x128xf32>
    %5 = arith.addf %2, %4 : vector<64x128xf32>
    %c0_5 = arith.constant 0 : index
    %c0_6 = arith.constant 0 : index
    %6 = vector.load %arg11[%c0_5, %c0_6] : memref<64x128xf32, #tpu.memory_space<vmem>>, vector<64x128xf32>
    tpu.vector_store %arg11[%c0_5, %c0_6], %5 {strides = array<i32>} : memref<64x128xf32, #tpu.memory_space<vmem>>, vector<64x128xf32>,
    %cst_7 = arith.constant 0.000000e+00 : f32
    %7 = vector.broadcast %cst_7 : f32 to vector<8x32xf32>
    %c0_8 = arith.constant 0 : index
    %c0_9 = arith.constant 0 : index
    %8 = vector.load %arg12[%c0_8, %c0_9] : memref<8x32xf32, #tpu.memory_space<vmem>>, vector<8x32xf32>
    tpu.vector_store %arg12[%c0_8, %c0_9], %7 {strides = array<i32>} : memref<8x32xf32, #tpu.memory_space<vmem>>, vector<8x32xf32>,
    %cst_10 = arith.constant 0.000000e+00 : f32
    %9 = vector.broadcast %cst_10 : f32 to vector<8x32xf32>
    %c0_11 = arith.constant 0 : index
    %c0_12 = arith.constant 0 : index
    %10 = vector.load %arg13[%c0_11, %c0_12] : memref<8x32xf32, #tpu.memory_space<vmem>>, vector<8x32xf32>
    tpu.vector_store %arg13[%c0_11, %c0_12], %9 {strides = array<i32>} : memref<8x32xf32, #tpu.memory_space<vmem>>, vector<8x32xf32>,
    %c0_13 = arith.constant 0 : index
    %c0_14 = arith.constant 0 : index
    %11 = vector.load %arg2[%c0_13, %c0_14] : memref<32x128xf32, #tpu.memory_space<vmem>>, vector<32x128xf32>
    %c0_i32 = arith.constant 0 : i32
    %c8_i32 = arith.constant 8 : i32
    %12 = arith.muli %c0_i32, %c8_i32 : i32
    %13 = tpu.assume_multiple %12, 8 : i32
    %14 = arith.index_cast %13 : i32 to index
    %c0_15 = arith.constant 0 : index
    %15 = vector.load %arg11[%14, %c0_15] : memref<64x128xf32, #tpu.memory_space<vmem>>, vector<8x128xf32>
    %c0_16 = arith.constant 0 : index
    %c0_17 = arith.constant 0 : index
    %16 = vector.load %arg12[%c0_16, %c0_17] : memref<8x32xf32, #tpu.memory_space<vmem>>, vector<8x32xf32>
    %cst_18 = arith.constant dense<0.000000e+00> : vector<8x128xf32>
    %17 = tpu.matmul %16, %11, %cst_18 {dimension_numbers = #tpu.dot_dimension_numbers<[1], [0], [0], [1], [0, 0, 1, 1], [], []>} : vector<8x32xf32>, vector<32x128xf32>, vector<8x128xf32> -> vector<8x128xf32>
    %18 = arith.addf %15, %17 : vector<8x128xf32>
    %19 = arith.negf %18 : vector<8x128xf32>
    %20 = math.exp %19 : vector<8x128xf32>
    %cst_19 = arith.constant 1.000000e+00 : f32
    %21 = vector.broadcast %cst_19 : f32 to vector<8x128xf32>
    %22 = arith.addf %21, %20 : vector<8x128xf32>
    %23 = arith.divf %21, %22 : vector<8x128xf32>
    %24 = vector.extract_strided_slice %23 {offsets = [0, 0], sizes = [8, 32], strides = [1, 1]} : vector<8x128xf32> to vector<8x32xf32>
    %25 = vector.extract_strided_slice %23 {offsets = [0, 32], sizes = [8, 32], strides = [1, 1]} : vector<8x128xf32> to vector<8x32xf32>
    %26 = vector.extract_strided_slice %23 {offsets = [0, 96], sizes = [8, 32], strides = [1, 1]} : vector<8x128xf32> to vector<8x32xf32>
    %27 = vector.extract_strided_slice %18 {offsets = [0, 64], sizes = [8, 32], strides = [1, 1]} : vector<8x128xf32> to vector<8x32xf32>
    %28 = math.tanh %27 : vector<8x32xf32>
    %c0_20 = arith.constant 0 : index
    %c0_21 = arith.constant 0 : index
    %29 = vector.load %arg13[%c0_20, %c0_21] : memref<8x32xf32, #tpu.memory_space<vmem>>, vector<8x32xf32>
    %30 = arith.mulf %25, %29 : vector<8x32xf32>
    %31 = arith.mulf %24, %28 : vector<8x32xf32>
    %32 = arith.addf %30, %31 : vector<8x32xf32>
    %33 = math.tanh %32 : vector<8x32xf32>
    %34 = arith.mulf %26, %33 : vector<8x32xf32>
    %c0_22 = arith.constant 0 : index
    %c0_23 = arith.constant 0 : index
    %35 = vector.load %arg13[%c0_22, %c0_23] : memref<8x32xf32, #tpu.memory_space<vmem>>, vector<8x32xf32>
    tpu.vector_store %arg13[%c0_22, %c0_23], %32 {strides = array<i32>} : memref<8x32xf32, #tpu.memory_space<vmem>>, vector<8x32xf32>,
    %c0_24 = arith.constant 0 : index
    %c0_25 = arith.constant 0 : index
    %36 = vector.load %arg12[%c0_24, %c0_25] : memref<8x32xf32, #tpu.memory_space<vmem>>, vector<8x32xf32>
    tpu.vector_store %arg12[%c0_24, %c0_25], %34 {strides = array<i32>} : memref<8x32xf32, #tpu.memory_space<vmem>>, vector<8x32xf32>,
    %37 = arith.index_cast %13 : i32 to index
    %c0_26 = arith.constant 0 : index
    %38 = vector.load %arg10[%37, %c0_26] : memref<64x32xf32, #tpu.memory_space<vmem>>, vector<8x32xf32>
    tpu.vector_store %arg10[%37, %c0_26], %34 {strides = array<i32>} : memref<64x32xf32, #tpu.memory_space<vmem>>, vector<8x32xf32>,
    %c1_i32 = arith.constant 1 : i32
    %c8_i32_27 = arith.constant 8 : i32
    %39 = arith.muli %c1_i32, %c8_i32_27 : i32
    %40 = tpu.assume_multiple %39, 8 : i32
    %41 = arith.index_cast %40 : i32 to index
    %c0_28 = arith.constant 0 : index
    %42 = vector.load %arg11[%41, %c0_28] : memref<64x128xf32, #tpu.memory_space<vmem>>, vector<8x128xf32>
    %c0_29 = arith.constant 0 : index
    %c0_30 = arith.constant 0 : index
    %43 = vector.load %arg12[%c0_29, %c0_30] : memref<8x32xf32, #tpu.memory_space<vmem>>, vector<8x32xf32>
    %cst_31 = arith.constant dense<0.000000e+00> : vector<8x128xf32>
    %44 = tpu.matmul %43, %11, %cst_31 {dimension_numbers = #tpu.dot_dimension_numbers<[1], [0], [0], [1], [0, 0, 1, 1], [], []>} : vector<8x32xf32>, vector<32x128xf32>, vector<8x128xf32> -> vector<8x128xf32>
    %45 = arith.addf %42, %44 : vector<8x128xf32>
    %46 = arith.negf %45 : vector<8x128xf32>
    %47 = math.exp %46 : vector<8x128xf32>
    %cst_32 = arith.constant 1.000000e+00 : f32
    %48 = vector.broadcast %cst_32 : f32 to vector<8x128xf32>
    %49 = arith.addf %48, %47 : vector<8x128xf32>
    %50 = arith.divf %48, %49 : vector<8x128xf32>
    %51 = vector.extract_strided_slice %50 {offsets = [0, 0], sizes = [8, 32], strides = [1, 1]} : vector<8x128xf32> to vector<8x32xf32>
    %52 = vector.extract_strided_slice %50 {offsets = [0, 32], sizes = [8, 32], strides = [1, 1]} : vector<8x128xf32> to vector<8x32xf32>
    %53 = vector.extract_strided_slice %50 {offsets = [0, 96], sizes = [8, 32], strides = [1, 1]} : vector<8x128xf32> to vector<8x32xf32>
    %54 = vector.extract_strided_slice %45 {offsets = [0, 64], sizes = [8, 32], strides = [1, 1]} : vector<8x128xf32> to vector<8x32xf32>
    %55 = math.tanh %54 : vector<8x32xf32>
    %c0_33 = arith.constant 0 : index
    %c0_34 = arith.constant 0 : index
    %56 = vector.load %arg13[%c0_33, %c0_34] : memref<8x32xf32, #tpu.memory_space<vmem>>, vector<8x32xf32>
    %57 = arith.mulf %52, %56 : vector<8x32xf32>
    %58 = arith.mulf %51, %55 : vector<8x32xf32>
    %59 = arith.addf %57, %58 : vector<8x32xf32>
    %60 = math.tanh %59 : vector<8x32xf32>
    %61 = arith.mulf %53, %60 : vector<8x32xf32>
    %c0_35 = arith.constant 0 : index
    %c0_36 = arith.constant 0 : index
    %62 = vector.load %arg13[%c0_35, %c0_36] : memref<8x32xf32, #tpu.memory_space<vmem>>, vector<8x32xf32>
    tpu.vector_store %arg13[%c0_35, %c0_36], %59 {strides = array<i32>} : memref<8x32xf32, #tpu.memory_space<vmem>>, vector<8x32xf32>,
    %c0_37 = arith.constant 0 : index
    %c0_38 = arith.constant 0 : index
    %63 = vector.load %arg12[%c0_37, %c0_38] : memref<8x32xf32, #tpu.memory_space<vmem>>, vector<8x32xf32>
    tpu.vector_store %arg12[%c0_37, %c0_38], %61 {strides = array<i32>} : memref<8x32xf32, #tpu.memory_space<vmem>>, vector<8x32xf32>,
    %64 = arith.index_cast %40 : i32 to index
    %c0_39 = arith.constant 0 : index
    %65 = vector.load %arg10[%64, %c0_39] : memref<64x32xf32, #tpu.memory_space<vmem>>, vector<8x32xf32>
    tpu.vector_store %arg10[%64, %c0_39], %61 {strides = array<i32>} : memref<64x32xf32, #tpu.memory_space<vmem>>, vector<8x32xf32>,
    %c2_i32 = arith.constant 2 : i32
    %c8_i32_40 = arith.constant 8 : i32
    %66 = arith.muli %c2_i32, %c8_i32_40 : i32
    %67 = tpu.assume_multiple %66, 8 : i32
    %68 = arith.index_cast %67 : i32 to index
    %c0_41 = arith.constant 0 : index
    %69 = vector.load %arg11[%68, %c0_41] : memref<64x128xf32, #tpu.memory_space<vmem>>, vector<8x128xf32>
    %c0_42 = arith.constant 0 : index
    %c0_43 = arith.constant 0 : index
    %70 = vector.load %arg12[%c0_42, %c0_43] : memref<8x32xf32, #tpu.memory_space<vmem>>, vector<8x32xf32>
    %cst_44 = arith.constant dense<0.000000e+00> : vector<8x128xf32>
    %71 = tpu.matmul %70, %11, %cst_44 {dimension_numbers = #tpu.dot_dimension_numbers<[1], [0], [0], [1], [0, 0, 1, 1], [], []>} : vector<8x32xf32>, vector<32x128xf32>, vector<8x128xf32> -> vector<8x128xf32>
    %72 = arith.addf %69, %71 : vector<8x128xf32>
    %73 = arith.negf %72 : vector<8x128xf32>
    %74 = math.exp %73 : vector<8x128xf32>
    %cst_45 = arith.constant 1.000000e+00 : f32
    %75 = vector.broadcast %cst_45 : f32 to vector<8x128xf32>
    %76 = arith.addf %75, %74 : vector<8x128xf32>
    %77 = arith.divf %75, %76 : vector<8x128xf32>
    %78 = vector.extract_strided_slice %77 {offsets = [0, 0], sizes = [8, 32], strides = [1, 1]} : vector<8x128xf32> to vector<8x32xf32>
    %79 = vector.extract_strided_slice %77 {offsets = [0, 32], sizes = [8, 32], strides = [1, 1]} : vector<8x128xf32> to vector<8x32xf32>
    %80 = vector.extract_strided_slice %77 {offsets = [0, 96], sizes = [8, 32], strides = [1, 1]} : vector<8x128xf32> to vector<8x32xf32>
    %81 = vector.extract_strided_slice %72 {offsets = [0, 64], sizes = [8, 32], strides = [1, 1]} : vector<8x128xf32> to vector<8x32xf32>
    %82 = math.tanh %81 : vector<8x32xf32>
    %c0_46 = arith.constant 0 : index
    %c0_47 = arith.constant 0 : index
    %83 = vector.load %arg13[%c0_46, %c0_47] : memref<8x32xf32, #tpu.memory_space<vmem>>, vector<8x32xf32>
    %84 = arith.mulf %79, %83 : vector<8x32xf32>
    %85 = arith.mulf %78, %82 : vector<8x32xf32>
    %86 = arith.addf %84, %85 : vector<8x32xf32>
    %87 = math.tanh %86 : vector<8x32xf32>
    %88 = arith.mulf %80, %87 : vector<8x32xf32>
    %c0_48 = arith.constant 0 : index
    %c0_49 = arith.constant 0 : index
    %89 = vector.load %arg13[%c0_48, %c0_49] : memref<8x32xf32, #tpu.memory_space<vmem>>, vector<8x32xf32>
    tpu.vector_store %arg13[%c0_48, %c0_49], %86 {strides = array<i32>} : memref<8x32xf32, #tpu.memory_space<vmem>>, vector<8x32xf32>,
    %c0_50 = arith.constant 0 : index
    %c0_51 = arith.constant 0 : index
    %90 = vector.load %arg12[%c0_50, %c0_51] : memref<8x32xf32, #tpu.memory_space<vmem>>, vector<8x32xf32>
    tpu.vector_store %arg12[%c0_50, %c0_51], %88 {strides = array<i32>} : memref<8x32xf32, #tpu.memory_space<vmem>>, vector<8x32xf32>,
    %91 = arith.index_cast %67 : i32 to index
    %c0_52 = arith.constant 0 : index
    %92 = vector.load %arg10[%91, %c0_52] : memref<64x32xf32, #tpu.memory_space<vmem>>, vector<8x32xf32>
    tpu.vector_store %arg10[%91, %c0_52], %88 {strides = array<i32>} : memref<64x32xf32, #tpu.memory_space<vmem>>, vector<8x32xf32>,
    %c3_i32 = arith.constant 3 : i32
    %c8_i32_53 = arith.constant 8 : i32
    %93 = arith.muli %c3_i32, %c8_i32_53 : i32
    %94 = tpu.assume_multiple %93, 8 : i32
    %95 = arith.index_cast %94 : i32 to index
    %c0_54 = arith.constant 0 : index
    %96 = vector.load %arg11[%95, %c0_54] : memref<64x128xf32, #tpu.memory_space<vmem>>, vector<8x128xf32>
    %c0_55 = arith.constant 0 : index
    %c0_56 = arith.constant 0 : index
    %97 = vector.load %arg12[%c0_55, %c0_56] : memref<8x32xf32, #tpu.memory_space<vmem>>, vector<8x32xf32>
    %cst_57 = arith.constant dense<0.000000e+00> : vector<8x128xf32>
    %98 = tpu.matmul %97, %11, %cst_57 {dimension_numbers = #tpu.dot_dimension_numbers<[1], [0], [0], [1], [0, 0, 1, 1], [], []>} : vector<8x32xf32>, vector<32x128xf32>, vector<8x128xf32> -> vector<8x128xf32>
    %99 = arith.addf %96, %98 : vector<8x128xf32>
    %100 = arith.negf %99 : vector<8x128xf32>
    %101 = math.exp %100 : vector<8x128xf32>
    %cst_58 = arith.constant 1.000000e+00 : f32
    %102 = vector.broadcast %cst_58 : f32 to vector<8x128xf32>
    %103 = arith.addf %102, %101 : vector<8x128xf32>
    %104 = arith.divf %102, %103 : vector<8x128xf32>
    %105 = vector.extract_strided_slice %104 {offsets = [0, 0], sizes = [8, 32], strides = [1, 1]} : vector<8x128xf32> to vector<8x32xf32>
    %106 = vector.extract_strided_slice %104 {offsets = [0, 32], sizes = [8, 32], strides = [1, 1]} : vector<8x128xf32> to vector<8x32xf32>
    %107 = vector.extract_strided_slice %104 {offsets = [0, 96], sizes = [8, 32], strides = [1, 1]} : vector<8x128xf32> to vector<8x32xf32>
    %108 = vector.extract_strided_slice %99 {offsets = [0, 64], sizes = [8, 32], strides = [1, 1]} : vector<8x128xf32> to vector<8x32xf32>
    %109 = math.tanh %108 : vector<8x32xf32>
    %c0_59 = arith.constant 0 : index
    %c0_60 = arith.constant 0 : index
    %110 = vector.load %arg13[%c0_59, %c0_60] : memref<8x32xf32, #tpu.memory_space<vmem>>, vector<8x32xf32>
    %111 = arith.mulf %106, %110 : vector<8x32xf32>
    %112 = arith.mulf %105, %109 : vector<8x32xf32>
    %113 = arith.addf %111, %112 : vector<8x32xf32>
    %114 = math.tanh %113 : vector<8x32xf32>
    %115 = arith.mulf %107, %114 : vector<8x32xf32>
    %c0_61 = arith.constant 0 : index
    %c0_62 = arith.constant 0 : index
    %116 = vector.load %arg13[%c0_61, %c0_62] : memref<8x32xf32, #tpu.memory_space<vmem>>, vector<8x32xf32>
    tpu.vector_store %arg13[%c0_61, %c0_62], %113 {strides = array<i32>} : memref<8x32xf32, #tpu.memory_space<vmem>>, vector<8x32xf32>,
    %c0_63 = arith.constant 0 : index
    %c0_64 = arith.constant 0 : index
    %117 = vector.load %arg12[%c0_63, %c0_64] : memref<8x32xf32, #tpu.memory_space<vmem>>, vector<8x32xf32>
    tpu.vector_store %arg12[%c0_63, %c0_64], %115 {strides = array<i32>} : memref<8x32xf32, #tpu.memory_space<vmem>>, vector<8x32xf32>,
    %118 = arith.index_cast %94 : i32 to index
    %c0_65 = arith.constant 0 : index
    %119 = vector.load %arg10[%118, %c0_65] : memref<64x32xf32, #tpu.memory_space<vmem>>, vector<8x32xf32>
    tpu.vector_store %arg10[%118, %c0_65], %115 {strides = array<i32>} : memref<64x32xf32, #tpu.memory_space<vmem>>, vector<8x32xf32>,
    %c4_i32 = arith.constant 4 : i32
    %c8_i32_66 = arith.constant 8 : i32
    %120 = arith.muli %c4_i32, %c8_i32_66 : i32
    %121 = tpu.assume_multiple %120, 8 : i32
    %122 = arith.index_cast %121 : i32 to index
    %c0_67 = arith.constant 0 : index
    %123 = vector.load %arg11[%122, %c0_67] : memref<64x128xf32, #tpu.memory_space<vmem>>, vector<8x128xf32>
    %c0_68 = arith.constant 0 : index
    %c0_69 = arith.constant 0 : index
    %124 = vector.load %arg12[%c0_68, %c0_69] : memref<8x32xf32, #tpu.memory_space<vmem>>, vector<8x32xf32>
    %cst_70 = arith.constant dense<0.000000e+00> : vector<8x128xf32>
    %125 = tpu.matmul %124, %11, %cst_70 {dimension_numbers = #tpu.dot_dimension_numbers<[1], [0], [0], [1], [0, 0, 1, 1], [], []>} : vector<8x32xf32>, vector<32x128xf32>, vector<8x128xf32> -> vector<8x128xf32>
    %126 = arith.addf %123, %125 : vector<8x128xf32>
    %127 = arith.negf %126 : vector<8x128xf32>
    %128 = math.exp %127 : vector<8x128xf32>
    %cst_71 = arith.constant 1.000000e+00 : f32
    %129 = vector.broadcast %cst_71 : f32 to vector<8x128xf32>
    %130 = arith.addf %129, %128 : vector<8x128xf32>
    %131 = arith.divf %129, %130 : vector<8x128xf32>
    %132 = vector.extract_strided_slice %131 {offsets = [0, 0], sizes = [8, 32], strides = [1, 1]} : vector<8x128xf32> to vector<8x32xf32>
    %133 = vector.extract_strided_slice %131 {offsets = [0, 32], sizes = [8, 32], strides = [1, 1]} : vector<8x128xf32> to vector<8x32xf32>
    %134 = vector.extract_strided_slice %131 {offsets = [0, 96], sizes = [8, 32], strides = [1, 1]} : vector<8x128xf32> to vector<8x32xf32>
    %135 = vector.extract_strided_slice %126 {offsets = [0, 64], sizes = [8, 32], strides = [1, 1]} : vector<8x128xf32> to vector<8x32xf32>
    %136 = math.tanh %135 : vector<8x32xf32>
    %c0_72 = arith.constant 0 : index
    %c0_73 = arith.constant 0 : index
    %137 = vector.load %arg13[%c0_72, %c0_73] : memref<8x32xf32, #tpu.memory_space<vmem>>, vector<8x32xf32>
    %138 = arith.mulf %133, %137 : vector<8x32xf32>
    %139 = arith.mulf %132, %136 : vector<8x32xf32>
    %140 = arith.addf %138, %139 : vector<8x32xf32>
    %141 = math.tanh %140 : vector<8x32xf32>
    %142 = arith.mulf %134, %141 : vector<8x32xf32>
    %c0_74 = arith.constant 0 : index
    %c0_75 = arith.constant 0 : index
    %143 = vector.load %arg13[%c0_74, %c0_75] : memref<8x32xf32, #tpu.memory_space<vmem>>, vector<8x32xf32>
    tpu.vector_store %arg13[%c0_74, %c0_75], %140 {strides = array<i32>} : memref<8x32xf32, #tpu.memory_space<vmem>>, vector<8x32xf32>,
    %c0_76 = arith.constant 0 : index
    %c0_77 = arith.constant 0 : index
    %144 = vector.load %arg12[%c0_76, %c0_77] : memref<8x32xf32, #tpu.memory_space<vmem>>, vector<8x32xf32>
    tpu.vector_store %arg12[%c0_76, %c0_77], %142 {strides = array<i32>} : memref<8x32xf32, #tpu.memory_space<vmem>>, vector<8x32xf32>,
    %145 = arith.index_cast %121 : i32 to index
    %c0_78 = arith.constant 0 : index
    %146 = vector.load %arg10[%145, %c0_78] : memref<64x32xf32, #tpu.memory_space<vmem>>, vector<8x32xf32>
    tpu.vector_store %arg10[%145, %c0_78], %142 {strides = array<i32>} : memref<64x32xf32, #tpu.memory_space<vmem>>, vector<8x32xf32>,
    %c5_i32 = arith.constant 5 : i32
    %c8_i32_79 = arith.constant 8 : i32
    %147 = arith.muli %c5_i32, %c8_i32_79 : i32
    %148 = tpu.assume_multiple %147, 8 : i32
    %149 = arith.index_cast %148 : i32 to index
    %c0_80 = arith.constant 0 : index
    %150 = vector.load %arg11[%149, %c0_80] : memref<64x128xf32, #tpu.memory_space<vmem>>, vector<8x128xf32>
    %c0_81 = arith.constant 0 : index
    %c0_82 = arith.constant 0 : index
    %151 = vector.load %arg12[%c0_81, %c0_82] : memref<8x32xf32, #tpu.memory_space<vmem>>, vector<8x32xf32>
    %cst_83 = arith.constant dense<0.000000e+00> : vector<8x128xf32>
    %152 = tpu.matmul %151, %11, %cst_83 {dimension_numbers = #tpu.dot_dimension_numbers<[1], [0], [0], [1], [0, 0, 1, 1], [], []>} : vector<8x32xf32>, vector<32x128xf32>, vector<8x128xf32> -> vector<8x128xf32>
    %153 = arith.addf %150, %152 : vector<8x128xf32>
    %154 = arith.negf %153 : vector<8x128xf32>
    %155 = math.exp %154 : vector<8x128xf32>
    %cst_84 = arith.constant 1.000000e+00 : f32
    %156 = vector.broadcast %cst_84 : f32 to vector<8x128xf32>
    %157 = arith.addf %156, %155 : vector<8x128xf32>
    %158 = arith.divf %156, %157 : vector<8x128xf32>
    %159 = vector.extract_strided_slice %158 {offsets = [0, 0], sizes = [8, 32], strides = [1, 1]} : vector<8x128xf32> to vector<8x32xf32>
    %160 = vector.extract_strided_slice %158 {offsets = [0, 32], sizes = [8, 32], strides = [1, 1]} : vector<8x128xf32> to vector<8x32xf32>
    %161 = vector.extract_strided_slice %158 {offsets = [0, 96], sizes = [8, 32], strides = [1, 1]} : vector<8x128xf32> to vector<8x32xf32>
    %162 = vector.extract_strided_slice %153 {offsets = [0, 64], sizes = [8, 32], strides = [1, 1]} : vector<8x128xf32> to vector<8x32xf32>
    %163 = math.tanh %162 : vector<8x32xf32>
    %c0_85 = arith.constant 0 : index
    %c0_86 = arith.constant 0 : index
    %164 = vector.load %arg13[%c0_85, %c0_86] : memref<8x32xf32, #tpu.memory_space<vmem>>, vector<8x32xf32>
    %165 = arith.mulf %160, %164 : vector<8x32xf32>
    %166 = arith.mulf %159, %163 : vector<8x32xf32>
    %167 = arith.addf %165, %166 : vector<8x32xf32>
    %168 = math.tanh %167 : vector<8x32xf32>
    %169 = arith.mulf %161, %168 : vector<8x32xf32>
    %c0_87 = arith.constant 0 : index
    %c0_88 = arith.constant 0 : index
    %170 = vector.load %arg13[%c0_87, %c0_88] : memref<8x32xf32, #tpu.memory_space<vmem>>, vector<8x32xf32>
    tpu.vector_store %arg13[%c0_87, %c0_88], %167 {strides = array<i32>} : memref<8x32xf32, #tpu.memory_space<vmem>>, vector<8x32xf32>,
    %c0_89 = arith.constant 0 : index
    %c0_90 = arith.constant 0 : index
    %171 = vector.load %arg12[%c0_89, %c0_90] : memref<8x32xf32, #tpu.memory_space<vmem>>, vector<8x32xf32>
    tpu.vector_store %arg12[%c0_89, %c0_90], %169 {strides = array<i32>} : memref<8x32xf32, #tpu.memory_space<vmem>>, vector<8x32xf32>,
    %172 = arith.index_cast %148 : i32 to index
    %c0_91 = arith.constant 0 : index
    %173 = vector.load %arg10[%172, %c0_91] : memref<64x32xf32, #tpu.memory_space<vmem>>, vector<8x32xf32>
    tpu.vector_store %arg10[%172, %c0_91], %169 {strides = array<i32>} : memref<64x32xf32, #tpu.memory_space<vmem>>, vector<8x32xf32>,
    %c6_i32 = arith.constant 6 : i32
    %c8_i32_92 = arith.constant 8 : i32
    %174 = arith.muli %c6_i32, %c8_i32_92 : i32
    %175 = tpu.assume_multiple %174, 8 : i32
    %176 = arith.index_cast %175 : i32 to index
    %c0_93 = arith.constant 0 : index
    %177 = vector.load %arg11[%176, %c0_93] : memref<64x128xf32, #tpu.memory_space<vmem>>, vector<8x128xf32>
    %c0_94 = arith.constant 0 : index
    %c0_95 = arith.constant 0 : index
    %178 = vector.load %arg12[%c0_94, %c0_95] : memref<8x32xf32, #tpu.memory_space<vmem>>, vector<8x32xf32>
    %cst_96 = arith.constant dense<0.000000e+00> : vector<8x128xf32>
    %179 = tpu.matmul %178, %11, %cst_96 {dimension_numbers = #tpu.dot_dimension_numbers<[1], [0], [0], [1], [0, 0, 1, 1], [], []>} : vector<8x32xf32>, vector<32x128xf32>, vector<8x128xf32> -> vector<8x128xf32>
    %180 = arith.addf %177, %179 : vector<8x128xf32>
    %181 = arith.negf %180 : vector<8x128xf32>
    %182 = math.exp %181 : vector<8x128xf32>
    %cst_97 = arith.constant 1.000000e+00 : f32
    %183 = vector.broadcast %cst_97 : f32 to vector<8x128xf32>
    %184 = arith.addf %183, %182 : vector<8x128xf32>
    %185 = arith.divf %183, %184 : vector<8x128xf32>
    %186 = vector.extract_strided_slice %185 {offsets = [0, 0], sizes = [8, 32], strides = [1, 1]} : vector<8x128xf32> to vector<8x32xf32>
    %187 = vector.extract_strided_slice %185 {offsets = [0, 32], sizes = [8, 32], strides = [1, 1]} : vector<8x128xf32> to vector<8x32xf32>
    %188 = vector.extract_strided_slice %185 {offsets = [0, 96], sizes = [8, 32], strides = [1, 1]} : vector<8x128xf32> to vector<8x32xf32>
    %189 = vector.extract_strided_slice %180 {offsets = [0, 64], sizes = [8, 32], strides = [1, 1]} : vector<8x128xf32> to vector<8x32xf32>
    %190 = math.tanh %189 : vector<8x32xf32>
    %c0_98 = arith.constant 0 : index
    %c0_99 = arith.constant 0 : index
    %191 = vector.load %arg13[%c0_98, %c0_99] : memref<8x32xf32, #tpu.memory_space<vmem>>, vector<8x32xf32>
    %192 = arith.mulf %187, %191 : vector<8x32xf32>
    %193 = arith.mulf %186, %190 : vector<8x32xf32>
    %194 = arith.addf %192, %193 : vector<8x32xf32>
    %195 = math.tanh %194 : vector<8x32xf32>
    %196 = arith.mulf %188, %195 : vector<8x32xf32>
    %c0_100 = arith.constant 0 : index
    %c0_101 = arith.constant 0 : index
    %197 = vector.load %arg13[%c0_100, %c0_101] : memref<8x32xf32, #tpu.memory_space<vmem>>, vector<8x32xf32>
    tpu.vector_store %arg13[%c0_100, %c0_101], %194 {strides = array<i32>} : memref<8x32xf32, #tpu.memory_space<vmem>>, vector<8x32xf32>,
    %c0_102 = arith.constant 0 : index
    %c0_103 = arith.constant 0 : index
    %198 = vector.load %arg12[%c0_102, %c0_103] : memref<8x32xf32, #tpu.memory_space<vmem>>, vector<8x32xf32>
    tpu.vector_store %arg12[%c0_102, %c0_103], %196 {strides = array<i32>} : memref<8x32xf32, #tpu.memory_space<vmem>>, vector<8x32xf32>,
    %199 = arith.index_cast %175 : i32 to index
    %c0_104 = arith.constant 0 : index
    %200 = vector.load %arg10[%199, %c0_104] : memref<64x32xf32, #tpu.memory_space<vmem>>, vector<8x32xf32>
    tpu.vector_store %arg10[%199, %c0_104], %196 {strides = array<i32>} : memref<64x32xf32, #tpu.memory_space<vmem>>, vector<8x32xf32>,
    %c7_i32 = arith.constant 7 : i32
    %c8_i32_105 = arith.constant 8 : i32
    %201 = arith.muli %c7_i32, %c8_i32_105 : i32
    %202 = tpu.assume_multiple %201, 8 : i32
    %203 = arith.index_cast %202 : i32 to index
    %c0_106 = arith.constant 0 : index
    %204 = vector.load %arg11[%203, %c0_106] : memref<64x128xf32, #tpu.memory_space<vmem>>, vector<8x128xf32>
    %c0_107 = arith.constant 0 : index
    %c0_108 = arith.constant 0 : index
    %205 = vector.load %arg12[%c0_107, %c0_108] : memref<8x32xf32, #tpu.memory_space<vmem>>, vector<8x32xf32>
    %cst_109 = arith.constant dense<0.000000e+00> : vector<8x128xf32>
    %206 = tpu.matmul %205, %11, %cst_109 {dimension_numbers = #tpu.dot_dimension_numbers<[1], [0], [0], [1], [0, 0, 1, 1], [], []>} : vector<8x32xf32>, vector<32x128xf32>, vector<8x128xf32> -> vector<8x128xf32>
    %207 = arith.addf %204, %206 : vector<8x128xf32>
    %208 = arith.negf %207 : vector<8x128xf32>
    %209 = math.exp %208 : vector<8x128xf32>
    %cst_110 = arith.constant 1.000000e+00 : f32
    %210 = vector.broadcast %cst_110 : f32 to vector<8x128xf32>
    %211 = arith.addf %210, %209 : vector<8x128xf32>
    %212 = arith.divf %210, %211 : vector<8x128xf32>
    %213 = vector.extract_strided_slice %212 {offsets = [0, 0], sizes = [8, 32], strides = [1, 1]} : vector<8x128xf32> to vector<8x32xf32>
    %214 = vector.extract_strided_slice %212 {offsets = [0, 32], sizes = [8, 32], strides = [1, 1]} : vector<8x128xf32> to vector<8x32xf32>
    %215 = vector.extract_strided_slice %212 {offsets = [0, 96], sizes = [8, 32], strides = [1, 1]} : vector<8x128xf32> to vector<8x32xf32>
    %216 = vector.extract_strided_slice %207 {offsets = [0, 64], sizes = [8, 32], strides = [1, 1]} : vector<8x128xf32> to vector<8x32xf32>
    %217 = math.tanh %216 : vector<8x32xf32>
    %c0_111 = arith.constant 0 : index
    %c0_112 = arith.constant 0 : index
    %218 = vector.load %arg13[%c0_111, %c0_112] : memref<8x32xf32, #tpu.memory_space<vmem>>, vector<8x32xf32>
    %219 = arith.mulf %214, %218 : vector<8x32xf32>
    %220 = arith.mulf %213, %217 : vector<8x32xf32>
    %221 = arith.addf %219, %220 : vector<8x32xf32>
    %222 = math.tanh %221 : vector<8x32xf32>
    %223 = arith.mulf %215, %222 : vector<8x32xf32>
    %c0_113 = arith.constant 0 : index
    %c0_114 = arith.constant 0 : index
    %224 = vector.load %arg13[%c0_113, %c0_114] : memref<8x32xf32, #tpu.memory_space<vmem>>, vector<8x32xf32>
    tpu.vector_store %arg13[%c0_113, %c0_114], %221 {strides = array<i32>} : memref<8x32xf32, #tpu.memory_space<vmem>>, vector<8x32xf32>,
    %c0_115 = arith.constant 0 : index
    %c0_116 = arith.constant 0 : index
    %225 = vector.load %arg12[%c0_115, %c0_116] : memref<8x32xf32, #tpu.memory_space<vmem>>, vector<8x32xf32>
    tpu.vector_store %arg12[%c0_115, %c0_116], %223 {strides = array<i32>} : memref<8x32xf32, #tpu.memory_space<vmem>>, vector<8x32xf32>,
    %226 = arith.index_cast %202 : i32 to index
    %c0_117 = arith.constant 0 : index
    %227 = vector.load %arg10[%226, %c0_117] : memref<64x32xf32, #tpu.memory_space<vmem>>, vector<8x32xf32>
    tpu.vector_store %arg10[%226, %c0_117], %223 {strides = array<i32>} : memref<64x32xf32, #tpu.memory_space<vmem>>, vector<8x32xf32>,
    %c8_i32_118 = arith.constant 8 : i32
    %c0_119 = arith.constant 0 : index
    %c0_120 = arith.constant 0 : index
    %228 = vector.load %arg10[%c0_119, %c0_120] : memref<64x32xf32, #tpu.memory_space<vmem>>, vector<64x32xf32>
    %c0_121 = arith.constant 0 : index
    %c0_122 = arith.constant 0 : index
    %229 = vector.load %arg4[%c0_121, %c0_122] : memref<32x128xf32, #tpu.memory_space<vmem>>, vector<32x128xf32>
    %cst_123 = arith.constant dense<0.000000e+00> : vector<64x128xf32>
    %230 = tpu.matmul %228, %229, %cst_123 {dimension_numbers = #tpu.dot_dimension_numbers<[1], [0], [0], [1], [0, 0, 1, 1], [], []>} : vector<64x32xf32>, vector<32x128xf32>, vector<64x128xf32> -> vector<64x128xf32>
    %c0_124 = arith.constant 0 : index
    %c0_125 = arith.constant 0 : index
    %231 = vector.load %arg6[%c0_124, %c0_125] : memref<1x128xf32, #tpu.memory_space<vmem>>, vector<1x128xf32>
    %232 = vector.broadcast %231 : vector<1x128xf32> to vector<64x128xf32>
    %233 = arith.addf %230, %232 : vector<64x128xf32>
    %c0_126 = arith.constant 0 : index
    %c0_127 = arith.constant 0 : index
    %234 = vector.load %arg11[%c0_126, %c0_127] : memref<64x128xf32, #tpu.memory_space<vmem>>, vector<64x128xf32>
    tpu.vector_store %arg11[%c0_126, %c0_127], %233 {strides = array<i32>} : memref<64x128xf32, #tpu.memory_space<vmem>>, vector<64x128xf32>,
    %cst_128 = arith.constant 0.000000e+00 : f32
    %235 = vector.broadcast %cst_128 : f32 to vector<8x32xf32>
    %c0_129 = arith.constant 0 : index
    %c0_130 = arith.constant 0 : index
    %236 = vector.load %arg12[%c0_129, %c0_130] : memref<8x32xf32, #tpu.memory_space<vmem>>, vector<8x32xf32>
    tpu.vector_store %arg12[%c0_129, %c0_130], %235 {strides = array<i32>} : memref<8x32xf32, #tpu.memory_space<vmem>>, vector<8x32xf32>,
    %cst_131 = arith.constant 0.000000e+00 : f32
    %237 = vector.broadcast %cst_131 : f32 to vector<8x32xf32>
    %c0_132 = arith.constant 0 : index
    %c0_133 = arith.constant 0 : index
    %238 = vector.load %arg13[%c0_132, %c0_133] : memref<8x32xf32, #tpu.memory_space<vmem>>, vector<8x32xf32>
    tpu.vector_store %arg13[%c0_132, %c0_133], %237 {strides = array<i32>} : memref<8x32xf32, #tpu.memory_space<vmem>>, vector<8x32xf32>,
    %c0_134 = arith.constant 0 : index
    %c0_135 = arith.constant 0 : index
    %239 = vector.load %arg5[%c0_134, %c0_135] : memref<32x128xf32, #tpu.memory_space<vmem>>, vector<32x128xf32>
    %c0_i32_136 = arith.constant 0 : i32
    %c8_i32_137 = arith.constant 8 : i32
    %240 = arith.muli %c0_i32_136, %c8_i32_137 : i32
    %241 = tpu.assume_multiple %240, 8 : i32
    %242 = arith.index_cast %241 : i32 to index
    %c0_138 = arith.constant 0 : index
    %243 = vector.load %arg11[%242, %c0_138] : memref<64x128xf32, #tpu.memory_space<vmem>>, vector<8x128xf32>
    %c0_139 = arith.constant 0 : index
    %c0_140 = arith.constant 0 : index
    %244 = vector.load %arg12[%c0_139, %c0_140] : memref<8x32xf32, #tpu.memory_space<vmem>>, vector<8x32xf32>
    %cst_141 = arith.constant dense<0.000000e+00> : vector<8x128xf32>
    %245 = tpu.matmul %244, %239, %cst_141 {dimension_numbers = #tpu.dot_dimension_numbers<[1], [0], [0], [1], [0, 0, 1, 1], [], []>} : vector<8x32xf32>, vector<32x128xf32>, vector<8x128xf32> -> vector<8x128xf32>
    %246 = arith.addf %243, %245 : vector<8x128xf32>
    %247 = arith.negf %246 : vector<8x128xf32>
    %248 = math.exp %247 : vector<8x128xf32>
    %cst_142 = arith.constant 1.000000e+00 : f32
    %249 = vector.broadcast %cst_142 : f32 to vector<8x128xf32>
    %250 = arith.addf %249, %248 : vector<8x128xf32>
    %251 = arith.divf %249, %250 : vector<8x128xf32>
    %252 = vector.extract_strided_slice %251 {offsets = [0, 0], sizes = [8, 32], strides = [1, 1]} : vector<8x128xf32> to vector<8x32xf32>
    %253 = vector.extract_strided_slice %251 {offsets = [0, 32], sizes = [8, 32], strides = [1, 1]} : vector<8x128xf32> to vector<8x32xf32>
    %254 = vector.extract_strided_slice %251 {offsets = [0, 96], sizes = [8, 32], strides = [1, 1]} : vector<8x128xf32> to vector<8x32xf32>
    %255 = vector.extract_strided_slice %246 {offsets = [0, 64], sizes = [8, 32], strides = [1, 1]} : vector<8x128xf32> to vector<8x32xf32>
    %256 = math.tanh %255 : vector<8x32xf32>
    %c0_143 = arith.constant 0 : index
    %c0_144 = arith.constant 0 : index
    %257 = vector.load %arg13[%c0_143, %c0_144] : memref<8x32xf32, #tpu.memory_space<vmem>>, vector<8x32xf32>
    %258 = arith.mulf %253, %257 : vector<8x32xf32>
    %259 = arith.mulf %252, %256 : vector<8x32xf32>
    %260 = arith.addf %258, %259 : vector<8x32xf32>
    %261 = math.tanh %260 : vector<8x32xf32>
    %262 = arith.mulf %254, %261 : vector<8x32xf32>
    %c0_145 = arith.constant 0 : index
    %c0_146 = arith.constant 0 : index
    %263 = vector.load %arg13[%c0_145, %c0_146] : memref<8x32xf32, #tpu.memory_space<vmem>>, vector<8x32xf32>
    tpu.vector_store %arg13[%c0_145, %c0_146], %260 {strides = array<i32>} : memref<8x32xf32, #tpu.memory_space<vmem>>, vector<8x32xf32>,
    %c0_147 = arith.constant 0 : index
    %c0_148 = arith.constant 0 : index
    %264 = vector.load %arg12[%c0_147, %c0_148] : memref<8x32xf32, #tpu.memory_space<vmem>>, vector<8x32xf32>
    tpu.vector_store %arg12[%c0_147, %c0_148], %262 {strides = array<i32>} : memref<8x32xf32, #tpu.memory_space<vmem>>, vector<8x32xf32>,
    %c1_i32_149 = arith.constant 1 : i32
    %c8_i32_150 = arith.constant 8 : i32
    %265 = arith.muli %c1_i32_149, %c8_i32_150 : i32
    %266 = tpu.assume_multiple %265, 8 : i32
    %267 = arith.index_cast %266 : i32 to index
    %c0_151 = arith.constant 0 : index
    %268 = vector.load %arg11[%267, %c0_151] : memref<64x128xf32, #tpu.memory_space<vmem>>, vector<8x128xf32>
    %c0_152 = arith.constant 0 : index
    %c0_153 = arith.constant 0 : index
    %269 = vector.load %arg12[%c0_152, %c0_153] : memref<8x32xf32, #tpu.memory_space<vmem>>, vector<8x32xf32>
    %cst_154 = arith.constant dense<0.000000e+00> : vector<8x128xf32>
    %270 = tpu.matmul %269, %239, %cst_154 {dimension_numbers = #tpu.dot_dimension_numbers<[1], [0], [0], [1], [0, 0, 1, 1], [], []>} : vector<8x32xf32>, vector<32x128xf32>, vector<8x128xf32> -> vector<8x128xf32>
    %271 = arith.addf %268, %270 : vector<8x128xf32>
    %272 = arith.negf %271 : vector<8x128xf32>
    %273 = math.exp %272 : vector<8x128xf32>
    %cst_155 = arith.constant 1.000000e+00 : f32
    %274 = vector.broadcast %cst_155 : f32 to vector<8x128xf32>
    %275 = arith.addf %274, %273 : vector<8x128xf32>
    %276 = arith.divf %274, %275 : vector<8x128xf32>
    %277 = vector.extract_strided_slice %276 {offsets = [0, 0], sizes = [8, 32], strides = [1, 1]} : vector<8x128xf32> to vector<8x32xf32>
    %278 = vector.extract_strided_slice %276 {offsets = [0, 32], sizes = [8, 32], strides = [1, 1]} : vector<8x128xf32> to vector<8x32xf32>
    %279 = vector.extract_strided_slice %276 {offsets = [0, 96], sizes = [8, 32], strides = [1, 1]} : vector<8x128xf32> to vector<8x32xf32>
    %280 = vector.extract_strided_slice %271 {offsets = [0, 64], sizes = [8, 32], strides = [1, 1]} : vector<8x128xf32> to vector<8x32xf32>
    %281 = math.tanh %280 : vector<8x32xf32>
    %c0_156 = arith.constant 0 : index
    %c0_157 = arith.constant 0 : index
    %282 = vector.load %arg13[%c0_156, %c0_157] : memref<8x32xf32, #tpu.memory_space<vmem>>, vector<8x32xf32>
    %283 = arith.mulf %278, %282 : vector<8x32xf32>
    %284 = arith.mulf %277, %281 : vector<8x32xf32>
    %285 = arith.addf %283, %284 : vector<8x32xf32>
    %286 = math.tanh %285 : vector<8x32xf32>
    %287 = arith.mulf %279, %286 : vector<8x32xf32>
    %c0_158 = arith.constant 0 : index
    %c0_159 = arith.constant 0 : index
    %288 = vector.load %arg13[%c0_158, %c0_159] : memref<8x32xf32, #tpu.memory_space<vmem>>, vector<8x32xf32>
    tpu.vector_store %arg13[%c0_158, %c0_159], %285 {strides = array<i32>} : memref<8x32xf32, #tpu.memory_space<vmem>>, vector<8x32xf32>,
    %c0_160 = arith.constant 0 : index
    %c0_161 = arith.constant 0 : index
    %289 = vector.load %arg12[%c0_160, %c0_161] : memref<8x32xf32, #tpu.memory_space<vmem>>, vector<8x32xf32>
    tpu.vector_store %arg12[%c0_160, %c0_161], %287 {strides = array<i32>} : memref<8x32xf32, #tpu.memory_space<vmem>>, vector<8x32xf32>,
    %c2_i32_162 = arith.constant 2 : i32
    %c8_i32_163 = arith.constant 8 : i32
    %290 = arith.muli %c2_i32_162, %c8_i32_163 : i32
    %291 = tpu.assume_multiple %290, 8 : i32
    %292 = arith.index_cast %291 : i32 to index
    %c0_164 = arith.constant 0 : index
    %293 = vector.load %arg11[%292, %c0_164] : memref<64x128xf32, #tpu.memory_space<vmem>>, vector<8x128xf32>
    %c0_165 = arith.constant 0 : index
    %c0_166 = arith.constant 0 : index
    %294 = vector.load %arg12[%c0_165, %c0_166] : memref<8x32xf32, #tpu.memory_space<vmem>>, vector<8x32xf32>
    %cst_167 = arith.constant dense<0.000000e+00> : vector<8x128xf32>
    %295 = tpu.matmul %294, %239, %cst_167 {dimension_numbers = #tpu.dot_dimension_numbers<[1], [0], [0], [1], [0, 0, 1, 1], [], []>} : vector<8x32xf32>, vector<32x128xf32>, vector<8x128xf32> -> vector<8x128xf32>
    %296 = arith.addf %293, %295 : vector<8x128xf32>
    %297 = arith.negf %296 : vector<8x128xf32>
    %298 = math.exp %297 : vector<8x128xf32>
    %cst_168 = arith.constant 1.000000e+00 : f32
    %299 = vector.broadcast %cst_168 : f32 to vector<8x128xf32>
    %300 = arith.addf %299, %298 : vector<8x128xf32>
    %301 = arith.divf %299, %300 : vector<8x128xf32>
    %302 = vector.extract_strided_slice %301 {offsets = [0, 0], sizes = [8, 32], strides = [1, 1]} : vector<8x128xf32> to vector<8x32xf32>
    %303 = vector.extract_strided_slice %301 {offsets = [0, 32], sizes = [8, 32], strides = [1, 1]} : vector<8x128xf32> to vector<8x32xf32>
    %304 = vector.extract_strided_slice %301 {offsets = [0, 96], sizes = [8, 32], strides = [1, 1]} : vector<8x128xf32> to vector<8x32xf32>
    %305 = vector.extract_strided_slice %296 {offsets = [0, 64], sizes = [8, 32], strides = [1, 1]} : vector<8x128xf32> to vector<8x32xf32>
    %306 = math.tanh %305 : vector<8x32xf32>
    %c0_169 = arith.constant 0 : index
    %c0_170 = arith.constant 0 : index
    %307 = vector.load %arg13[%c0_169, %c0_170] : memref<8x32xf32, #tpu.memory_space<vmem>>, vector<8x32xf32>
    %308 = arith.mulf %303, %307 : vector<8x32xf32>
    %309 = arith.mulf %302, %306 : vector<8x32xf32>
    %310 = arith.addf %308, %309 : vector<8x32xf32>
    %311 = math.tanh %310 : vector<8x32xf32>
    %312 = arith.mulf %304, %311 : vector<8x32xf32>
    %c0_171 = arith.constant 0 : index
    %c0_172 = arith.constant 0 : index
    %313 = vector.load %arg13[%c0_171, %c0_172] : memref<8x32xf32, #tpu.memory_space<vmem>>, vector<8x32xf32>
    tpu.vector_store %arg13[%c0_171, %c0_172], %310 {strides = array<i32>} : memref<8x32xf32, #tpu.memory_space<vmem>>, vector<8x32xf32>,
    %c0_173 = arith.constant 0 : index
    %c0_174 = arith.constant 0 : index
    %314 = vector.load %arg12[%c0_173, %c0_174] : memref<8x32xf32, #tpu.memory_space<vmem>>, vector<8x32xf32>
    tpu.vector_store %arg12[%c0_173, %c0_174], %312 {strides = array<i32>} : memref<8x32xf32, #tpu.memory_space<vmem>>, vector<8x32xf32>,
    %c3_i32_175 = arith.constant 3 : i32
    %c8_i32_176 = arith.constant 8 : i32
    %315 = arith.muli %c3_i32_175, %c8_i32_176 : i32
    %316 = tpu.assume_multiple %315, 8 : i32
    %317 = arith.index_cast %316 : i32 to index
    %c0_177 = arith.constant 0 : index
    %318 = vector.load %arg11[%317, %c0_177] : memref<64x128xf32, #tpu.memory_space<vmem>>, vector<8x128xf32>
    %c0_178 = arith.constant 0 : index
    %c0_179 = arith.constant 0 : index
    %319 = vector.load %arg12[%c0_178, %c0_179] : memref<8x32xf32, #tpu.memory_space<vmem>>, vector<8x32xf32>
    %cst_180 = arith.constant dense<0.000000e+00> : vector<8x128xf32>
    %320 = tpu.matmul %319, %239, %cst_180 {dimension_numbers = #tpu.dot_dimension_numbers<[1], [0], [0], [1], [0, 0, 1, 1], [], []>} : vector<8x32xf32>, vector<32x128xf32>, vector<8x128xf32> -> vector<8x128xf32>
    %321 = arith.addf %318, %320 : vector<8x128xf32>
    %322 = arith.negf %321 : vector<8x128xf32>
    %323 = math.exp %322 : vector<8x128xf32>
    %cst_181 = arith.constant 1.000000e+00 : f32
    %324 = vector.broadcast %cst_181 : f32 to vector<8x128xf32>
    %325 = arith.addf %324, %323 : vector<8x128xf32>
    %326 = arith.divf %324, %325 : vector<8x128xf32>
    %327 = vector.extract_strided_slice %326 {offsets = [0, 0], sizes = [8, 32], strides = [1, 1]} : vector<8x128xf32> to vector<8x32xf32>
    %328 = vector.extract_strided_slice %326 {offsets = [0, 32], sizes = [8, 32], strides = [1, 1]} : vector<8x128xf32> to vector<8x32xf32>
    %329 = vector.extract_strided_slice %326 {offsets = [0, 96], sizes = [8, 32], strides = [1, 1]} : vector<8x128xf32> to vector<8x32xf32>
    %330 = vector.extract_strided_slice %321 {offsets = [0, 64], sizes = [8, 32], strides = [1, 1]} : vector<8x128xf32> to vector<8x32xf32>
    %331 = math.tanh %330 : vector<8x32xf32>
    %c0_182 = arith.constant 0 : index
    %c0_183 = arith.constant 0 : index
    %332 = vector.load %arg13[%c0_182, %c0_183] : memref<8x32xf32, #tpu.memory_space<vmem>>, vector<8x32xf32>
    %333 = arith.mulf %328, %332 : vector<8x32xf32>
    %334 = arith.mulf %327, %331 : vector<8x32xf32>
    %335 = arith.addf %333, %334 : vector<8x32xf32>
    %336 = math.tanh %335 : vector<8x32xf32>
    %337 = arith.mulf %329, %336 : vector<8x32xf32>
    %c0_184 = arith.constant 0 : index
    %c0_185 = arith.constant 0 : index
    %338 = vector.load %arg13[%c0_184, %c0_185] : memref<8x32xf32, #tpu.memory_space<vmem>>, vector<8x32xf32>
    tpu.vector_store %arg13[%c0_184, %c0_185], %335 {strides = array<i32>} : memref<8x32xf32, #tpu.memory_space<vmem>>, vector<8x32xf32>,
    %c0_186 = arith.constant 0 : index
    %c0_187 = arith.constant 0 : index
    %339 = vector.load %arg12[%c0_186, %c0_187] : memref<8x32xf32, #tpu.memory_space<vmem>>, vector<8x32xf32>
    tpu.vector_store %arg12[%c0_186, %c0_187], %337 {strides = array<i32>} : memref<8x32xf32, #tpu.memory_space<vmem>>, vector<8x32xf32>,
    %c4_i32_188 = arith.constant 4 : i32
    %c8_i32_189 = arith.constant 8 : i32
    %340 = arith.muli %c4_i32_188, %c8_i32_189 : i32
    %341 = tpu.assume_multiple %340, 8 : i32
    %342 = arith.index_cast %341 : i32 to index
    %c0_190 = arith.constant 0 : index
    %343 = vector.load %arg11[%342, %c0_190] : memref<64x128xf32, #tpu.memory_space<vmem>>, vector<8x128xf32>
    %c0_191 = arith.constant 0 : index
    %c0_192 = arith.constant 0 : index
    %344 = vector.load %arg12[%c0_191, %c0_192] : memref<8x32xf32, #tpu.memory_space<vmem>>, vector<8x32xf32>
    %cst_193 = arith.constant dense<0.000000e+00> : vector<8x128xf32>
    %345 = tpu.matmul %344, %239, %cst_193 {dimension_numbers = #tpu.dot_dimension_numbers<[1], [0], [0], [1], [0, 0, 1, 1], [], []>} : vector<8x32xf32>, vector<32x128xf32>, vector<8x128xf32> -> vector<8x128xf32>
    %346 = arith.addf %343, %345 : vector<8x128xf32>
    %347 = arith.negf %346 : vector<8x128xf32>
    %348 = math.exp %347 : vector<8x128xf32>
    %cst_194 = arith.constant 1.000000e+00 : f32
    %349 = vector.broadcast %cst_194 : f32 to vector<8x128xf32>
    %350 = arith.addf %349, %348 : vector<8x128xf32>
    %351 = arith.divf %349, %350 : vector<8x128xf32>
    %352 = vector.extract_strided_slice %351 {offsets = [0, 0], sizes = [8, 32], strides = [1, 1]} : vector<8x128xf32> to vector<8x32xf32>
    %353 = vector.extract_strided_slice %351 {offsets = [0, 32], sizes = [8, 32], strides = [1, 1]} : vector<8x128xf32> to vector<8x32xf32>
    %354 = vector.extract_strided_slice %351 {offsets = [0, 96], sizes = [8, 32], strides = [1, 1]} : vector<8x128xf32> to vector<8x32xf32>
    %355 = vector.extract_strided_slice %346 {offsets = [0, 64], sizes = [8, 32], strides = [1, 1]} : vector<8x128xf32> to vector<8x32xf32>
    %356 = math.tanh %355 : vector<8x32xf32>
    %c0_195 = arith.constant 0 : index
    %c0_196 = arith.constant 0 : index
    %357 = vector.load %arg13[%c0_195, %c0_196] : memref<8x32xf32, #tpu.memory_space<vmem>>, vector<8x32xf32>
    %358 = arith.mulf %353, %357 : vector<8x32xf32>
    %359 = arith.mulf %352, %356 : vector<8x32xf32>
    %360 = arith.addf %358, %359 : vector<8x32xf32>
    %361 = math.tanh %360 : vector<8x32xf32>
    %362 = arith.mulf %354, %361 : vector<8x32xf32>
    %c0_197 = arith.constant 0 : index
    %c0_198 = arith.constant 0 : index
    %363 = vector.load %arg13[%c0_197, %c0_198] : memref<8x32xf32, #tpu.memory_space<vmem>>, vector<8x32xf32>
    tpu.vector_store %arg13[%c0_197, %c0_198], %360 {strides = array<i32>} : memref<8x32xf32, #tpu.memory_space<vmem>>, vector<8x32xf32>,
    %c0_199 = arith.constant 0 : index
    %c0_200 = arith.constant 0 : index
    %364 = vector.load %arg12[%c0_199, %c0_200] : memref<8x32xf32, #tpu.memory_space<vmem>>, vector<8x32xf32>
    tpu.vector_store %arg12[%c0_199, %c0_200], %362 {strides = array<i32>} : memref<8x32xf32, #tpu.memory_space<vmem>>, vector<8x32xf32>,
    %c5_i32_201 = arith.constant 5 : i32
    %c8_i32_202 = arith.constant 8 : i32
    %365 = arith.muli %c5_i32_201, %c8_i32_202 : i32
    %366 = tpu.assume_multiple %365, 8 : i32
    %367 = arith.index_cast %366 : i32 to index
    %c0_203 = arith.constant 0 : index
    %368 = vector.load %arg11[%367, %c0_203] : memref<64x128xf32, #tpu.memory_space<vmem>>, vector<8x128xf32>
    %c0_204 = arith.constant 0 : index
    %c0_205 = arith.constant 0 : index
    %369 = vector.load %arg12[%c0_204, %c0_205] : memref<8x32xf32, #tpu.memory_space<vmem>>, vector<8x32xf32>
    %cst_206 = arith.constant dense<0.000000e+00> : vector<8x128xf32>
    %370 = tpu.matmul %369, %239, %cst_206 {dimension_numbers = #tpu.dot_dimension_numbers<[1], [0], [0], [1], [0, 0, 1, 1], [], []>} : vector<8x32xf32>, vector<32x128xf32>, vector<8x128xf32> -> vector<8x128xf32>
    %371 = arith.addf %368, %370 : vector<8x128xf32>
    %372 = arith.negf %371 : vector<8x128xf32>
    %373 = math.exp %372 : vector<8x128xf32>
    %cst_207 = arith.constant 1.000000e+00 : f32
    %374 = vector.broadcast %cst_207 : f32 to vector<8x128xf32>
    %375 = arith.addf %374, %373 : vector<8x128xf32>
    %376 = arith.divf %374, %375 : vector<8x128xf32>
    %377 = vector.extract_strided_slice %376 {offsets = [0, 0], sizes = [8, 32], strides = [1, 1]} : vector<8x128xf32> to vector<8x32xf32>
    %378 = vector.extract_strided_slice %376 {offsets = [0, 32], sizes = [8, 32], strides = [1, 1]} : vector<8x128xf32> to vector<8x32xf32>
    %379 = vector.extract_strided_slice %376 {offsets = [0, 96], sizes = [8, 32], strides = [1, 1]} : vector<8x128xf32> to vector<8x32xf32>
    %380 = vector.extract_strided_slice %371 {offsets = [0, 64], sizes = [8, 32], strides = [1, 1]} : vector<8x128xf32> to vector<8x32xf32>
    %381 = math.tanh %380 : vector<8x32xf32>
    %c0_208 = arith.constant 0 : index
    %c0_209 = arith.constant 0 : index
    %382 = vector.load %arg13[%c0_208, %c0_209] : memref<8x32xf32, #tpu.memory_space<vmem>>, vector<8x32xf32>
    %383 = arith.mulf %378, %382 : vector<8x32xf32>
    %384 = arith.mulf %377, %381 : vector<8x32xf32>
    %385 = arith.addf %383, %384 : vector<8x32xf32>
    %386 = math.tanh %385 : vector<8x32xf32>
    %387 = arith.mulf %379, %386 : vector<8x32xf32>
    %c0_210 = arith.constant 0 : index
    %c0_211 = arith.constant 0 : index
    %388 = vector.load %arg13[%c0_210, %c0_211] : memref<8x32xf32, #tpu.memory_space<vmem>>, vector<8x32xf32>
    tpu.vector_store %arg13[%c0_210, %c0_211], %385 {strides = array<i32>} : memref<8x32xf32, #tpu.memory_space<vmem>>, vector<8x32xf32>,
    %c0_212 = arith.constant 0 : index
    %c0_213 = arith.constant 0 : index
    %389 = vector.load %arg12[%c0_212, %c0_213] : memref<8x32xf32, #tpu.memory_space<vmem>>, vector<8x32xf32>
    tpu.vector_store %arg12[%c0_212, %c0_213], %387 {strides = array<i32>} : memref<8x32xf32, #tpu.memory_space<vmem>>, vector<8x32xf32>,
    %c6_i32_214 = arith.constant 6 : i32
    %c8_i32_215 = arith.constant 8 : i32
    %390 = arith.muli %c6_i32_214, %c8_i32_215 : i32
    %391 = tpu.assume_multiple %390, 8 : i32
    %392 = arith.index_cast %391 : i32 to index
    %c0_216 = arith.constant 0 : index
    %393 = vector.load %arg11[%392, %c0_216] : memref<64x128xf32, #tpu.memory_space<vmem>>, vector<8x128xf32>
    %c0_217 = arith.constant 0 : index
    %c0_218 = arith.constant 0 : index
    %394 = vector.load %arg12[%c0_217, %c0_218] : memref<8x32xf32, #tpu.memory_space<vmem>>, vector<8x32xf32>
    %cst_219 = arith.constant dense<0.000000e+00> : vector<8x128xf32>
    %395 = tpu.matmul %394, %239, %cst_219 {dimension_numbers = #tpu.dot_dimension_numbers<[1], [0], [0], [1], [0, 0, 1, 1], [], []>} : vector<8x32xf32>, vector<32x128xf32>, vector<8x128xf32> -> vector<8x128xf32>
    %396 = arith.addf %393, %395 : vector<8x128xf32>
    %397 = arith.negf %396 : vector<8x128xf32>
    %398 = math.exp %397 : vector<8x128xf32>
    %cst_220 = arith.constant 1.000000e+00 : f32
    %399 = vector.broadcast %cst_220 : f32 to vector<8x128xf32>
    %400 = arith.addf %399, %398 : vector<8x128xf32>
    %401 = arith.divf %399, %400 : vector<8x128xf32>
    %402 = vector.extract_strided_slice %401 {offsets = [0, 0], sizes = [8, 32], strides = [1, 1]} : vector<8x128xf32> to vector<8x32xf32>
    %403 = vector.extract_strided_slice %401 {offsets = [0, 32], sizes = [8, 32], strides = [1, 1]} : vector<8x128xf32> to vector<8x32xf32>
    %404 = vector.extract_strided_slice %401 {offsets = [0, 96], sizes = [8, 32], strides = [1, 1]} : vector<8x128xf32> to vector<8x32xf32>
    %405 = vector.extract_strided_slice %396 {offsets = [0, 64], sizes = [8, 32], strides = [1, 1]} : vector<8x128xf32> to vector<8x32xf32>
    %406 = math.tanh %405 : vector<8x32xf32>
    %c0_221 = arith.constant 0 : index
    %c0_222 = arith.constant 0 : index
    %407 = vector.load %arg13[%c0_221, %c0_222] : memref<8x32xf32, #tpu.memory_space<vmem>>, vector<8x32xf32>
    %408 = arith.mulf %403, %407 : vector<8x32xf32>
    %409 = arith.mulf %402, %406 : vector<8x32xf32>
    %410 = arith.addf %408, %409 : vector<8x32xf32>
    %411 = math.tanh %410 : vector<8x32xf32>
    %412 = arith.mulf %404, %411 : vector<8x32xf32>
    %c0_223 = arith.constant 0 : index
    %c0_224 = arith.constant 0 : index
    %413 = vector.load %arg13[%c0_223, %c0_224] : memref<8x32xf32, #tpu.memory_space<vmem>>, vector<8x32xf32>
    tpu.vector_store %arg13[%c0_223, %c0_224], %410 {strides = array<i32>} : memref<8x32xf32, #tpu.memory_space<vmem>>, vector<8x32xf32>,
    %c0_225 = arith.constant 0 : index
    %c0_226 = arith.constant 0 : index
    %414 = vector.load %arg12[%c0_225, %c0_226] : memref<8x32xf32, #tpu.memory_space<vmem>>, vector<8x32xf32>
    tpu.vector_store %arg12[%c0_225, %c0_226], %412 {strides = array<i32>} : memref<8x32xf32, #tpu.memory_space<vmem>>, vector<8x32xf32>,
    %c7_i32_227 = arith.constant 7 : i32
    %c8_i32_228 = arith.constant 8 : i32
    %415 = arith.muli %c7_i32_227, %c8_i32_228 : i32
    %416 = tpu.assume_multiple %415, 8 : i32
    %417 = arith.index_cast %416 : i32 to index
    %c0_229 = arith.constant 0 : index
    %418 = vector.load %arg11[%417, %c0_229] : memref<64x128xf32, #tpu.memory_space<vmem>>, vector<8x128xf32>
    %c0_230 = arith.constant 0 : index
    %c0_231 = arith.constant 0 : index
    %419 = vector.load %arg12[%c0_230, %c0_231] : memref<8x32xf32, #tpu.memory_space<vmem>>, vector<8x32xf32>
    %cst_232 = arith.constant dense<0.000000e+00> : vector<8x128xf32>
    %420 = tpu.matmul %419, %239, %cst_232 {dimension_numbers = #tpu.dot_dimension_numbers<[1], [0], [0], [1], [0, 0, 1, 1], [], []>} : vector<8x32xf32>, vector<32x128xf32>, vector<8x128xf32> -> vector<8x128xf32>
    %421 = arith.addf %418, %420 : vector<8x128xf32>
    %422 = arith.negf %421 : vector<8x128xf32>
    %423 = math.exp %422 : vector<8x128xf32>
    %cst_233 = arith.constant 1.000000e+00 : f32
    %424 = vector.broadcast %cst_233 : f32 to vector<8x128xf32>
    %425 = arith.addf %424, %423 : vector<8x128xf32>
    %426 = arith.divf %424, %425 : vector<8x128xf32>
    %427 = vector.extract_strided_slice %426 {offsets = [0, 0], sizes = [8, 32], strides = [1, 1]} : vector<8x128xf32> to vector<8x32xf32>
    %428 = vector.extract_strided_slice %426 {offsets = [0, 32], sizes = [8, 32], strides = [1, 1]} : vector<8x128xf32> to vector<8x32xf32>
    %429 = vector.extract_strided_slice %426 {offsets = [0, 96], sizes = [8, 32], strides = [1, 1]} : vector<8x128xf32> to vector<8x32xf32>
    %430 = vector.extract_strided_slice %421 {offsets = [0, 64], sizes = [8, 32], strides = [1, 1]} : vector<8x128xf32> to vector<8x32xf32>
    %431 = math.tanh %430 : vector<8x32xf32>
    %c0_234 = arith.constant 0 : index
    %c0_235 = arith.constant 0 : index
    %432 = vector.load %arg13[%c0_234, %c0_235] : memref<8x32xf32, #tpu.memory_space<vmem>>, vector<8x32xf32>
    %433 = arith.mulf %428, %432 : vector<8x32xf32>
    %434 = arith.mulf %427, %431 : vector<8x32xf32>
    %435 = arith.addf %433, %434 : vector<8x32xf32>
    %436 = math.tanh %435 : vector<8x32xf32>
    %437 = arith.mulf %429, %436 : vector<8x32xf32>
    %c0_236 = arith.constant 0 : index
    %c0_237 = arith.constant 0 : index
    %438 = vector.load %arg13[%c0_236, %c0_237] : memref<8x32xf32, #tpu.memory_space<vmem>>, vector<8x32xf32>
    tpu.vector_store %arg13[%c0_236, %c0_237], %435 {strides = array<i32>} : memref<8x32xf32, #tpu.memory_space<vmem>>, vector<8x32xf32>,
    %c0_238 = arith.constant 0 : index
    %c0_239 = arith.constant 0 : index
    %439 = vector.load %arg12[%c0_238, %c0_239] : memref<8x32xf32, #tpu.memory_space<vmem>>, vector<8x32xf32>
    tpu.vector_store %arg12[%c0_238, %c0_239], %437 {strides = array<i32>} : memref<8x32xf32, #tpu.memory_space<vmem>>, vector<8x32xf32>,
    %c8_i32_240 = arith.constant 8 : i32
    %c0_241 = arith.constant 0 : index
    %c0_242 = arith.constant 0 : index
    %440 = vector.load %arg12[%c0_241, %c0_242] : memref<8x32xf32, #tpu.memory_space<vmem>>, vector<8x32xf32>
    %c0_243 = arith.constant 0 : index
    %c0_244 = arith.constant 0 : index
    %441 = vector.load %arg7[%c0_243, %c0_244] : memref<32x4xf32, #tpu.memory_space<vmem>>, vector<32x4xf32>
    %cst_245 = arith.constant dense<0.000000e+00> : vector<8x4xf32>
    %442 = tpu.matmul %440, %441, %cst_245 {dimension_numbers = #tpu.dot_dimension_numbers<[1], [0], [0], [1], [0, 0, 1, 1], [], []>} : vector<8x32xf32>, vector<32x4xf32>, vector<8x4xf32> -> vector<8x4xf32>
    %c0_246 = arith.constant 0 : index
    %c0_247 = arith.constant 0 : index
    %443 = vector.load %arg8[%c0_246, %c0_247] : memref<1x4xf32, #tpu.memory_space<vmem>>, vector<1x4xf32>
    %444 = vector.broadcast %443 : vector<1x4xf32> to vector<8x4xf32>
    %445 = arith.addf %442, %444 : vector<8x4xf32>
    %c0_248 = arith.constant 0 : index
    %c0_249 = arith.constant 0 : index
    %446 = vector.load %arg9[%c0_248, %c0_249] : memref<8x4xf32, #tpu.memory_space<vmem>>, vector<8x4xf32>
    tpu.vector_store %arg9[%c0_248, %c0_249], %445 {strides = array<i32>} : memref<8x4xf32, #tpu.memory_space<vmem>>, vector<8x4xf32>,
    return
  }
}

</mosaic_0001>

<llo_original>
// kernel: lstm_model_forward.1
$region0: #{lstm_model_forward.1}
  #allocation0 [shape = 'u32[]', space=smem, size = 0x4, offset = 0x4, fixed_abs, tag = 'smem constant byte address 0x4 - core index']
  #allocation1 [shape = 'u32[144,128]{1,0:T(1,128)}', space=vmem, size = 0x12000, scoped, tag = 'internal scratch']
  #allocation2 [shape = 'f32[64,32]{1,0:T(8,128)}', space=vmem, size = 0x8000, scoped, tag = 'scratch operand']
  #allocation3 [shape = 'f32[64,128]{1,0:T(8,128)}', space=vmem, size = 0x8000, scoped, tag = 'scratch operand']
  #allocation4 [shape = 'f32[8,32]{1,0:T(8,128)}', space=vmem, size = 0x1000, scoped, tag = 'scratch operand']
  #allocation5 [shape = 'f32[8,32]{1,0:T(8,128)}', space=vmem, size = 0x1000, scoped, tag = 'scratch operand']
  %s0 = inlined_call_operand.vmem [shape: f32[64,8], index: 0, kind: input, shape index: {}]
  %s1 = inlined_call_operand.vmem [shape: f32[8,128], index: 1, kind: input, shape index: {}]
  %s2 = inlined_call_operand.vmem [shape: f32[32,128], index: 2, kind: input, shape index: {}]
  %s3 = inlined_call_operand.vmem [shape: f32[1,128], index: 3, kind: input, shape index: {}]
  %s4 = inlined_call_operand.vmem [shape: f32[32,128], index: 4, kind: input, shape index: {}]
  %s5 = inlined_call_operand.vmem [shape: f32[32,128], index: 5, kind: input, shape index: {}]
  %s6 = inlined_call_operand.vmem [shape: f32[1,128], index: 6, kind: input, shape index: {}]
  %s7 = inlined_call_operand.vmem [shape: f32[32,4], index: 7, kind: input, shape index: {}]
  %s8 = inlined_call_operand.vmem [shape: f32[1,4], index: 8, kind: input, shape index: {}]
  %s9 = inlined_call_operand.vmem [shape: f32[8,4], index: 9, kind: output, shape index: {}]
  %s10 = sld [smem:[#allocation0]]
  $region46: #{lstm_model_forward.1} parent=0
    _
  %s12 = ssub.s32 1, %s10
  %s13 = scalar_select 0, %s12, %s10
  // Predicated region
  $region2: #{lstm_model_forward.1} parent=0 // pred_check
    _
  $region3: #{lstm_model_forward.1} parent=0 // pred_check_branch
    %15 = sbr.rel (0) target = $region5
  $region4: #{lstm_model_forward.1} parent=0 // pred_region
    _
  $region5: #{lstm_model_forward.1} parent=0 // pred_fallthru
    _
  // Predicated region
  $region6: #{lstm_model_forward.1} parent=0 // pred_check
    _
  $region7: #{lstm_model_forward.1} parent=0 // pred_check_branch
    %17 = sbr.rel (0) target = $region9
  $region8: #{lstm_model_forward.1} parent=0 // pred_region
    _
  $region9: #{lstm_model_forward.1} parent=0 // pred_fallthru
    _
  // Predicated region
  $region10: #{lstm_model_forward.1} parent=0 // pred_check
    _
  $region11: #{lstm_model_forward.1} parent=0 // pred_check_branch
    %19 = sbr.rel (0) target = $region13
  $region12: #{lstm_model_forward.1} parent=0 // pred_region
    _
  $region13: #{lstm_model_forward.1} parent=0 // pred_fallthru
    _
  // Predicated region
  $region14: #{lstm_model_forward.1} parent=0 // pred_check
    _
  $region15: #{lstm_model_forward.1} parent=0 // pred_check_branch
    %21 = sbr.rel (0) target = $region17
  $region16: #{lstm_model_forward.1} parent=0 // pred_region
    _
  $region17: #{lstm_model_forward.1} parent=0 // pred_fallthru
    _
  // Predicated region
  $region18: #{lstm_model_forward.1} parent=0 // pred_check
    _
  $region19: #{lstm_model_forward.1} parent=0 // pred_check_branch
    %23 = sbr.rel (0) target = $region21
  $region20: #{lstm_model_forward.1} parent=0 // pred_region
    _
  $region21: #{lstm_model_forward.1} parent=0 // pred_fallthru
    _
  // Predicated region
  $region22: #{lstm_model_forward.1} parent=0 // pred_check
    _
  $region23: #{lstm_model_forward.1} parent=0 // pred_check_branch
    %25 = sbr.rel (0) target = $region25
  $region24: #{lstm_model_forward.1} parent=0 // pred_region
    _
  $region25: #{lstm_model_forward.1} parent=0 // pred_fallthru
    _
  // Predicated region
  $region26: #{lstm_model_forward.1} parent=0 // pred_check
    _
  $region27: #{lstm_model_forward.1} parent=0 // pred_check_branch
    %27 = sbr.rel (0) target = $region29
  $region28: #{lstm_model_forward.1} parent=0 // pred_region
    _
  $region29: #{lstm_model_forward.1} parent=0 // pred_fallthru
    _
  // Predicated region
  $region30: #{lstm_model_forward.1} parent=0 // pred_check
    _
  $region31: #{lstm_model_forward.1} parent=0 // pred_check_branch
    %29 = sbr.rel (0) target = $region33
  $region32: #{lstm_model_forward.1} parent=0 // pred_region
    _
  $region33: #{lstm_model_forward.1} parent=0 // pred_fallthru
    _
  // Predicated region
  $region34: #{lstm_model_forward.1} parent=0 // pred_check
    _
  $region35: #{lstm_model_forward.1} parent=0 // pred_check_branch
    %31 = sbr.rel (0) target = $region37
  $region36: #{lstm_model_forward.1} parent=0 // pred_region
    _
  $region37: #{lstm_model_forward.1} parent=0 // pred_fallthru
    _
  %v32 = vld [vmem:[%s0] sm:$0xff]
  %v33 = vld [vmem:[%s0 + $0x8] sm:$0xff]
  %v34 = vld [vmem:[%s0 + $0x10] sm:$0xff]
  %v35 = vld [vmem:[%s0 + $0x18] sm:$0xff]
  %v36 = vld [vmem:[%s0 + $0x20] sm:$0xff]
  %v37 = vld [vmem:[%s0 + $0x28] sm:$0xff]
  %v38 = vld [vmem:[%s0 + $0x30] sm:$0xff]
  %v39 = vld [vmem:[%s0 + $0x38] sm:$0xff]
  %v40 = vld [vmem:[%s1] sm:$0xff]
  %v41 = vld [vmem:[%s3] sm:$0x1]
  %v43 = vlaneseq
  %v44 = vshrl.u32 %v43, 7
  %v45 = vsub.s32 0, %v44
  %v46 = vrot.slane %v41, %v45
  %vm48 = vcmask 64512
  %v50 = vsel %vm48, %v32, 0
  %v53 = vsel %vm48, %v33, 0
  %v56 = vsel %vm48, %v34, 0
  %v59 = vsel %vm48, %v35, 0
  %v62 = vsel %vm48, %v36, 0
  %v65 = vsel %vm48, %v37, 0
  %v68 = vsel %vm48, %v38, 0
  %v71 = vsel %vm48, %v39, 0
  %73 = vmatprep.subr.mxu0 0.0
  %74 = vmatpush1.msra.mxu0 %v40
  %75 = vmatprep.subr.mxu0 0.0
  %76 = vmatpush1.msra.mxu0 0.0
  %77 = vmatprep.subr.mxu0 0.0
  %78 = vmatpush1.msra.mxu0 0.0
  %79 = vmatprep.subr.mxu0 0.0
  %80 = vmatpush1.msra.mxu0 0.0
  %81 = vmatprep.subr.mxu0 0.0
  %82 = vmatpush1.msra.mxu0 0.0
  %83 = vmatprep.subr.mxu0 0.0
  %84 = vmatpush1.msra.mxu0 0.0
  %85 = vmatprep.subr.mxu0 0.0
  %86 = vmatpush1.msra.mxu0 0.0
  %87 = vmatprep.subr.mxu0 0.0
  %88 = vmatpush1.msra.mxu0 0.0
  %89 = vmatprep.subr.mxu0 0.0
  %90 = vmatpush1.msra.mxu0 0.0
  %91 = vmatprep.subr.mxu0 0.0
  %92 = vmatpush1.msra.mxu0 0.0
  %93 = vmatprep.subr.mxu0 0.0
  %94 = vmatpush1.msra.mxu0 0.0
  %95 = vmatprep.subr.mxu0 0.0
  %96 = vmatpush1.msra.mxu0 0.0
  %97 = vmatprep.subr.mxu0 0.0
  %98 = vmatpush1.msra.mxu0 0.0
  %99 = vmatprep.subr.mxu0 0.0
  %100 = vmatpush1.msra.mxu0 0.0
  %101 = vmatprep.subr.mxu0 0.0
  %102 = vmatpush1.msra.mxu0 0.0
  %103 = vmatprep.subr.mxu0 0.0
  %104 = vmatpush1.msra.mxu0 0.0
  %105 = vmatprep.subr.mxu0 0.0
  %106 = vmatpush1.msra.mxu0 0.0
  %107 = vmatprep.subr.mxu0 0.0
  %108 = vmatpush1.msra.mxu0 0.0
  %109 = vmatprep.subr.mxu0 0.0
  %110 = vmatpush1.msra.mxu0 0.0
  %111 = vmatprep.subr.mxu0 0.0
  %112 = vmatpush1.msra.mxu0 0.0
  %113 = vmatprep.subr.mxu0 0.0
  %114 = vmatpush1.msra.mxu0 0.0
  %115 = vmatprep.subr.mxu0 0.0
  %116 = vmatpush1.msra.mxu0 0.0
  %117 = vmatprep.subr.mxu0 0.0
  %118 = vmatpush1.msra.mxu0 0.0
  %119 = vmatprep.subr.mxu0 0.0
  %120 = vmatpush1.msra.mxu0 0.0
  %121 = vmatprep.subr.mxu0 0.0
  %122 = vmatpush1.msra.mxu0 0.0
  %123 = vmatprep.subr.mxu0 0.0
  %124 = vmatpush1.msra.mxu0 0.0
  %125 = vmatprep.subr.mxu0 0.0
  %126 = vmatpush1.msra.mxu0 0.0
  %127 = vmatprep.subr.mxu0 0.0
  %128 = vmatpush1.msra.mxu0 0.0
  %129 = vmatprep.subr.mxu0 0.0
  %130 = vmatpush1.msra.mxu0 0.0
  %131 = vmatprep.subr.mxu0 0.0
  %132 = vmatpush1.msra.mxu0 0.0
  %133 = vmatprep.subr.mxu0 0.0
  %134 = vmatpush1.msra.mxu0 0.0
  %135 = vmatprep.subr.mxu0 0.0
  %136 = vmatpush1.msra.mxu0 0.0
  %137 = vmatprep.mubr.f32.mxu0 0.0
  %138 = vmatmul.mubr.f32.gmra.mrb[0].mxu0 %v50
  %v139 = vpop.f32.mrb[0].mxu0
  %v140 = vadd.f32 %v46, %v139
  %v141 = vpop.f32.mrb[0].mxu0
  %142 = vmatprep.mubr.f32.mxu0 0.0
  %143 = vmatmul.mubr.f32.gmra.mrb[0].mxu0 %v53
  %v144 = vpop.f32.mrb[0].mxu0
  %v145 = vadd.f32 %v46, %v144
  %v146 = vpop.f32.mrb[0].mxu0
  %147 = vmatprep.mubr.f32.mxu0 0.0
  %148 = vmatmul.mubr.f32.gmra.mrb[0].mxu0 %v56
  %v149 = vpop.f32.mrb[0].mxu0
  %v150 = vadd.f32 %v46, %v149
  %v151 = vpop.f32.mrb[0].mxu0
  %152 = vmatprep.mubr.f32.mxu0 0.0
  %153 = vmatmul.mubr.f32.gmra.mrb[0].mxu0 %v59
  %v154 = vpop.f32.mrb[0].mxu0
  %v155 = vadd.f32 %v46, %v154
  %v156 = vpop.f32.mrb[0].mxu0
  %157 = vmatprep.mubr.f32.mxu0 0.0
  %158 = vmatmul.mubr.f32.gmra.mrb[0].mxu0 %v62
  %v159 = vpop.f32.mrb[0].mxu0
  %v160 = vadd.f32 %v46, %v159
  %v161 = vpop.f32.mrb[0].mxu0
  %162 = vmatprep.mubr.f32.mxu0 0.0
  %163 = vmatmul.mubr.f32.gmra.mrb[0].mxu0 %v65
  %v164 = vpop.f32.mrb[0].mxu0
  %v165 = vadd.f32 %v46, %v164
  %v166 = vpop.f32.mrb[0].mxu0
  %167 = vmatprep.mubr.f32.mxu0 0.0
  %168 = vmatmul.mubr.f32.gmra.mrb[0].mxu0 %v68
  %v169 = vpop.f32.mrb[0].mxu0
  %v170 = vadd.f32 %v46, %v169
  %v171 = vpop.f32.mrb[0].mxu0
  %172 = vmatprep.mubr.f32.mxu0 0.0
  %173 = vmatmul.mubr.f32.gmra.mrb[0].mxu0 %v71
  %v174 = vpop.f32.mrb[0].mxu0
  %v175 = vadd.f32 %v46, %v174
  %v176 = vpop.f32.mrb[0].mxu0
  %177 = vdwg.mxu0
  %178 = vst [vmem:[#allocation3] sm:$0xff] %v140
  %179 = vst [vmem:[#allocation3 + $0x8] sm:$0xff] %v145
  %180 = vst [vmem:[#allocation3 + $0x10] sm:$0xff] %v150
  %181 = vst [vmem:[#allocation3 + $0x18] sm:$0xff] %v155
  %182 = vst [vmem:[#allocation3 + $0x20] sm:$0xff] %v160
  %183 = vst [vmem:[#allocation3 + $0x28] sm:$0xff] %v165
  %184 = vst [vmem:[#allocation3 + $0x30] sm:$0xff] %v170
  %185 = vst [vmem:[#allocation3 + $0x38] sm:$0xff] %v175
  %vm186 = vcmask 261120
  %187 = vst.msk [vmem:[#allocation4] sm:$0xff] %vm186, 0.0
  %188 = vst.msk [vmem:[#allocation5] sm:$0xff] %vm186, 0.0
  %v189 = vld [vmem:[%s2] sm:$0xff]
  %v190 = vld [vmem:[%s2 + $0x8] sm:$0xff]
  %v191 = vld [vmem:[%s2 + $0x10] sm:$0xff]
  %v192 = vld [vmem:[%s2 + $0x18] sm:$0xff]
  %v193 = vld [vmem:[#allocation3] sm:$0xff]
  %v194 = vld [vmem:[#allocation4] sm:$0xff]
  %v196 = vsel %vm186, %v194, 0
  %198 = vmatprep.subr.mxu0 0.0
  %199 = vmatpush1.msra.mxu0 %v189
  %200 = vmatprep.subr.mxu0 0.0
  %201 = vmatpush1.msra.mxu0 %v190
  %202 = vmatprep.subr.mxu0 0.0
  %203 = vmatpush1.msra.mxu0 %v191
  %204 = vmatprep.subr.mxu0 0.0
  %205 = vmatpush1.msra.mxu0 %v192
  %206 = vmatprep.subr.mxu0 0.0
  %207 = vmatpush1.msra.mxu0 0.0
  %208 = vmatprep.subr.mxu0 0.0
  %209 = vmatpush1.msra.mxu0 0.0
  %210 = vmatprep.subr.mxu0 0.0
  %211 = vmatpush1.msra.mxu0 0.0
  %212 = vmatprep.subr.mxu0 0.0
  %213 = vmatpush1.msra.mxu0 0.0
  %214 = vmatprep.subr.mxu0 0.0
  %215 = vmatpush1.msra.mxu0 0.0
  %216 = vmatprep.subr.mxu0 0.0
  %217 = vmatpush1.msra.mxu0 0.0
  %218 = vmatprep.subr.mxu0 0.0
  %219 = vmatpush1.msra.mxu0 0.0
  %220 = vmatprep.subr.mxu0 0.0
  %221 = vmatpush1.msra.mxu0 0.0
  %222 = vmatprep.subr.mxu0 0.0
  %223 = vmatpush1.msra.mxu0 0.0
  %224 = vmatprep.subr.mxu0 0.0
  %225 = vmatpush1.msra.mxu0 0.0
  %226 = vmatprep.subr.mxu0 0.0
  %227 = vmatpush1.msra.mxu0 0.0
  %228 = vmatprep.subr.mxu0 0.0
  %229 = vmatpush1.msra.mxu0 0.0
  %230 = vmatprep.subr.mxu0 0.0
  %231 = vmatpush1.msra.mxu0 0.0
  %232 = vmatprep.subr.mxu0 0.0
  %233 = vmatpush1.msra.mxu0 0.0
  %234 = vmatprep.subr.mxu0 0.0
  %235 = vmatpush1.msra.mxu0 0.0
  %236 = vmatprep.subr.mxu0 0.0
  %237 = vmatpush1.msra.mxu0 0.0
  %238 = vmatprep.subr.mxu0 0.0
  %239 = vmatpush1.msra.mxu0 0.0
  %240 = vmatprep.subr.mxu0 0.0
  %241 = vmatpush1.msra.mxu0 0.0
  %242 = vmatprep.subr.mxu0 0.0
  %243 = vmatpush1.msra.mxu0 0.0
  %244 = vmatprep.subr.mxu0 0.0
  %245 = vmatpush1.msra.mxu0 0.0
  %246 = vmatprep.subr.mxu0 0.0
  %247 = vmatpush1.msra.mxu0 0.0
  %248 = vmatprep.subr.mxu0 0.0
  %249 = vmatpush1.msra.mxu0 0.0
  %250 = vmatprep.subr.mxu0 0.0
  %251 = vmatpush1.msra.mxu0 0.0
  %252 = vmatprep.subr.mxu0 0.0
  %253 = vmatpush1.msra.mxu0 0.0
  %254 = vmatprep.subr.mxu0 0.0
  %255 = vmatpush1.msra.mxu0 0.0
  %256 = vmatprep.subr.mxu0 0.0
  %257 = vmatpush1.msra.mxu0 0.0
  %258 = vmatprep.subr.mxu0 0.0
  %259 = vmatpush1.msra.mxu0 0.0
  %260 = vmatprep.subr.mxu0 0.0
  %261 = vmatpush1.msra.mxu0 0.0
  %262 = vmatprep.mubr.f32.mxu0 0.0
  %263 = vmatmul.mubr.f32.gmra.mrb[0].mxu0 %v196
  %v264 = vpop.f32.mrb[0].mxu0
  %v265 = vadd.f32 0.0, %v264
  %v266 = vpop.f32.mrb[0].mxu0
  %267 = vdwg.mxu0
  %v268 = vadd.f32 %v193, %v265
  %v269 = vxor.u32 %v268, 2147483648
  %v270 = vmul.f32 %v269, 1.442695
  %v271 = vpow.pop %v270
  %v272 = vadd.f32 %v271, 1.0
  %v273 = vrcp.pop %v272
  %v274 = vmul.f32 1.0, %v273
  %v275 = vtanh.pop %v268
  %v276 = vld [vmem:[#allocation5] sm:$0xff]
  %278 = vrot.lane.b32.xlu0 %v276, 32
  %v279 = vpop.permute.xlu0 %278
  %v281 = vmul.f32 %v274, %v279
  %283 = vrot.lane.b32.xlu0 %v275, 64
  %v284 = vpop.permute.xlu0 %283
  %v286 = vmul.f32 %v274, %v284
  %288 = vrot.lane.b32.xlu0 %v286, 32
  %v289 = vpop.permute.xlu0 %288
  %v291 = vadd.f32 %v281, %v289
  %v292 = vtanh.pop %v291
  %294 = vrot.lane.b32.xlu0 %v292, 64
  %v295 = vpop.permute.xlu0 %294
  %v297 = vmul.f32 %v274, %v295
  %299 = vrot.lane.b32.xlu0 %v291, 96
  %v300 = vpop.permute.xlu0 %299
  %302 = vst.msk [vmem:[#allocation5] sm:$0xff] %vm186, %v300
  %304 = vrot.lane.b32.xlu0 %v297, 32
  %v305 = vpop.permute.xlu0 %304
  %307 = vst.msk [vmem:[#allocation4] sm:$0xff] %vm186, %v305
  %308 = vst.msk [vmem:[#allocation2] sm:$0xff] %vm186, %v305
  %s309 = scalar_lea.vmem [#allocation3], 8
  %v310 = vld [vmem:[%s309] sm:$0xff]
  %v311 = vld [vmem:[#allocation4] sm:$0xff]
  %v313 = vsel %vm186, %v311, 0
  %315 = vmatprep.subr.mxu0 0.0
  %316 = vmatpush1.msra.mxu0 %v189
  %317 = vmatprep.subr.mxu0 0.0
  %318 = vmatpush1.msra.mxu0 %v190
  %319 = vmatprep.subr.mxu0 0.0
  %320 = vmatpush1.msra.mxu0 %v191
  %321 = vmatprep.subr.mxu0 0.0
  %322 = vmatpush1.msra.mxu0 %v192
  %323 = vmatprep.subr.mxu0 0.0
  %324 = vmatpush1.msra.mxu0 0.0
  %325 = vmatprep.subr.mxu0 0.0
  %326 = vmatpush1.msra.mxu0 0.0
  %327 = vmatprep.subr.mxu0 0.0
  %328 = vmatpush1.msra.mxu0 0.0
  %329 = vmatprep.subr.mxu0 0.0
  %330 = vmatpush1.msra.mxu0 0.0
  %331 = vmatprep.subr.mxu0 0.0
  %332 = vmatpush1.msra.mxu0 0.0
  %333 = vmatprep.subr.mxu0 0.0
  %334 = vmatpush1.msra.mxu0 0.0
  %335 = vmatprep.subr.mxu0 0.0
  %336 = vmatpush1.msra.mxu0 0.0
  %337 = vmatprep.subr.mxu0 0.0
  %338 = vmatpush1.msra.mxu0 0.0
  %339 = vmatprep.subr.mxu0 0.0
  %340 = vmatpush1.msra.mxu0 0.0
  %341 = vmatprep.subr.mxu0 0.0
  %342 = vmatpush1.msra.mxu0 0.0
  %343 = vmatprep.subr.mxu0 0.0
  %344 = vmatpush1.msra.mxu0 0.0
  %345 = vmatprep.subr.mxu0 0.0
  %346 = vmatpush1.msra.mxu0 0.0
  %347 = vmatprep.subr.mxu0 0.0
  %348 = vmatpush1.msra.mxu0 0.0
  %349 = vmatprep.subr.mxu0 0.0
  %350 = vmatpush1.msra.mxu0 0.0
  %351 = vmatprep.subr.mxu0 0.0
  %352 = vmatpush1.msra.mxu0 0.0
  %353 = vmatprep.subr.mxu0 0.0
  %354 = vmatpush1.msra.mxu0 0.0
  %355 = vmatprep.subr.mxu0 0.0
  %356 = vmatpush1.msra.mxu0 0.0
  %357 = vmatprep.subr.mxu0 0.0
  %358 = vmatpush1.msra.mxu0 0.0
  %359 = vmatprep.subr.mxu0 0.0
  %360 = vmatpush1.msra.mxu0 0.0
  %361 = vmatprep.subr.mxu0 0.0
  %362 = vmatpush1.msra.mxu0 0.0
  %363 = vmatprep.subr.mxu0 0.0
  %364 = vmatpush1.msra.mxu0 0.0
  %365 = vmatprep.subr.mxu0 0.0
  %366 = vmatpush1.msra.mxu0 0.0
  %367 = vmatprep.subr.mxu0 0.0
  %368 = vmatpush1.msra.mxu0 0.0
  %369 = vmatprep.subr.mxu0 0.0
  %370 = vmatpush1.msra.mxu0 0.0
  %371 = vmatprep.subr.mxu0 0.0
  %372 = vmatpush1.msra.mxu0 0.0
  %373 = vmatprep.subr.mxu0 0.0
  %374 = vmatpush1.msra.mxu0 0.0
  %375 = vmatprep.subr.mxu0 0.0
  %376 = vmatpush1.msra.mxu0 0.0
  %377 = vmatprep.subr.mxu0 0.0
  %378 = vmatpush1.msra.mxu0 0.0
  %379 = vmatprep.mubr.f32.mxu0 0.0
  %380 = vmatmul.mubr.f32.gmra.mrb[0].mxu0 %v313
  %v381 = vpop.f32.mrb[0].mxu0
  %v382 = vadd.f32 0.0, %v381
  %v383 = vpop.f32.mrb[0].mxu0
  %384 = vdwg.mxu0
  %v385 = vadd.f32 %v310, %v382
  %v386 = vxor.u32 %v385, 2147483648
  %v387 = vmul.f32 %v386, 1.442695
  %v388 = vpow.pop %v387
  %v389 = vadd.f32 %v388, 1.0
  %v390 = vrcp.pop %v389
  %v391 = vmul.f32 1.0, %v390
  %v392 = vtanh.pop %v385
  %v393 = vld [vmem:[#allocation5] sm:$0xff]
  %395 = vrot.lane.b32.xlu0 %v393, 32
  %v396 = vpop.permute.xlu0 %395
  %v398 = vmul.f32 %v391, %v396
  %400 = vrot.lane.b32.xlu0 %v392, 64
  %v401 = vpop.permute.xlu0 %400
  %v403 = vmul.f32 %v391, %v401
  %405 = vrot.lane.b32.xlu0 %v403, 32
  %v406 = vpop.permute.xlu0 %405
  %v408 = vadd.f32 %v398, %v406
  %v409 = vtanh.pop %v408
  %411 = vrot.lane.b32.xlu0 %v409, 64
  %v412 = vpop.permute.xlu0 %411
  %v414 = vmul.f32 %v391, %v412
  %416 = vrot.lane.b32.xlu0 %v408, 96
  %v417 = vpop.permute.xlu0 %416
  %419 = vst.msk [vmem:[#allocation5] sm:$0xff] %vm186, %v417
  %421 = vrot.lane.b32.xlu0 %v414, 32
  %v422 = vpop.permute.xlu0 %421
  %424 = vst.msk [vmem:[#allocation4] sm:$0xff] %vm186, %v422
  %s425 = scalar_lea.vmem [#allocation2], 8
  %426 = vst.msk [vmem:[%s425] sm:$0xff] %vm186, %v422
  %s427 = scalar_lea.vmem [#allocation3], 16
  %v428 = vld [vmem:[%s427] sm:$0xff]
  %v429 = vld [vmem:[#allocation4] sm:$0xff]
  %v431 = vsel %vm186, %v429, 0
  %433 = vmatprep.subr.mxu0 0.0
  %434 = vmatpush1.msra.mxu0 %v189
  %435 = vmatprep.subr.mxu0 0.0
  %436 = vmatpush1.msra.mxu0 %v190
  %437 = vmatprep.subr.mxu0 0.0
  %438 = vmatpush1.msra.mxu0 %v191
  %439 = vmatprep.subr.mxu0 0.0
  %440 = vmatpush1.msra.mxu0 %v192
  %441 = vmatprep.subr.mxu0 0.0
  %442 = vmatpush1.msra.mxu0 0.0
  %443 = vmatprep.subr.mxu0 0.0
  %444 = vmatpush1.msra.mxu0 0.0
  %445 = vmatprep.subr.mxu0 0.0
  %446 = vmatpush1.msra.mxu0 0.0
  %447 = vmatprep.subr.mxu0 0.0
  %448 = vmatpush1.msra.mxu0 0.0
  %449 = vmatprep.subr.mxu0 0.0
  %450 = vmatpush1.msra.mxu0 0.0
  %451 = vmatprep.subr.mxu0 0.0
  %452 = vmatpush1.msra.mxu0 0.0
  %453 = vmatprep.subr.mxu0 0.0
  %454 = vmatpush1.msra.mxu0 0.0
  %455 = vmatprep.subr.mxu0 0.0
  %456 = vmatpush1.msra.mxu0 0.0
  %457 = vmatprep.subr.mxu0 0.0
  %458 = vmatpush1.msra.mxu0 0.0
  %459 = vmatprep.subr.mxu0 0.0
  %460 = vmatpush1.msra.mxu0 0.0
  %461 = vmatprep.subr.mxu0 0.0
  %462 = vmatpush1.msra.mxu0 0.0
  %463 = vmatprep.subr.mxu0 0.0
  %464 = vmatpush1.msra.mxu0 0.0
  %465 = vmatprep.subr.mxu0 0.0
  %466 = vmatpush1.msra.mxu0 0.0
  %467 = vmatprep.subr.mxu0 0.0
  %468 = vmatpush1.msra.mxu0 0.0
  %469 = vmatprep.subr.mxu0 0.0
  %470 = vmatpush1.msra.mxu0 0.0
  %471 = vmatprep.subr.mxu0 0.0
  %472 = vmatpush1.msra.mxu0 0.0
  %473 = vmatprep.subr.mxu0 0.0
  %474 = vmatpush1.msra.mxu0 0.0
  %475 = vmatprep.subr.mxu0 0.0
  %476 = vmatpush1.msra.mxu0 0.0
  %477 = vmatprep.subr.mxu0 0.0
  %478 = vmatpush1.msra.mxu0 0.0
  %479 = vmatprep.subr.mxu0 0.0
  %480 = vmatpush1.msra.mxu0 0.0
  %481 = vmatprep.subr.mxu0 0.0
  %482 = vmatpush1.msra.mxu0 0.0
  %483 = vmatprep.subr.mxu0 0.0
  %484 = vmatpush1.msra.mxu0 0.0
  %485 = vmatprep.subr.mxu0 0.0
  %486 = vmatpush1.msra.mxu0 0.0
  %487 = vmatprep.subr.mxu0 0.0
  %488 = vmatpush1.msra.mxu0 0.0
  %489 = vmatprep.subr.mxu0 0.0
  %490 = vmatpush1.msra.mxu0 0.0
  %491 = vmatprep.subr.mxu0 0.0
  %492 = vmatpush1.msra.mxu0 0.0
  %493 = vmatprep.subr.mxu0 0.0
  %494 = vmatpush1.msra.mxu0 0.0
  %495 = vmatprep.subr.mxu0 0.0
  %496 = vmatpush1.msra.mxu0 0.0
  %497 = vmatprep.mubr.f32.mxu0 0.0
  %498 = vmatmul.mubr.f32.gmra.mrb[0].mxu0 %v431
  %v499 = vpop.f32.mrb[0].mxu0
  %v500 = vadd.f32 0.0, %v499
  %v501 = vpop.f32.mrb[0].mxu0
  %502 = vdwg.mxu0
  %v503 = vadd.f32 %v428, %v500
  %v504 = vxor.u32 %v503, 2147483648
  %v505 = vmul.f32 %v504, 1.442695
  %v506 = vpow.pop %v505
  %v507 = vadd.f32 %v506, 1.0
  %v508 = vrcp.pop %v507
  %v509 = vmul.f32 1.0, %v508
  %v510 = vtanh.pop %v503
  %v511 = vld [vmem:[#allocation5] sm:$0xff]
  %513 = vrot.lane.b32.xlu0 %v511, 32
  %v514 = vpop.permute.xlu0 %513
  %v516 = vmul.f32 %v509, %v514
  %518 = vrot.lane.b32.xlu0 %v510, 64
  %v519 = vpop.permute.xlu0 %518
  %v521 = vmul.f32 %v509, %v519
  %523 = vrot.lane.b32.xlu0 %v521, 32
  %v524 = vpop.permute.xlu0 %523
  %v526 = vadd.f32 %v516, %v524
  %v527 = vtanh.pop %v526
  %529 = vrot.lane.b32.xlu0 %v527, 64
  %v530 = vpop.permute.xlu0 %529
  %v532 = vmul.f32 %v509, %v530
  %534 = vrot.lane.b32.xlu0 %v526, 96
  %v535 = vpop.permute.xlu0 %534
  %537 = vst.msk [vmem:[#allocation5] sm:$0xff] %vm186, %v535
  %539 = vrot.lane.b32.xlu0 %v532, 32
  %v540 = vpop.permute.xlu0 %539
  %542 = vst.msk [vmem:[#allocation4] sm:$0xff] %vm186, %v540
  %s543 = scalar_lea.vmem [#allocation2], 16
  %544 = vst.msk [vmem:[%s543] sm:$0xff] %vm186, %v540
  %s545 = scalar_lea.vmem [#allocation3], 24
  %v546 = vld [vmem:[%s545] sm:$0xff]
  %v547 = vld [vmem:[#allocation4] sm:$0xff]
  %v549 = vsel %vm186, %v547, 0
  %551 = vmatprep.subr.mxu0 0.0
  %552 = vmatpush1.msra.mxu0 %v189
  %553 = vmatprep.subr.mxu0 0.0
  %554 = vmatpush1.msra.mxu0 %v190
  %555 = vmatprep.subr.mxu0 0.0
  %556 = vmatpush1.msra.mxu0 %v191
  %557 = vmatprep.subr.mxu0 0.0
  %558 = vmatpush1.msra.mxu0 %v192
  %559 = vmatprep.subr.mxu0 0.0
  %560 = vmatpush1.msra.mxu0 0.0
  %561 = vmatprep.subr.mxu0 0.0
  %562 = vmatpush1.msra.mxu0 0.0
  %563 = vmatprep.subr.mxu0 0.0
  %564 = vmatpush1.msra.mxu0 0.0
  %565 = vmatprep.subr.mxu0 0.0
  %566 = vmatpush1.msra.mxu0 0.0
  %567 = vmatprep.subr.mxu0 0.0
  %568 = vmatpush1.msra.mxu0 0.0
  %569 = vmatprep.subr.mxu0 0.0
  %570 = vmatpush1.msra.mxu0 0.0
  %571 = vmatprep.subr.mxu0 0.0
  %572 = vmatpush1.msra.mxu0 0.0
  %573 = vmatprep.subr.mxu0 0.0
  %574 = vmatpush1.msra.mxu0 0.0
  %575 = vmatprep.subr.mxu0 0.0
  %576 = vmatpush1.msra.mxu0 0.0
  %577 = vmatprep.subr.mxu0 0.0
  %578 = vmatpush1.msra.mxu0 0.0
  %579 = vmatprep.subr.mxu0 0.0
  %580 = vmatpush1.msra.mxu0 0.0
  %581 = vmatprep.subr.mxu0 0.0
  %582 = vmatpush1.msra.mxu0 0.0
  %583 = vmatprep.subr.mxu0 0.0
  %584 = vmatpush1.msra.mxu0 0.0
  %585 = vmatprep.subr.mxu0 0.0
  %586 = vmatpush1.msra.mxu0 0.0
  %587 = vmatprep.subr.mxu0 0.0
  %588 = vmatpush1.msra.mxu0 0.0
  %589 = vmatprep.subr.mxu0 0.0
  %590 = vmatpush1.msra.mxu0 0.0
  %591 = vmatprep.subr.mxu0 0.0
  %592 = vmatpush1.msra.mxu0 0.0
  %593 = vmatprep.subr.mxu0 0.0
  %594 = vmatpush1.msra.mxu0 0.0
  %595 = vmatprep.subr.mxu0 0.0
  %596 = vmatpush1.msra.mxu0 0.0
  %597 = vmatprep.subr.mxu0 0.0
  %598 = vmatpush1.msra.mxu0 0.0
  %599 = vmatprep.subr.mxu0 0.0
  %600 = vmatpush1.msra.mxu0 0.0
  %601 = vmatprep.subr.mxu0 0.0
  %602 = vmatpush1.msra.mxu0 0.0
  %603 = vmatprep.subr.mxu0 0.0
  %604 = vmatpush1.msra.mxu0 0.0
  %605 = vmatprep.subr.mxu0 0.0
  %606 = vmatpush1.msra.mxu0 0.0
  %607 = vmatprep.subr.mxu0 0.0
  %608 = vmatpush1.msra.mxu0 0.0
  %609 = vmatprep.subr.mxu0 0.0
  %610 = vmatpush1.msra.mxu0 0.0
  %611 = vmatprep.subr.mxu0 0.0
  %612 = vmatpush1.msra.mxu0 0.0
  %613 = vmatprep.subr.mxu0 0.0
  %614 = vmatpush1.msra.mxu0 0.0
  %615 = vmatprep.mubr.f32.mxu0 0.0
  %616 = vmatmul.mubr.f32.gmra.mrb[0].mxu0 %v549
  %v617 = vpop.f32.mrb[0].mxu0
  %v618 = vadd.f32 0.0, %v617
  %v619 = vpop.f32.mrb[0].mxu0
  %620 = vdwg.mxu0
  %v621 = vadd.f32 %v546, %v618
  %v622 = vxor.u32 %v621, 2147483648
  %v623 = vmul.f32 %v622, 1.442695
  %v624 = vpow.pop %v623
  %v625 = vadd.f32 %v624, 1.0
  %v626 = vrcp.pop %v625
  %v627 = vmul.f32 1.0, %v626
  %v628 = vtanh.pop %v621
  %v629 = vld [vmem:[#allocation5] sm:$0xff]
  %631 = vrot.lane.b32.xlu0 %v629, 32
  %v632 = vpop.permute.xlu0 %631
  %v634 = vmul.f32 %v627, %v632
  %636 = vrot.lane.b32.xlu0 %v628, 64
  %v637 = vpop.permute.xlu0 %636
  %v639 = vmul.f32 %v627, %v637
  %641 = vrot.lane.b32.xlu0 %v639, 32
  %v642 = vpop.permute.xlu0 %641
  %v644 = vadd.f32 %v634, %v642
  %v645 = vtanh.pop %v644
  %647 = vrot.lane.b32.xlu0 %v645, 64
  %v648 = vpop.permute.xlu0 %647
  %v650 = vmul.f32 %v627, %v648
  %652 = vrot.lane.b32.xlu0 %v644, 96
  %v653 = vpop.permute.xlu0 %652
  %655 = vst.msk [vmem:[#allocation5] sm:$0xff] %vm186, %v653
  %657 = vrot.lane.b32.xlu0 %v650, 32
  %v658 = vpop.permute.xlu0 %657
  %660 = vst.msk [vmem:[#allocation4] sm:$0xff] %vm186, %v658
  %s661 = scalar_lea.vmem [#allocation2], 24
  %662 = vst.msk [vmem:[%s661] sm:$0xff] %vm186, %v658
  %s663 = scalar_lea.vmem [#allocation3], 32
  %v664 = vld [vmem:[%s663] sm:$0xff]
  %v665 = vld [vmem:[#allocation4] sm:$0xff]
  %v667 = vsel %vm186, %v665, 0
  %669 = vmatprep.subr.mxu0 0.0
  %670 = vmatpush1.msra.mxu0 %v189
  %671 = vmatprep.subr.mxu0 0.0
  %672 = vmatpush1.msra.mxu0 %v190
  %673 = vmatprep.subr.mxu0 0.0
  %674 = vmatpush1.msra.mxu0 %v191
  %675 = vmatprep.subr.mxu0 0.0
  %676 = vmatpush1.msra.mxu0 %v192
  %677 = vmatprep.subr.mxu0 0.0
  %678 = vmatpush1.msra.mxu0 0.0
  %679 = vmatprep.subr.mxu0 0.0
  %680 = vmatpush1.msra.mxu0 0.0
  %681 = vmatprep.subr.mxu0 0.0
  %682 = vmatpush1.msra.mxu0 0.0
  %683 = vmatprep.subr.mxu0 0.0
  %684 = vmatpush1.msra.mxu0 0.0
  %685 = vmatprep.subr.mxu0 0.0
  %686 = vmatpush1.msra.mxu0 0.0
  %687 = vmatprep.subr.mxu0 0.0
  %688 = vmatpush1.msra.mxu0 0.0
  %689 = vmatprep.subr.mxu0 0.0
  %690 = vmatpush1.msra.mxu0 0.0
  %691 = vmatprep.subr.mxu0 0.0
  %692 = vmatpush1.msra.mxu0 0.0
  %693 = vmatprep.subr.mxu0 0.0
  %694 = vmatpush1.msra.mxu0 0.0
  %695 = vmatprep.subr.mxu0 0.0
  %696 = vmatpush1.msra.mxu0 0.0
  %697 = vmatprep.subr.mxu0 0.0
  %698 = vmatpush1.msra.mxu0 0.0
  %699 = vmatprep.subr.mxu0 0.0
  %700 = vmatpush1.msra.mxu0 0.0
  %701 = vmatprep.subr.mxu0 0.0
  %702 = vmatpush1.msra.mxu0 0.0
  %703 = vmatprep.subr.mxu0 0.0
  %704 = vmatpush1.msra.mxu0 0.0
  %705 = vmatprep.subr.mxu0 0.0
  %706 = vmatpush1.msra.mxu0 0.0
  %707 = vmatprep.subr.mxu0 0.0
  %708 = vmatpush1.msra.mxu0 0.0
  %709 = vmatprep.subr.mxu0 0.0
  %710 = vmatpush1.msra.mxu0 0.0
  %711 = vmatprep.subr.mxu0 0.0
  %712 = vmatpush1.msra.mxu0 0.0
  %713 = vmatprep.subr.mxu0 0.0
  %714 = vmatpush1.msra.mxu0 0.0
  %715 = vmatprep.subr.mxu0 0.0
  %716 = vmatpush1.msra.mxu0 0.0
  %717 = vmatprep.subr.mxu0 0.0
  %718 = vmatpush1.msra.mxu0 0.0
  %719 = vmatprep.subr.mxu0 0.0
  %720 = vmatpush1.msra.mxu0 0.0
  %721 = vmatprep.subr.mxu0 0.0
  %722 = vmatpush1.msra.mxu0 0.0
  %723 = vmatprep.subr.mxu0 0.0
  %724 = vmatpush1.msra.mxu0 0.0
  %725 = vmatprep.subr.mxu0 0.0
  %726 = vmatpush1.msra.mxu0 0.0
  %727 = vmatprep.subr.mxu0 0.0
  %728 = vmatpush1.msra.mxu0 0.0
  %729 = vmatprep.subr.mxu0 0.0
  %730 = vmatpush1.msra.mxu0 0.0
  %731 = vmatprep.subr.mxu0 0.0
  %732 = vmatpush1.msra.mxu0 0.0
  %733 = vmatprep.mubr.f32.mxu0 0.0
  %734 = vmatmul.mubr.f32.gmra.mrb[0].mxu0 %v667
  %v735 = vpop.f32.mrb[0].mxu0
  %v736 = vadd.f32 0.0, %v735
  %v737 = vpop.f32.mrb[0].mxu0
  %738 = vdwg.mxu0
  %v739 = vadd.f32 %v664, %v736
  %v740 = vxor.u32 %v739, 2147483648
  %v741 = vmul.f32 %v740, 1.442695
  %v742 = vpow.pop %v741
  %v743 = vadd.f32 %v742, 1.0
  %v744 = vrcp.pop %v743
  %v745 = vmul.f32 1.0, %v744
  %v746 = vtanh.pop %v739
  %v747 = vld [vmem:[#allocation5] sm:$0xff]
  %749 = vrot.lane.b32.xlu0 %v747, 32
  %v750 = vpop.permute.xlu0 %749
  %v752 = vmul.f32 %v745, %v750
  %754 = vrot.lane.b32.xlu0 %v746, 64
  %v755 = vpop.permute.xlu0 %754
  %v757 = vmul.f32 %v745, %v755
  %759 = vrot.lane.b32.xlu0 %v757, 32
  %v760 = vpop.permute.xlu0 %759
  %v762 = vadd.f32 %v752, %v760
  %v763 = vtanh.pop %v762
  %765 = vrot.lane.b32.xlu0 %v763, 64
  %v766 = vpop.permute.xlu0 %765
  %v768 = vmul.f32 %v745, %v766
  %770 = vrot.lane.b32.xlu0 %v762, 96
  %v771 = vpop.permute.xlu0 %770
  %773 = vst.msk [vmem:[#allocation5] sm:$0xff] %vm186, %v771
  %775 = vrot.lane.b32.xlu0 %v768, 32
  %v776 = vpop.permute.xlu0 %775
  %778 = vst.msk [vmem:[#allocation4] sm:$0xff] %vm186, %v776
  %s779 = scalar_lea.vmem [#allocation2], 32
  %780 = vst.msk [vmem:[%s779] sm:$0xff] %vm186, %v776
  %s781 = scalar_lea.vmem [#allocation3], 40
  %v782 = vld [vmem:[%s781] sm:$0xff]
  %v783 = vld [vmem:[#allocation4] sm:$0xff]
  %v785 = vsel %vm186, %v783, 0
  %787 = vmatprep.subr.mxu0 0.0
  %788 = vmatpush1.msra.mxu0 %v189
  %789 = vmatprep.subr.mxu0 0.0
  %790 = vmatpush1.msra.mxu0 %v190
  %791 = vmatprep.subr.mxu0 0.0
  %792 = vmatpush1.msra.mxu0 %v191
  %793 = vmatprep.subr.mxu0 0.0
  %794 = vmatpush1.msra.mxu0 %v192
  %795 = vmatprep.subr.mxu0 0.0
  %796 = vmatpush1.msra.mxu0 0.0
  %797 = vmatprep.subr.mxu0 0.0
  %798 = vmatpush1.msra.mxu0 0.0
  %799 = vmatprep.subr.mxu0 0.0
  %800 = vmatpush1.msra.mxu0 0.0
  %801 = vmatprep.subr.mxu0 0.0
  %802 = vmatpush1.msra.mxu0 0.0
  %803 = vmatprep.subr.mxu0 0.0
  %804 = vmatpush1.msra.mxu0 0.0
  %805 = vmatprep.subr.mxu0 0.0
  %806 = vmatpush1.msra.mxu0 0.0
  %807 = vmatprep.subr.mxu0 0.0
  %808 = vmatpush1.msra.mxu0 0.0
  %809 = vmatprep.subr.mxu0 0.0
  %810 = vmatpush1.msra.mxu0 0.0
  %811 = vmatprep.subr.mxu0 0.0
  %812 = vmatpush1.msra.mxu0 0.0
  %813 = vmatprep.subr.mxu0 0.0
  %814 = vmatpush1.msra.mxu0 0.0
  %815 = vmatprep.subr.mxu0 0.0
  %816 = vmatpush1.msra.mxu0 0.0
  %817 = vmatprep.subr.mxu0 0.0
  %818 = vmatpush1.msra.mxu0 0.0
  %819 = vmatprep.subr.mxu0 0.0
  %820 = vmatpush1.msra.mxu0 0.0
  %821 = vmatprep.subr.mxu0 0.0
  %822 = vmatpush1.msra.mxu0 0.0
  %823 = vmatprep.subr.mxu0 0.0
  %824 = vmatpush1.msra.mxu0 0.0
  %825 = vmatprep.subr.mxu0 0.0
  %826 = vmatpush1.msra.mxu0 0.0
  %827 = vmatprep.subr.mxu0 0.0
  %828 = vmatpush1.msra.mxu0 0.0
  %829 = vmatprep.subr.mxu0 0.0
  %830 = vmatpush1.msra.mxu0 0.0
  %831 = vmatprep.subr.mxu0 0.0
  %832 = vmatpush1.msra.mxu0 0.0
  %833 = vmatprep.subr.mxu0 0.0
  %834 = vmatpush1.msra.mxu0 0.0
  %835 = vmatprep.subr.mxu0 0.0
  %836 = vmatpush1.msra.mxu0 0.0
  %837 = vmatprep.subr.mxu0 0.0
  %838 = vmatpush1.msra.mxu0 0.0
  %839 = vmatprep.subr.mxu0 0.0
  %840 = vmatpush1.msra.mxu0 0.0
  %841 = vmatprep.subr.mxu0 0.0
  %842 = vmatpush1.msra.mxu0 0.0
  %843 = vmatprep.subr.mxu0 0.0
  %844 = vmatpush1.msra.mxu0 0.0
  %845 = vmatprep.subr.mxu0 0.0
  %846 = vmatpush1.msra.mxu0 0.0
  %847 = vmatprep.subr.mxu0 0.0
  %848 = vmatpush1.msra.mxu0 0.0
  %849 = vmatprep.subr.mxu0 0.0
  %850 = vmatpush1.msra.mxu0 0.0
  %851 = vmatprep.mubr.f32.mxu0 0.0
  %852 = vmatmul.mubr.f32.gmra.mrb[0].mxu0 %v785
  %v853 = vpop.f32.mrb[0].mxu0
  %v854 = vadd.f32 0.0, %v853
  %v855 = vpop.f32.mrb[0].mxu0
  %856 = vdwg.mxu0
  %v857 = vadd.f32 %v782, %v854
  %v858 = vxor.u32 %v857, 2147483648
  %v859 = vmul.f32 %v858, 1.442695
  %v860 = vpow.pop %v859
  %v861 = vadd.f32 %v860, 1.0
  %v862 = vrcp.pop %v861
  %v863 = vmul.f32 1.0, %v862
  %v864 = vtanh.pop %v857
  %v865 = vld [vmem:[#allocation5] sm:$0xff]
  %867 = vrot.lane.b32.xlu0 %v865, 32
  %v868 = vpop.permute.xlu0 %867
  %v870 = vmul.f32 %v863, %v868
  %872 = vrot.lane.b32.xlu0 %v864, 64
  %v873 = vpop.permute.xlu0 %872
  %v875 = vmul.f32 %v863, %v873
  %877 = vrot.lane.b32.xlu0 %v875, 32
  %v878 = vpop.permute.xlu0 %877
  %v880 = vadd.f32 %v870, %v878
  %v881 = vtanh.pop %v880
  %883 = vrot.lane.b32.xlu0 %v881, 64
  %v884 = vpop.permute.xlu0 %883
  %v886 = vmul.f32 %v863, %v884
  %888 = vrot.lane.b32.xlu0 %v880, 96
  %v889 = vpop.permute.xlu0 %888
  %891 = vst.msk [vmem:[#allocation5] sm:$0xff] %vm186, %v889
  %893 = vrot.lane.b32.xlu0 %v886, 32
  %v894 = vpop.permute.xlu0 %893
  %896 = vst.msk [vmem:[#allocation4] sm:$0xff] %vm186, %v894
  %s897 = scalar_lea.vmem [#allocation2], 40
  %898 = vst.msk [vmem:[%s897] sm:$0xff] %vm186, %v894
  %s899 = scalar_lea.vmem [#allocation3], 48
  %v900 = vld [vmem:[%s899] sm:$0xff]
  %v901 = vld [vmem:[#allocation4] sm:$0xff]
  %v903 = vsel %vm186, %v901, 0
  %905 = vmatprep.subr.mxu0 0.0
  %906 = vmatpush1.msra.mxu0 %v189
  %907 = vmatprep.subr.mxu0 0.0
  %908 = vmatpush1.msra.mxu0 %v190
  %909 = vmatprep.subr.mxu0 0.0
  %910 = vmatpush1.msra.mxu0 %v191
  %911 = vmatprep.subr.mxu0 0.0
  %912 = vmatpush1.msra.mxu0 %v192
  %913 = vmatprep.subr.mxu0 0.0
  %914 = vmatpush1.msra.mxu0 0.0
  %915 = vmatprep.subr.mxu0 0.0
  %916 = vmatpush1.msra.mxu0 0.0
  %917 = vmatprep.subr.mxu0 0.0
  %918 = vmatpush1.msra.mxu0 0.0
  %919 = vmatprep.subr.mxu0 0.0
  %920 = vmatpush1.msra.mxu0 0.0
  %921 = vmatprep.subr.mxu0 0.0
  %922 = vmatpush1.msra.mxu0 0.0
  %923 = vmatprep.subr.mxu0 0.0
  %924 = vmatpush1.msra.mxu0 0.0
  %925 = vmatprep.subr.mxu0 0.0
  %926 = vmatpush1.msra.mxu0 0.0
  %927 = vmatprep.subr.mxu0 0.0
  %928 = vmatpush1.msra.mxu0 0.0
  %929 = vmatprep.subr.mxu0 0.0
  %930 = vmatpush1.msra.mxu0 0.0
  %931 = vmatprep.subr.mxu0 0.0
  %932 = vmatpush1.msra.mxu0 0.0
  %933 = vmatprep.subr.mxu0 0.0
  %934 = vmatpush1.msra.mxu0 0.0
  %935 = vmatprep.subr.mxu0 0.0
  %936 = vmatpush1.msra.mxu0 0.0
  %937 = vmatprep.subr.mxu0 0.0
  %938 = vmatpush1.msra.mxu0 0.0
  %939 = vmatprep.subr.mxu0 0.0
  %940 = vmatpush1.msra.mxu0 0.0
  %941 = vmatprep.subr.mxu0 0.0
  %942 = vmatpush1.msra.mxu0 0.0
  %943 = vmatprep.subr.mxu0 0.0
  %944 = vmatpush1.msra.mxu0 0.0
  %945 = vmatprep.subr.mxu0 0.0
  %946 = vmatpush1.msra.mxu0 0.0
  %947 = vmatprep.subr.mxu0 0.0
  %948 = vmatpush1.msra.mxu0 0.0
  %949 = vmatprep.subr.mxu0 0.0
  %950 = vmatpush1.msra.mxu0 0.0
  %951 = vmatprep.subr.mxu0 0.0
  %952 = vmatpush1.msra.mxu0 0.0
  %953 = vmatprep.subr.mxu0 0.0
  %954 = vmatpush1.msra.mxu0 0.0
  %955 = vmatprep.subr.mxu0 0.0
  %956 = vmatpush1.msra.mxu0 0.0
  %957 = vmatprep.subr.mxu0 0.0
  %958 = vmatpush1.msra.mxu0 0.0
  %959 = vmatprep.subr.mxu0 0.0
  %960 = vmatpush1.msra.mxu0 0.0
  %961 = vmatprep.subr.mxu0 0.0
  %962 = vmatpush1.msra.mxu0 0.0
  %963 = vmatprep.subr.mxu0 0.0
  %964 = vmatpush1.msra.mxu0 0.0
  %965 = vmatprep.subr.mxu0 0.0
  %966 = vmatpush1.msra.mxu0 0.0
  %967 = vmatprep.subr.mxu0 0.0
  %968 = vmatpush1.msra.mxu0 0.0
  %969 = vmatprep.mubr.f32.mxu0 0.0
  %970 = vmatmul.mubr.f32.gmra.mrb[0].mxu0 %v903
  %v971 = vpop.f32.mrb[0].mxu0
  %v972 = vadd.f32 0.0, %v971
  %v973 = vpop.f32.mrb[0].mxu0
  %974 = vdwg.mxu0
  %v975 = vadd.f32 %v900, %v972
  %v976 = vxor.u32 %v975, 2147483648
  %v977 = vmul.f32 %v976, 1.442695
  %v978 = vpow.pop %v977
  %v979 = vadd.f32 %v978, 1.0
  %v980 = vrcp.pop %v979
  %v981 = vmul.f32 1.0, %v980
  %v982 = vtanh.pop %v975
  %v983 = vld [vmem:[#allocation5] sm:$0xff]
  %985 = vrot.lane.b32.xlu0 %v983, 32
  %v986 = vpop.permute.xlu0 %985
  %v988 = vmul.f32 %v981, %v986
  %990 = vrot.lane.b32.xlu0 %v982, 64
  %v991 = vpop.permute.xlu0 %990
  %v993 = vmul.f32 %v981, %v991
  %995 = vrot.lane.b32.xlu0 %v993, 32
  %v996 = vpop.permute.xlu0 %995
  %v998 = vadd.f32 %v988, %v996
  %v999 = vtanh.pop %v998
  %1001 = vrot.lane.b32.xlu0 %v999, 64
  %v1002 = vpop.permute.xlu0 %1001
  %v1004 = vmul.f32 %v981, %v1002
  %1006 = vrot.lane.b32.xlu0 %v998, 96
  %v1007 = vpop.permute.xlu0 %1006
  %1009 = vst.msk [vmem:[#allocation5] sm:$0xff] %vm186, %v1007
  %1011 = vrot.lane.b32.xlu0 %v1004, 32
  %v1012 = vpop.permute.xlu0 %1011
  %1014 = vst.msk [vmem:[#allocation4] sm:$0xff] %vm186, %v1012
  %s1015 = scalar_lea.vmem [#allocation2], 48
  %1016 = vst.msk [vmem:[%s1015] sm:$0xff] %vm186, %v1012
  %s1017 = scalar_lea.vmem [#allocation3], 56
  %v1018 = vld [vmem:[%s1017] sm:$0xff]
  %v1019 = vld [vmem:[#allocation4] sm:$0xff]
  %v1021 = vsel %vm186, %v1019, 0
  %1023 = vmatprep.subr.mxu0 0.0
  %1024 = vmatpush1.msra.mxu0 %v189
  %1025 = vmatprep.subr.mxu0 0.0
  %1026 = vmatpush1.msra.mxu0 %v190
  %1027 = vmatprep.subr.mxu0 0.0
  %1028 = vmatpush1.msra.mxu0 %v191
  %1029 = vmatprep.subr.mxu0 0.0
  %1030 = vmatpush1.msra.mxu0 %v192
  %1031 = vmatprep.subr.mxu0 0.0
  %1032 = vmatpush1.msra.mxu0 0.0
  %1033 = vmatprep.subr.mxu0 0.0
  %1034 = vmatpush1.msra.mxu0 0.0
  %1035 = vmatprep.subr.mxu0 0.0
  %1036 = vmatpush1.msra.mxu0 0.0
  %1037 = vmatprep.subr.mxu0 0.0
  %1038 = vmatpush1.msra.mxu0 0.0
  %1039 = vmatprep.subr.mxu0 0.0
  %1040 = vmatpush1.msra.mxu0 0.0
  %1041 = vmatprep.subr.mxu0 0.0
  %1042 = vmatpush1.msra.mxu0 0.0
  %1043 = vmatprep.subr.mxu0 0.0
  %1044 = vmatpush1.msra.mxu0 0.0
  %1045 = vmatprep.subr.mxu0 0.0
  %1046 = vmatpush1.msra.mxu0 0.0
  %1047 = vmatprep.subr.mxu0 0.0
  %1048 = vmatpush1.msra.mxu0 0.0
  %1049 = vmatprep.subr.mxu0 0.0
  %1050 = vmatpush1.msra.mxu0 0.0
  %1051 = vmatprep.subr.mxu0 0.0
  %1052 = vmatpush1.msra.mxu0 0.0
  %1053 = vmatprep.subr.mxu0 0.0
  %1054 = vmatpush1.msra.mxu0 0.0
  %1055 = vmatprep.subr.mxu0 0.0
  %1056 = vmatpush1.msra.mxu0 0.0
  %1057 = vmatprep.subr.mxu0 0.0
  %1058 = vmatpush1.msra.mxu0 0.0
  %1059 = vmatprep.subr.mxu0 0.0
  %1060 = vmatpush1.msra.mxu0 0.0
  %1061 = vmatprep.subr.mxu0 0.0
  %1062 = vmatpush1.msra.mxu0 0.0
  %1063 = vmatprep.subr.mxu0 0.0
  %1064 = vmatpush1.msra.mxu0 0.0
  %1065 = vmatprep.subr.mxu0 0.0
  %1066 = vmatpush1.msra.mxu0 0.0
  %1067 = vmatprep.subr.mxu0 0.0
  %1068 = vmatpush1.msra.mxu0 0.0
  %1069 = vmatprep.subr.mxu0 0.0
  %1070 = vmatpush1.msra.mxu0 0.0
  %1071 = vmatprep.subr.mxu0 0.0
  %1072 = vmatpush1.msra.mxu0 0.0
  %1073 = vmatprep.subr.mxu0 0.0
  %1074 = vmatpush1.msra.mxu0 0.0
  %1075 = vmatprep.subr.mxu0 0.0
  %1076 = vmatpush1.msra.mxu0 0.0
  %1077 = vmatprep.subr.mxu0 0.0
  %1078 = vmatpush1.msra.mxu0 0.0
  %1079 = vmatprep.subr.mxu0 0.0
  %1080 = vmatpush1.msra.mxu0 0.0
  %1081 = vmatprep.subr.mxu0 0.0
  %1082 = vmatpush1.msra.mxu0 0.0
  %1083 = vmatprep.subr.mxu0 0.0
  %1084 = vmatpush1.msra.mxu0 0.0
  %1085 = vmatprep.subr.mxu0 0.0
  %1086 = vmatpush1.msra.mxu0 0.0
  %1087 = vmatprep.mubr.f32.mxu0 0.0
  %1088 = vmatmul.mubr.f32.gmra.mrb[0].mxu0 %v1021
  %v1089 = vpop.f32.mrb[0].mxu0
  %v1090 = vadd.f32 0.0, %v1089
  %v1091 = vpop.f32.mrb[0].mxu0
  %1092 = vdwg.mxu0
  %v1093 = vadd.f32 %v1018, %v1090
  %v1094 = vxor.u32 %v1093, 2147483648
  %v1095 = vmul.f32 %v1094, 1.442695
  %v1096 = vpow.pop %v1095
  %v1097 = vadd.f32 %v1096, 1.0
  %v1098 = vrcp.pop %v1097
  %v1099 = vmul.f32 1.0, %v1098
  %v1100 = vtanh.pop %v1093
  %v1101 = vld [vmem:[#allocation5] sm:$0xff]
  %1103 = vrot.lane.b32.xlu0 %v1101, 32
  %v1104 = vpop.permute.xlu0 %1103
  %v1106 = vmul.f32 %v1099, %v1104
  %1108 = vrot.lane.b32.xlu0 %v1100, 64
  %v1109 = vpop.permute.xlu0 %1108
  %v1111 = vmul.f32 %v1099, %v1109
  %1113 = vrot.lane.b32.xlu0 %v1111, 32
  %v1114 = vpop.permute.xlu0 %1113
  %v1116 = vadd.f32 %v1106, %v1114
  %v1117 = vtanh.pop %v1116
  %1119 = vrot.lane.b32.xlu0 %v1117, 64
  %v1120 = vpop.permute.xlu0 %1119
  %v1122 = vmul.f32 %v1099, %v1120
  %1124 = vrot.lane.b32.xlu0 %v1116, 96
  %v1125 = vpop.permute.xlu0 %1124
  %1127 = vst.msk [vmem:[#allocation5] sm:$0xff] %vm186, %v1125
  %1129 = vrot.lane.b32.xlu0 %v1122, 32
  %v1130 = vpop.permute.xlu0 %1129
  %1132 = vst.msk [vmem:[#allocation4] sm:$0xff] %vm186, %v1130
  %s1133 = scalar_lea.vmem [#allocation2], 56
  %1134 = vst.msk [vmem:[%s1133] sm:$0xff] %vm186, %v1130
  %v1135 = vld [vmem:[#allocation2] sm:$0xff]
  %v1136 = vld [vmem:[#allocation2 + $0x8] sm:$0xff]
  %v1137 = vld [vmem:[#allocation2 + $0x10] sm:$0xff]
  %v1138 = vld [vmem:[#allocation2 + $0x18] sm:$0xff]
  %v1139 = vld [vmem:[#allocation2 + $0x20] sm:$0xff]
  %v1140 = vld [vmem:[#allocation2 + $0x28] sm:$0xff]
  %v1141 = vld [vmem:[#allocation2 + $0x30] sm:$0xff]
  %v1142 = vld [vmem:[#allocation2 + $0x38] sm:$0xff]
  %v1143 = vld [vmem:[%s4] sm:$0xff]
  %v1144 = vld [vmem:[%s4 + $0x8] sm:$0xff]
  %v1145 = vld [vmem:[%s4 + $0x10] sm:$0xff]
  %v1146 = vld [vmem:[%s4 + $0x18] sm:$0xff]
  %v1147 = vld [vmem:[%s6] sm:$0x1]
  %v1149 = vlaneseq
  %v1150 = vshrl.u32 %v1149, 7
  %v1151 = vsub.s32 0, %v1150
  %v1152 = vrot.slane %v1147, %v1151
  %v1155 = vsel %vm186, %v1135, 0
  %v1158 = vsel %vm186, %v1136, 0
  %v1161 = vsel %vm186, %v1137, 0
  %v1164 = vsel %vm186, %v1138, 0
  %v1167 = vsel %vm186, %v1139, 0
  %v1170 = vsel %vm186, %v1140, 0
  %v1173 = vsel %vm186, %v1141, 0
  %v1176 = vsel %vm186, %v1142, 0
  %1178 = vmatprep.subr.mxu0 0.0
  %1179 = vmatpush1.msra.mxu0 %v1143
  %1180 = vmatprep.subr.mxu0 0.0
  %1181 = vmatpush1.msra.mxu0 %v1144
  %1182 = vmatprep.subr.mxu0 0.0
  %1183 = vmatpush1.msra.mxu0 %v1145
  %1184 = vmatprep.subr.mxu0 0.0
  %1185 = vmatpush1.msra.mxu0 %v1146
  %1186 = vmatprep.subr.mxu0 0.0
  %1187 = vmatpush1.msra.mxu0 0.0
  %1188 = vmatprep.subr.mxu0 0.0
  %1189 = vmatpush1.msra.mxu0 0.0
  %1190 = vmatprep.subr.mxu0 0.0
  %1191 = vmatpush1.msra.mxu0 0.0
  %1192 = vmatprep.subr.mxu0 0.0
  %1193 = vmatpush1.msra.mxu0 0.0
  %1194 = vmatprep.subr.mxu0 0.0
  %1195 = vmatpush1.msra.mxu0 0.0
  %1196 = vmatprep.subr.mxu0 0.0
  %1197 = vmatpush1.msra.mxu0 0.0
  %1198 = vmatprep.subr.mxu0 0.0
  %1199 = vmatpush1.msra.mxu0 0.0
  %1200 = vmatprep.subr.mxu0 0.0
  %1201 = vmatpush1.msra.mxu0 0.0
  %1202 = vmatprep.subr.mxu0 0.0
  %1203 = vmatpush1.msra.mxu0 0.0
  %1204 = vmatprep.subr.mxu0 0.0
  %1205 = vmatpush1.msra.mxu0 0.0
  %1206 = vmatprep.subr.mxu0 0.0
  %1207 = vmatpush1.msra.mxu0 0.0
  %1208 = vmatprep.subr.mxu0 0.0
  %1209 = vmatpush1.msra.mxu0 0.0
  %1210 = vmatprep.subr.mxu0 0.0
  %1211 = vmatpush1.msra.mxu0 0.0
  %1212 = vmatprep.subr.mxu0 0.0
  %1213 = vmatpush1.msra.mxu0 0.0
  %1214 = vmatprep.subr.mxu0 0.0
  %1215 = vmatpush1.msra.mxu0 0.0
  %1216 = vmatprep.subr.mxu0 0.0
  %1217 = vmatpush1.msra.mxu0 0.0
  %1218 = vmatprep.subr.mxu0 0.0
  %1219 = vmatpush1.msra.mxu0 0.0
  %1220 = vmatprep.subr.mxu0 0.0
  %1221 = vmatpush1.msra.mxu0 0.0
  %1222 = vmatprep.subr.mxu0 0.0
  %1223 = vmatpush1.msra.mxu0 0.0
  %1224 = vmatprep.subr.mxu0 0.0
  %1225 = vmatpush1.msra.mxu0 0.0
  %1226 = vmatprep.subr.mxu0 0.0
  %1227 = vmatpush1.msra.mxu0 0.0
  %1228 = vmatprep.subr.mxu0 0.0
  %1229 = vmatpush1.msra.mxu0 0.0
  %1230 = vmatprep.subr.mxu0 0.0
  %1231 = vmatpush1.msra.mxu0 0.0
  %1232 = vmatprep.subr.mxu0 0.0
  %1233 = vmatpush1.msra.mxu0 0.0
  %1234 = vmatprep.subr.mxu0 0.0
  %1235 = vmatpush1.msra.mxu0 0.0
  %1236 = vmatprep.subr.mxu0 0.0
  %1237 = vmatpush1.msra.mxu0 0.0
  %1238 = vmatprep.subr.mxu0 0.0
  %1239 = vmatpush1.msra.mxu0 0.0
  %1240 = vmatprep.subr.mxu0 0.0
  %1241 = vmatpush1.msra.mxu0 0.0
  %1242 = vmatprep.mubr.f32.mxu0 0.0
  %1243 = vmatmul.mubr.f32.gmra.mrb[0].mxu0 %v1155
  %v1244 = vpop.f32.mrb[0].mxu0
  %v1245 = vadd.f32 %v1152, %v1244
  %v1246 = vpop.f32.mrb[0].mxu0
  %1247 = vmatprep.mubr.f32.mxu0 0.0
  %1248 = vmatmul.mubr.f32.gmra.mrb[0].mxu0 %v1158
  %v1249 = vpop.f32.mrb[0].mxu0
  %v1250 = vadd.f32 %v1152, %v1249
  %v1251 = vpop.f32.mrb[0].mxu0
  %1252 = vmatprep.mubr.f32.mxu0 0.0
  %1253 = vmatmul.mubr.f32.gmra.mrb[0].mxu0 %v1161
  %v1254 = vpop.f32.mrb[0].mxu0
  %v1255 = vadd.f32 %v1152, %v1254
  %v1256 = vpop.f32.mrb[0].mxu0
  %1257 = vmatprep.mubr.f32.mxu0 0.0
  %1258 = vmatmul.mubr.f32.gmra.mrb[0].mxu0 %v1164
  %v1259 = vpop.f32.mrb[0].mxu0
  %v1260 = vadd.f32 %v1152, %v1259
  %v1261 = vpop.f32.mrb[0].mxu0
  %1262 = vmatprep.mubr.f32.mxu0 0.0
  %1263 = vmatmul.mubr.f32.gmra.mrb[0].mxu0 %v1167
  %v1264 = vpop.f32.mrb[0].mxu0
  %v1265 = vadd.f32 %v1152, %v1264
  %v1266 = vpop.f32.mrb[0].mxu0
  %1267 = vmatprep.mubr.f32.mxu0 0.0
  %1268 = vmatmul.mubr.f32.gmra.mrb[0].mxu0 %v1170
  %v1269 = vpop.f32.mrb[0].mxu0
  %v1270 = vadd.f32 %v1152, %v1269
  %v1271 = vpop.f32.mrb[0].mxu0
  %1272 = vmatprep.mubr.f32.mxu0 0.0
  %1273 = vmatmul.mubr.f32.gmra.mrb[0].mxu0 %v1173
  %v1274 = vpop.f32.mrb[0].mxu0
  %v1275 = vadd.f32 %v1152, %v1274
  %v1276 = vpop.f32.mrb[0].mxu0
  %1277 = vmatprep.mubr.f32.mxu0 0.0
  %1278 = vmatmul.mubr.f32.gmra.mrb[0].mxu0 %v1176
  %v1279 = vpop.f32.mrb[0].mxu0
  %v1280 = vadd.f32 %v1152, %v1279
  %v1281 = vpop.f32.mrb[0].mxu0
  %1282 = vdwg.mxu0
  %1283 = vst [vmem:[#allocation3] sm:$0xff] %v1245
  %1284 = vst [vmem:[#allocation3 + $0x8] sm:$0xff] %v1250
  %1285 = vst [vmem:[#allocation3 + $0x10] sm:$0xff] %v1255
  %1286 = vst [vmem:[#allocation3 + $0x18] sm:$0xff] %v1260
  %1287 = vst [vmem:[#allocation3 + $0x20] sm:$0xff] %v1265
  %1288 = vst [vmem:[#allocation3 + $0x28] sm:$0xff] %v1270
  %1289 = vst [vmem:[#allocation3 + $0x30] sm:$0xff] %v1275
  %1290 = vst [vmem:[#allocation3 + $0x38] sm:$0xff] %v1280
  %1291 = vst.msk [vmem:[#allocation4] sm:$0xff] %vm186, 0.0
  %1292 = vst.msk [vmem:[#allocation5] sm:$0xff] %vm186, 0.0
  %v1293 = vld [vmem:[%s5] sm:$0xff]
  %v1294 = vld [vmem:[%s5 + $0x8] sm:$0xff]
  %v1295 = vld [vmem:[%s5 + $0x10] sm:$0xff]
  %v1296 = vld [vmem:[%s5 + $0x18] sm:$0xff]
  %v1297 = vld [vmem:[#allocation3] sm:$0xff]
  %v1298 = vld [vmem:[#allocation4] sm:$0xff]
  %v1300 = vsel %vm186, %v1298, 0
  %1302 = vmatprep.subr.mxu0 0.0
  %1303 = vmatpush1.msra.mxu0 %v1293
  %1304 = vmatprep.subr.mxu0 0.0
  %1305 = vmatpush1.msra.mxu0 %v1294
  %1306 = vmatprep.subr.mxu0 0.0
  %1307 = vmatpush1.msra.mxu0 %v1295
  %1308 = vmatprep.subr.mxu0 0.0
  %1309 = vmatpush1.msra.mxu0 %v1296
  %1310 = vmatprep.subr.mxu0 0.0
  %1311 = vmatpush1.msra.mxu0 0.0
  %1312 = vmatprep.subr.mxu0 0.0
  %1313 = vmatpush1.msra.mxu0 0.0
  %1314 = vmatprep.subr.mxu0 0.0
  %1315 = vmatpush1.msra.mxu0 0.0
  %1316 = vmatprep.subr.mxu0 0.0
  %1317 = vmatpush1.msra.mxu0 0.0
  %1318 = vmatprep.subr.mxu0 0.0
  %1319 = vmatpush1.msra.mxu0 0.0
  %1320 = vmatprep.subr.mxu0 0.0
  %1321 = vmatpush1.msra.mxu0 0.0
  %1322 = vmatprep.subr.mxu0 0.0
  %1323 = vmatpush1.msra.mxu0 0.0
  %1324 = vmatprep.subr.mxu0 0.0
  %1325 = vmatpush1.msra.mxu0 0.0
  %1326 = vmatprep.subr.mxu0 0.0
  %1327 = vmatpush1.msra.mxu0 0.0
  %1328 = vmatprep.subr.mxu0 0.0
  %1329 = vmatpush1.msra.mxu0 0.0
  %1330 = vmatprep.subr.mxu0 0.0
  %1331 = vmatpush1.msra.mxu0 0.0
  %1332 = vmatprep.subr.mxu0 0.0
  %1333 = vmatpush1.msra.mxu0 0.0
  %1334 = vmatprep.subr.mxu0 0.0
  %1335 = vmatpush1.msra.mxu0 0.0
  %1336 = vmatprep.subr.mxu0 0.0
  %1337 = vmatpush1.msra.mxu0 0.0
  %1338 = vmatprep.subr.mxu0 0.0
  %1339 = vmatpush1.msra.mxu0 0.0
  %1340 = vmatprep.subr.mxu0 0.0
  %1341 = vmatpush1.msra.mxu0 0.0
  %1342 = vmatprep.subr.mxu0 0.0
  %1343 = vmatpush1.msra.mxu0 0.0
  %1344 = vmatprep.subr.mxu0 0.0
  %1345 = vmatpush1.msra.mxu0 0.0
  %1346 = vmatprep.subr.mxu0 0.0
  %1347 = vmatpush1.msra.mxu0 0.0
  %1348 = vmatprep.subr.mxu0 0.0
  %1349 = vmatpush1.msra.mxu0 0.0
  %1350 = vmatprep.subr.mxu0 0.0
  %1351 = vmatpush1.msra.mxu0 0.0
  %1352 = vmatprep.subr.mxu0 0.0
  %1353 = vmatpush1.msra.mxu0 0.0
  %1354 = vmatprep.subr.mxu0 0.0
  %1355 = vmatpush1.msra.mxu0 0.0
  %1356 = vmatprep.subr.mxu0 0.0
  %1357 = vmatpush1.msra.mxu0 0.0
  %1358 = vmatprep.subr.mxu0 0.0
  %1359 = vmatpush1.msra.mxu0 0.0
  %1360 = vmatprep.subr.mxu0 0.0
  %1361 = vmatpush1.msra.mxu0 0.0
  %1362 = vmatprep.subr.mxu0 0.0
  %1363 = vmatpush1.msra.mxu0 0.0
  %1364 = vmatprep.subr.mxu0 0.0
  %1365 = vmatpush1.msra.mxu0 0.0
  %1366 = vmatprep.mubr.f32.mxu0 0.0
  %1367 = vmatmul.mubr.f32.gmra.mrb[0].mxu0 %v1300
  %v1368 = vpop.f32.mrb[0].mxu0
  %v1369 = vadd.f32 0.0, %v1368
  %v1370 = vpop.f32.mrb[0].mxu0
  %1371 = vdwg.mxu0
  %v1372 = vadd.f32 %v1297, %v1369
  %v1373 = vxor.u32 %v1372, 2147483648
  %v1374 = vmul.f32 %v1373, 1.442695
  %v1375 = vpow.pop %v1374
  %v1376 = vadd.f32 %v1375, 1.0
  %v1377 = vrcp.pop %v1376
  %v1378 = vmul.f32 1.0, %v1377
  %v1379 = vtanh.pop %v1372
  %v1380 = vld [vmem:[#allocation5] sm:$0xff]
  %1382 = vrot.lane.b32.xlu0 %v1380, 32
  %v1383 = vpop.permute.xlu0 %1382
  %v1385 = vmul.f32 %v1378, %v1383
  %1387 = vrot.lane.b32.xlu0 %v1379, 64
  %v1388 = vpop.permute.xlu0 %1387
  %v1390 = vmul.f32 %v1378, %v1388
  %1392 = vrot.lane.b32.xlu0 %v1390, 32
  %v1393 = vpop.permute.xlu0 %1392
  %v1395 = vadd.f32 %v1385, %v1393
  %v1396 = vtanh.pop %v1395
  %1398 = vrot.lane.b32.xlu0 %v1396, 64
  %v1399 = vpop.permute.xlu0 %1398
  %v1401 = vmul.f32 %v1378, %v1399
  %1403 = vrot.lane.b32.xlu0 %v1395, 96
  %v1404 = vpop.permute.xlu0 %1403
  %1406 = vst.msk [vmem:[#allocation5] sm:$0xff] %vm186, %v1404
  %1408 = vrot.lane.b32.xlu0 %v1401, 32
  %v1409 = vpop.permute.xlu0 %1408
  %1411 = vst.msk [vmem:[#allocation4] sm:$0xff] %vm186, %v1409
  %v1412 = vld [vmem:[%s309] sm:$0xff]
  %v1413 = vld [vmem:[#allocation4] sm:$0xff]
  %v1415 = vsel %vm186, %v1413, 0
  %1417 = vmatprep.subr.mxu0 0.0
  %1418 = vmatpush1.msra.mxu0 %v1293
  %1419 = vmatprep.subr.mxu0 0.0
  %1420 = vmatpush1.msra.mxu0 %v1294
  %1421 = vmatprep.subr.mxu0 0.0
  %1422 = vmatpush1.msra.mxu0 %v1295
  %1423 = vmatprep.subr.mxu0 0.0
  %1424 = vmatpush1.msra.mxu0 %v1296
  %1425 = vmatprep.subr.mxu0 0.0
  %1426 = vmatpush1.msra.mxu0 0.0
  %1427 = vmatprep.subr.mxu0 0.0
  %1428 = vmatpush1.msra.mxu0 0.0
  %1429 = vmatprep.subr.mxu0 0.0
  %1430 = vmatpush1.msra.mxu0 0.0
  %1431 = vmatprep.subr.mxu0 0.0
  %1432 = vmatpush1.msra.mxu0 0.0
  %1433 = vmatprep.subr.mxu0 0.0
  %1434 = vmatpush1.msra.mxu0 0.0
  %1435 = vmatprep.subr.mxu0 0.0
  %1436 = vmatpush1.msra.mxu0 0.0
  %1437 = vmatprep.subr.mxu0 0.0
  %1438 = vmatpush1.msra.mxu0 0.0
  %1439 = vmatprep.subr.mxu0 0.0
  %1440 = vmatpush1.msra.mxu0 0.0
  %1441 = vmatprep.subr.mxu0 0.0
  %1442 = vmatpush1.msra.mxu0 0.0
  %1443 = vmatprep.subr.mxu0 0.0
  %1444 = vmatpush1.msra.mxu0 0.0
  %1445 = vmatprep.subr.mxu0 0.0
  %1446 = vmatpush1.msra.mxu0 0.0
  %1447 = vmatprep.subr.mxu0 0.0
  %1448 = vmatpush1.msra.mxu0 0.0
  %1449 = vmatprep.subr.mxu0 0.0
  %1450 = vmatpush1.msra.mxu0 0.0
  %1451 = vmatprep.subr.mxu0 0.0
  %1452 = vmatpush1.msra.mxu0 0.0
  %1453 = vmatprep.subr.mxu0 0.0
  %1454 = vmatpush1.msra.mxu0 0.0
  %1455 = vmatprep.subr.mxu0 0.0
  %1456 = vmatpush1.msra.mxu0 0.0
  %1457 = vmatprep.subr.mxu0 0.0
  %1458 = vmatpush1.msra.mxu0 0.0
  %1459 = vmatprep.subr.mxu0 0.0
  %1460 = vmatpush1.msra.mxu0 0.0
  %1461 = vmatprep.subr.mxu0 0.0
  %1462 = vmatpush1.msra.mxu0 0.0
  %1463 = vmatprep.subr.mxu0 0.0
  %1464 = vmatpush1.msra.mxu0 0.0
  %1465 = vmatprep.subr.mxu0 0.0
  %1466 = vmatpush1.msra.mxu0 0.0
  %1467 = vmatprep.subr.mxu0 0.0
  %1468 = vmatpush1.msra.mxu0 0.0
  %1469 = vmatprep.subr.mxu0 0.0
  %1470 = vmatpush1.msra.mxu0 0.0
  %1471 = vmatprep.subr.mxu0 0.0
  %1472 = vmatpush1.msra.mxu0 0.0
  %1473 = vmatprep.subr.mxu0 0.0
  %1474 = vmatpush1.msra.mxu0 0.0
  %1475 = vmatprep.subr.mxu0 0.0
  %1476 = vmatpush1.msra.mxu0 0.0
  %1477 = vmatprep.subr.mxu0 0.0
  %1478 = vmatpush1.msra.mxu0 0.0
  %1479 = vmatprep.subr.mxu0 0.0
  %1480 = vmatpush1.msra.mxu0 0.0
  %1481 = vmatprep.mubr.f32.mxu0 0.0
  %1482 = vmatmul.mubr.f32.gmra.mrb[0].mxu0 %v1415
  %v1483 = vpop.f32.mrb[0].mxu0
  %v1484 = vadd.f32 0.0, %v1483
  %v1485 = vpop.f32.mrb[0].mxu0
  %1486 = vdwg.mxu0
  %v1487 = vadd.f32 %v1412, %v1484
  %v1488 = vxor.u32 %v1487, 2147483648
  %v1489 = vmul.f32 %v1488, 1.442695
  %v1490 = vpow.pop %v1489
  %v1491 = vadd.f32 %v1490, 1.0
  %v1492 = vrcp.pop %v1491
  %v1493 = vmul.f32 1.0, %v1492
  %v1494 = vtanh.pop %v1487
  %v1495 = vld [vmem:[#allocation5] sm:$0xff]
  %1497 = vrot.lane.b32.xlu0 %v1495, 32
  %v1498 = vpop.permute.xlu0 %1497
  %v1500 = vmul.f32 %v1493, %v1498
  %1502 = vrot.lane.b32.xlu0 %v1494, 64
  %v1503 = vpop.permute.xlu0 %1502
  %v1505 = vmul.f32 %v1493, %v1503
  %1507 = vrot.lane.b32.xlu0 %v1505, 32
  %v1508 = vpop.permute.xlu0 %1507
  %v1510 = vadd.f32 %v1500, %v1508
  %v1511 = vtanh.pop %v1510
  %1513 = vrot.lane.b32.xlu0 %v1511, 64
  %v1514 = vpop.permute.xlu0 %1513
  %v1516 = vmul.f32 %v1493, %v1514
  %1518 = vrot.lane.b32.xlu0 %v1510, 96
  %v1519 = vpop.permute.xlu0 %1518
  %1521 = vst.msk [vmem:[#allocation5] sm:$0xff] %vm186, %v1519
  %1523 = vrot.lane.b32.xlu0 %v1516, 32
  %v1524 = vpop.permute.xlu0 %1523
  %1526 = vst.msk [vmem:[#allocation4] sm:$0xff] %vm186, %v1524
  %v1527 = vld [vmem:[%s427] sm:$0xff]
  %v1528 = vld [vmem:[#allocation4] sm:$0xff]
  %v1530 = vsel %vm186, %v1528, 0
  %1532 = vmatprep.subr.mxu0 0.0
  %1533 = vmatpush1.msra.mxu0 %v1293
  %1534 = vmatprep.subr.mxu0 0.0
  %1535 = vmatpush1.msra.mxu0 %v1294
  %1536 = vmatprep.subr.mxu0 0.0
  %1537 = vmatpush1.msra.mxu0 %v1295
  %1538 = vmatprep.subr.mxu0 0.0
  %1539 = vmatpush1.msra.mxu0 %v1296
  %1540 = vmatprep.subr.mxu0 0.0
  %1541 = vmatpush1.msra.mxu0 0.0
  %1542 = vmatprep.subr.mxu0 0.0
  %1543 = vmatpush1.msra.mxu0 0.0
  %1544 = vmatprep.subr.mxu0 0.0
  %1545 = vmatpush1.msra.mxu0 0.0
  %1546 = vmatprep.subr.mxu0 0.0
  %1547 = vmatpush1.msra.mxu0 0.0
  %1548 = vmatprep.subr.mxu0 0.0
  %1549 = vmatpush1.msra.mxu0 0.0
  %1550 = vmatprep.subr.mxu0 0.0
  %1551 = vmatpush1.msra.mxu0 0.0
  %1552 = vmatprep.subr.mxu0 0.0
  %1553 = vmatpush1.msra.mxu0 0.0
  %1554 = vmatprep.subr.mxu0 0.0
  %1555 = vmatpush1.msra.mxu0 0.0
  %1556 = vmatprep.subr.mxu0 0.0
  %1557 = vmatpush1.msra.mxu0 0.0
  %1558 = vmatprep.subr.mxu0 0.0
  %1559 = vmatpush1.msra.mxu0 0.0
  %1560 = vmatprep.subr.mxu0 0.0
  %1561 = vmatpush1.msra.mxu0 0.0
  %1562 = vmatprep.subr.mxu0 0.0
  %1563 = vmatpush1.msra.mxu0 0.0
  %1564 = vmatprep.subr.mxu0 0.0
  %1565 = vmatpush1.msra.mxu0 0.0
  %1566 = vmatprep.subr.mxu0 0.0
  %1567 = vmatpush1.msra.mxu0 0.0
  %1568 = vmatprep.subr.mxu0 0.0
  %1569 = vmatpush1.msra.mxu0 0.0
  %1570 = vmatprep.subr.mxu0 0.0
  %1571 = vmatpush1.msra.mxu0 0.0
  %1572 = vmatprep.subr.mxu0 0.0
  %1573 = vmatpush1.msra.mxu0 0.0
  %1574 = vmatprep.subr.mxu0 0.0
  %1575 = vmatpush1.msra.mxu0 0.0
  %1576 = vmatprep.subr.mxu0 0.0
  %1577 = vmatpush1.msra.mxu0 0.0
  %1578 = vmatprep.subr.mxu0 0.0
  %1579 = vmatpush1.msra.mxu0 0.0
  %1580 = vmatprep.subr.mxu0 0.0
  %1581 = vmatpush1.msra.mxu0 0.0
  %1582 = vmatprep.subr.mxu0 0.0
  %1583 = vmatpush1.msra.mxu0 0.0
  %1584 = vmatprep.subr.mxu0 0.0
  %1585 = vmatpush1.msra.mxu0 0.0
  %1586 = vmatprep.subr.mxu0 0.0
  %1587 = vmatpush1.msra.mxu0 0.0
  %1588 = vmatprep.subr.mxu0 0.0
  %1589 = vmatpush1.msra.mxu0 0.0
  %1590 = vmatprep.subr.mxu0 0.0
  %1591 = vmatpush1.msra.mxu0 0.0
  %1592 = vmatprep.subr.mxu0 0.0
  %1593 = vmatpush1.msra.mxu0 0.0
  %1594 = vmatprep.subr.mxu0 0.0
  %1595 = vmatpush1.msra.mxu0 0.0
  %1596 = vmatprep.mubr.f32.mxu0 0.0
  %1597 = vmatmul.mubr.f32.gmra.mrb[0].mxu0 %v1530
  %v1598 = vpop.f32.mrb[0].mxu0
  %v1599 = vadd.f32 0.0, %v1598
  %v1600 = vpop.f32.mrb[0].mxu0
  %1601 = vdwg.mxu0
  %v1602 = vadd.f32 %v1527, %v1599
  %v1603 = vxor.u32 %v1602, 2147483648
  %v1604 = vmul.f32 %v1603, 1.442695
  %v1605 = vpow.pop %v1604
  %v1606 = vadd.f32 %v1605, 1.0
  %v1607 = vrcp.pop %v1606
  %v1608 = vmul.f32 1.0, %v1607
  %v1609 = vtanh.pop %v1602
  %v1610 = vld [vmem:[#allocation5] sm:$0xff]
  %1612 = vrot.lane.b32.xlu0 %v1610, 32
  %v1613 = vpop.permute.xlu0 %1612
  %v1615 = vmul.f32 %v1608, %v1613
  %1617 = vrot.lane.b32.xlu0 %v1609, 64
  %v1618 = vpop.permute.xlu0 %1617
  %v1620 = vmul.f32 %v1608, %v1618
  %1622 = vrot.lane.b32.xlu0 %v1620, 32
  %v1623 = vpop.permute.xlu0 %1622
  %v1625 = vadd.f32 %v1615, %v1623
  %v1626 = vtanh.pop %v1625
  %1628 = vrot.lane.b32.xlu0 %v1626, 64
  %v1629 = vpop.permute.xlu0 %1628
  %v1631 = vmul.f32 %v1608, %v1629
  %1633 = vrot.lane.b32.xlu0 %v1625, 96
  %v1634 = vpop.permute.xlu0 %1633
  %1636 = vst.msk [vmem:[#allocation5] sm:$0xff] %vm186, %v1634
  %1638 = vrot.lane.b32.xlu0 %v1631, 32
  %v1639 = vpop.permute.xlu0 %1638
  %1641 = vst.msk [vmem:[#allocation4] sm:$0xff] %vm186, %v1639
  %v1642 = vld [vmem:[%s545] sm:$0xff]
  %v1643 = vld [vmem:[#allocation4] sm:$0xff]
  %v1645 = vsel %vm186, %v1643, 0
  %1647 = vmatprep.subr.mxu0 0.0
  %1648 = vmatpush1.msra.mxu0 %v1293
  %1649 = vmatprep.subr.mxu0 0.0
  %1650 = vmatpush1.msra.mxu0 %v1294
  %1651 = vmatprep.subr.mxu0 0.0
  %1652 = vmatpush1.msra.mxu0 %v1295
  %1653 = vmatprep.subr.mxu0 0.0
  %1654 = vmatpush1.msra.mxu0 %v1296
  %1655 = vmatprep.subr.mxu0 0.0
  %1656 = vmatpush1.msra.mxu0 0.0
  %1657 = vmatprep.subr.mxu0 0.0
  %1658 = vmatpush1.msra.mxu0 0.0
  %1659 = vmatprep.subr.mxu0 0.0
  %1660 = vmatpush1.msra.mxu0 0.0
  %1661 = vmatprep.subr.mxu0 0.0
  %1662 = vmatpush1.msra.mxu0 0.0
  %1663 = vmatprep.subr.mxu0 0.0
  %1664 = vmatpush1.msra.mxu0 0.0
  %1665 = vmatprep.subr.mxu0 0.0
  %1666 = vmatpush1.msra.mxu0 0.0
  %1667 = vmatprep.subr.mxu0 0.0
  %1668 = vmatpush1.msra.mxu0 0.0
  %1669 = vmatprep.subr.mxu0 0.0
  %1670 = vmatpush1.msra.mxu0 0.0
  %1671 = vmatprep.subr.mxu0 0.0
  %1672 = vmatpush1.msra.mxu0 0.0
  %1673 = vmatprep.subr.mxu0 0.0
  %1674 = vmatpush1.msra.mxu0 0.0
  %1675 = vmatprep.subr.mxu0 0.0
  %1676 = vmatpush1.msra.mxu0 0.0
  %1677 = vmatprep.subr.mxu0 0.0
  %1678 = vmatpush1.msra.mxu0 0.0
  %1679 = vmatprep.subr.mxu0 0.0
  %1680 = vmatpush1.msra.mxu0 0.0
  %1681 = vmatprep.subr.mxu0 0.0
  %1682 = vmatpush1.msra.mxu0 0.0
  %1683 = vmatprep.subr.mxu0 0.0
  %1684 = vmatpush1.msra.mxu0 0.0
  %1685 = vmatprep.subr.mxu0 0.0
  %1686 = vmatpush1.msra.mxu0 0.0
  %1687 = vmatprep.subr.mxu0 0.0
  %1688 = vmatpush1.msra.mxu0 0.0
  %1689 = vmatprep.subr.mxu0 0.0
  %1690 = vmatpush1.msra.mxu0 0.0
  %1691 = vmatprep.subr.mxu0 0.0
  %1692 = vmatpush1.msra.mxu0 0.0
  %1693 = vmatprep.subr.mxu0 0.0
  %1694 = vmatpush1.msra.mxu0 0.0
  %1695 = vmatprep.subr.mxu0 0.0
  %1696 = vmatpush1.msra.mxu0 0.0
  %1697 = vmatprep.subr.mxu0 0.0
  %1698 = vmatpush1.msra.mxu0 0.0
  %1699 = vmatprep.subr.mxu0 0.0
  %1700 = vmatpush1.msra.mxu0 0.0
  %1701 = vmatprep.subr.mxu0 0.0
  %1702 = vmatpush1.msra.mxu0 0.0
  %1703 = vmatprep.subr.mxu0 0.0
  %1704 = vmatpush1.msra.mxu0 0.0
  %1705 = vmatprep.subr.mxu0 0.0
  %1706 = vmatpush1.msra.mxu0 0.0
  %1707 = vmatprep.subr.mxu0 0.0
  %1708 = vmatpush1.msra.mxu0 0.0
  %1709 = vmatprep.subr.mxu0 0.0
  %1710 = vmatpush1.msra.mxu0 0.0
  %1711 = vmatprep.mubr.f32.mxu0 0.0
  %1712 = vmatmul.mubr.f32.gmra.mrb[0].mxu0 %v1645
  %v1713 = vpop.f32.mrb[0].mxu0
  %v1714 = vadd.f32 0.0, %v1713
  %v1715 = vpop.f32.mrb[0].mxu0
  %1716 = vdwg.mxu0
  %v1717 = vadd.f32 %v1642, %v1714
  %v1718 = vxor.u32 %v1717, 2147483648
  %v1719 = vmul.f32 %v1718, 1.442695
  %v1720 = vpow.pop %v1719
  %v1721 = vadd.f32 %v1720, 1.0
  %v1722 = vrcp.pop %v1721
  %v1723 = vmul.f32 1.0, %v1722
  %v1724 = vtanh.pop %v1717
  %v1725 = vld [vmem:[#allocation5] sm:$0xff]
  %1727 = vrot.lane.b32.xlu0 %v1725, 32
  %v1728 = vpop.permute.xlu0 %1727
  %v1730 = vmul.f32 %v1723, %v1728
  %1732 = vrot.lane.b32.xlu0 %v1724, 64
  %v1733 = vpop.permute.xlu0 %1732
  %v1735 = vmul.f32 %v1723, %v1733
  %1737 = vrot.lane.b32.xlu0 %v1735, 32
  %v1738 = vpop.permute.xlu0 %1737
  %v1740 = vadd.f32 %v1730, %v1738
  %v1741 = vtanh.pop %v1740
  %1743 = vrot.lane.b32.xlu0 %v1741, 64
  %v1744 = vpop.permute.xlu0 %1743
  %v1746 = vmul.f32 %v1723, %v1744
  %1748 = vrot.lane.b32.xlu0 %v1740, 96
  %v1749 = vpop.permute.xlu0 %1748
  %1751 = vst.msk [vmem:[#allocation5] sm:$0xff] %vm186, %v1749
  %1753 = vrot.lane.b32.xlu0 %v1746, 32
  %v1754 = vpop.permute.xlu0 %1753
  %1756 = vst.msk [vmem:[#allocation4] sm:$0xff] %vm186, %v1754
  %v1757 = vld [vmem:[%s663] sm:$0xff]
  %v1758 = vld [vmem:[#allocation4] sm:$0xff]
  %v1760 = vsel %vm186, %v1758, 0
  %1762 = vmatprep.subr.mxu0 0.0
  %1763 = vmatpush1.msra.mxu0 %v1293
  %1764 = vmatprep.subr.mxu0 0.0
  %1765 = vmatpush1.msra.mxu0 %v1294
  %1766 = vmatprep.subr.mxu0 0.0
  %1767 = vmatpush1.msra.mxu0 %v1295
  %1768 = vmatprep.subr.mxu0 0.0
  %1769 = vmatpush1.msra.mxu0 %v1296
  %1770 = vmatprep.subr.mxu0 0.0
  %1771 = vmatpush1.msra.mxu0 0.0
  %1772 = vmatprep.subr.mxu0 0.0
  %1773 = vmatpush1.msra.mxu0 0.0
  %1774 = vmatprep.subr.mxu0 0.0
  %1775 = vmatpush1.msra.mxu0 0.0
  %1776 = vmatprep.subr.mxu0 0.0
  %1777 = vmatpush1.msra.mxu0 0.0
  %1778 = vmatprep.subr.mxu0 0.0
  %1779 = vmatpush1.msra.mxu0 0.0
  %1780 = vmatprep.subr.mxu0 0.0
  %1781 = vmatpush1.msra.mxu0 0.0
  %1782 = vmatprep.subr.mxu0 0.0
  %1783 = vmatpush1.msra.mxu0 0.0
  %1784 = vmatprep.subr.mxu0 0.0
  %1785 = vmatpush1.msra.mxu0 0.0
  %1786 = vmatprep.subr.mxu0 0.0
  %1787 = vmatpush1.msra.mxu0 0.0
  %1788 = vmatprep.subr.mxu0 0.0
  %1789 = vmatpush1.msra.mxu0 0.0
  %1790 = vmatprep.subr.mxu0 0.0
  %1791 = vmatpush1.msra.mxu0 0.0
  %1792 = vmatprep.subr.mxu0 0.0
  %1793 = vmatpush1.msra.mxu0 0.0
  %1794 = vmatprep.subr.mxu0 0.0
  %1795 = vmatpush1.msra.mxu0 0.0
  %1796 = vmatprep.subr.mxu0 0.0
  %1797 = vmatpush1.msra.mxu0 0.0
  %1798 = vmatprep.subr.mxu0 0.0
  %1799 = vmatpush1.msra.mxu0 0.0
  %1800 = vmatprep.subr.mxu0 0.0
  %1801 = vmatpush1.msra.mxu0 0.0
  %1802 = vmatprep.subr.mxu0 0.0
  %1803 = vmatpush1.msra.mxu0 0.0
  %1804 = vmatprep.subr.mxu0 0.0
  %1805 = vmatpush1.msra.mxu0 0.0
  %1806 = vmatprep.subr.mxu0 0.0
  %1807 = vmatpush1.msra.mxu0 0.0
  %1808 = vmatprep.subr.mxu0 0.0
  %1809 = vmatpush1.msra.mxu0 0.0
  %1810 = vmatprep.subr.mxu0 0.0
  %1811 = vmatpush1.msra.mxu0 0.0
  %1812 = vmatprep.subr.mxu0 0.0
  %1813 = vmatpush1.msra.mxu0 0.0
  %1814 = vmatprep.subr.mxu0 0.0
  %1815 = vmatpush1.msra.mxu0 0.0
  %1816 = vmatprep.subr.mxu0 0.0
  %1817 = vmatpush1.msra.mxu0 0.0
  %1818 = vmatprep.subr.mxu0 0.0
  %1819 = vmatpush1.msra.mxu0 0.0
  %1820 = vmatprep.subr.mxu0 0.0
  %1821 = vmatpush1.msra.mxu0 0.0
  %1822 = vmatprep.subr.mxu0 0.0
  %1823 = vmatpush1.msra.mxu0 0.0
  %1824 = vmatprep.subr.mxu0 0.0
  %1825 = vmatpush1.msra.mxu0 0.0
  %1826 = vmatprep.mubr.f32.mxu0 0.0
  %1827 = vmatmul.mubr.f32.gmra.mrb[0].mxu0 %v1760
  %v1828 = vpop.f32.mrb[0].mxu0
  %v1829 = vadd.f32 0.0, %v1828
  %v1830 = vpop.f32.mrb[0].mxu0
  %1831 = vdwg.mxu0
  %v1832 = vadd.f32 %v1757, %v1829
  %v1833 = vxor.u32 %v1832, 2147483648
  %v1834 = vmul.f32 %v1833, 1.442695
  %v1835 = vpow.pop %v1834
  %v1836 = vadd.f32 %v1835, 1.0
  %v1837 = vrcp.pop %v1836
  %v1838 = vmul.f32 1.0, %v1837
  %v1839 = vtanh.pop %v1832
  %v1840 = vld [vmem:[#allocation5] sm:$0xff]
  %1842 = vrot.lane.b32.xlu0 %v1840, 32
  %v1843 = vpop.permute.xlu0 %1842
  %v1845 = vmul.f32 %v1838, %v1843
  %1847 = vrot.lane.b32.xlu0 %v1839, 64
  %v1848 = vpop.permute.xlu0 %1847
  %v1850 = vmul.f32 %v1838, %v1848
  %1852 = vrot.lane.b32.xlu0 %v1850, 32
  %v1853 = vpop.permute.xlu0 %1852
  %v1855 = vadd.f32 %v1845, %v1853
  %v1856 = vtanh.pop %v1855
  %1858 = vrot.lane.b32.xlu0 %v1856, 64
  %v1859 = vpop.permute.xlu0 %1858
  %v1861 = vmul.f32 %v1838, %v1859
  %1863 = vrot.lane.b32.xlu0 %v1855, 96
  %v1864 = vpop.permute.xlu0 %1863
  %1866 = vst.msk [vmem:[#allocation5] sm:$0xff] %vm186, %v1864
  %1868 = vrot.lane.b32.xlu0 %v1861, 32
  %v1869 = vpop.permute.xlu0 %1868
  %1871 = vst.msk [vmem:[#allocation4] sm:$0xff] %vm186, %v1869
  %v1872 = vld [vmem:[%s781] sm:$0xff]
  %v1873 = vld [vmem:[#allocation4] sm:$0xff]
  %v1875 = vsel %vm186, %v1873, 0
  %1877 = vmatprep.subr.mxu0 0.0
  %1878 = vmatpush1.msra.mxu0 %v1293
  %1879 = vmatprep.subr.mxu0 0.0
  %1880 = vmatpush1.msra.mxu0 %v1294
  %1881 = vmatprep.subr.mxu0 0.0
  %1882 = vmatpush1.msra.mxu0 %v1295
  %1883 = vmatprep.subr.mxu0 0.0
  %1884 = vmatpush1.msra.mxu0 %v1296
  %1885 = vmatprep.subr.mxu0 0.0
  %1886 = vmatpush1.msra.mxu0 0.0
  %1887 = vmatprep.subr.mxu0 0.0
  %1888 = vmatpush1.msra.mxu0 0.0
  %1889 = vmatprep.subr.mxu0 0.0
  %1890 = vmatpush1.msra.mxu0 0.0
  %1891 = vmatprep.subr.mxu0 0.0
  %1892 = vmatpush1.msra.mxu0 0.0
  %1893 = vmatprep.subr.mxu0 0.0
  %1894 = vmatpush1.msra.mxu0 0.0
  %1895 = vmatprep.subr.mxu0 0.0
  %1896 = vmatpush1.msra.mxu0 0.0
  %1897 = vmatprep.subr.mxu0 0.0
  %1898 = vmatpush1.msra.mxu0 0.0
  %1899 = vmatprep.subr.mxu0 0.0
  %1900 = vmatpush1.msra.mxu0 0.0
  %1901 = vmatprep.subr.mxu0 0.0
  %1902 = vmatpush1.msra.mxu0 0.0
  %1903 = vmatprep.subr.mxu0 0.0
  %1904 = vmatpush1.msra.mxu0 0.0
  %1905 = vmatprep.subr.mxu0 0.0
  %1906 = vmatpush1.msra.mxu0 0.0
  %1907 = vmatprep.subr.mxu0 0.0
  %1908 = vmatpush1.msra.mxu0 0.0
  %1909 = vmatprep.subr.mxu0 0.0
  %1910 = vmatpush1.msra.mxu0 0.0
  %1911 = vmatprep.subr.mxu0 0.0
  %1912 = vmatpush1.msra.mxu0 0.0
  %1913 = vmatprep.subr.mxu0 0.0
  %1914 = vmatpush1.msra.mxu0 0.0
  %1915 = vmatprep.subr.mxu0 0.0
  %1916 = vmatpush1.msra.mxu0 0.0
  %1917 = vmatprep.subr.mxu0 0.0
  %1918 = vmatpush1.msra.mxu0 0.0
  %1919 = vmatprep.subr.mxu0 0.0
  %1920 = vmatpush1.msra.mxu0 0.0
  %1921 = vmatprep.subr.mxu0 0.0
  %1922 = vmatpush1.msra.mxu0 0.0
  %1923 = vmatprep.subr.mxu0 0.0
  %1924 = vmatpush1.msra.mxu0 0.0
  %1925 = vmatprep.subr.mxu0 0.0
  %1926 = vmatpush1.msra.mxu0 0.0
  %1927 = vmatprep.subr.mxu0 0.0
  %1928 = vmatpush1.msra.mxu0 0.0
  %1929 = vmatprep.subr.mxu0 0.0
  %1930 = vmatpush1.msra.mxu0 0.0
  %1931 = vmatprep.subr.mxu0 0.0
  %1932 = vmatpush1.msra.mxu0 0.0
  %1933 = vmatprep.subr.mxu0 0.0
  %1934 = vmatpush1.msra.mxu0 0.0
  %1935 = vmatprep.subr.mxu0 0.0
  %1936 = vmatpush1.msra.mxu0 0.0
  %1937 = vmatprep.subr.mxu0 0.0
  %1938 = vmatpush1.msra.mxu0 0.0
  %1939 = vmatprep.subr.mxu0 0.0
  %1940 = vmatpush1.msra.mxu0 0.0
  %1941 = vmatprep.mubr.f32.mxu0 0.0
  %1942 = vmatmul.mubr.f32.gmra.mrb[0].mxu0 %v1875
  %v1943 = vpop.f32.mrb[0].mxu0
  %v1944 = vadd.f32 0.0, %v1943
  %v1945 = vpop.f32.mrb[0].mxu0
  %1946 = vdwg.mxu0
  %v1947 = vadd.f32 %v1872, %v1944
  %v1948 = vxor.u32 %v1947, 2147483648
  %v1949 = vmul.f32 %v1948, 1.442695
  %v1950 = vpow.pop %v1949
  %v1951 = vadd.f32 %v1950, 1.0
  %v1952 = vrcp.pop %v1951
  %v1953 = vmul.f32 1.0, %v1952
  %v1954 = vtanh.pop %v1947
  %v1955 = vld [vmem:[#allocation5] sm:$0xff]
  %1957 = vrot.lane.b32.xlu0 %v1955, 32
  %v1958 = vpop.permute.xlu0 %1957
  %v1960 = vmul.f32 %v1953, %v1958
  %1962 = vrot.lane.b32.xlu0 %v1954, 64
  %v1963 = vpop.permute.xlu0 %1962
  %v1965 = vmul.f32 %v1953, %v1963
  %1967 = vrot.lane.b32.xlu0 %v1965, 32
  %v1968 = vpop.permute.xlu0 %1967
  %v1970 = vadd.f32 %v1960, %v1968
  %v1971 = vtanh.pop %v1970
  %1973 = vrot.lane.b32.xlu0 %v1971, 64
  %v1974 = vpop.permute.xlu0 %1973
  %v1976 = vmul.f32 %v1953, %v1974
  %1978 = vrot.lane.b32.xlu0 %v1970, 96
  %v1979 = vpop.permute.xlu0 %1978
  %1981 = vst.msk [vmem:[#allocation5] sm:$0xff] %vm186, %v1979
  %1983 = vrot.lane.b32.xlu0 %v1976, 32
  %v1984 = vpop.permute.xlu0 %1983
  %1986 = vst.msk [vmem:[#allocation4] sm:$0xff] %vm186, %v1984
  %v1987 = vld [vmem:[%s899] sm:$0xff]
  %v1988 = vld [vmem:[#allocation4] sm:$0xff]
  %v1990 = vsel %vm186, %v1988, 0
  %1992 = vmatprep.subr.mxu0 0.0
  %1993 = vmatpush1.msra.mxu0 %v1293
  %1994 = vmatprep.subr.mxu0 0.0
  %1995 = vmatpush1.msra.mxu0 %v1294
  %1996 = vmatprep.subr.mxu0 0.0
  %1997 = vmatpush1.msra.mxu0 %v1295
  %1998 = vmatprep.subr.mxu0 0.0
  %1999 = vmatpush1.msra.mxu0 %v1296
  %2000 = vmatprep.subr.mxu0 0.0
  %2001 = vmatpush1.msra.mxu0 0.0
  %2002 = vmatprep.subr.mxu0 0.0
  %2003 = vmatpush1.msra.mxu0 0.0
  %2004 = vmatprep.subr.mxu0 0.0
  %2005 = vmatpush1.msra.mxu0 0.0
  %2006 = vmatprep.subr.mxu0 0.0
  %2007 = vmatpush1.msra.mxu0 0.0
  %2008 = vmatprep.subr.mxu0 0.0
  %2009 = vmatpush1.msra.mxu0 0.0
  %2010 = vmatprep.subr.mxu0 0.0
  %2011 = vmatpush1.msra.mxu0 0.0
  %2012 = vmatprep.subr.mxu0 0.0
  %2013 = vmatpush1.msra.mxu0 0.0
  %2014 = vmatprep.subr.mxu0 0.0
  %2015 = vmatpush1.msra.mxu0 0.0
  %2016 = vmatprep.subr.mxu0 0.0
  %2017 = vmatpush1.msra.mxu0 0.0
  %2018 = vmatprep.subr.mxu0 0.0
  %2019 = vmatpush1.msra.mxu0 0.0
  %2020 = vmatprep.subr.mxu0 0.0
  %2021 = vmatpush1.msra.mxu0 0.0
  %2022 = vmatprep.subr.mxu0 0.0
  %2023 = vmatpush1.msra.mxu0 0.0
  %2024 = vmatprep.subr.mxu0 0.0
  %2025 = vmatpush1.msra.mxu0 0.0
  %2026 = vmatprep.subr.mxu0 0.0
  %2027 = vmatpush1.msra.mxu0 0.0
  %2028 = vmatprep.subr.mxu0 0.0
  %2029 = vmatpush1.msra.mxu0 0.0
  %2030 = vmatprep.subr.mxu0 0.0
  %2031 = vmatpush1.msra.mxu0 0.0
  %2032 = vmatprep.subr.mxu0 0.0
  %2033 = vmatpush1.msra.mxu0 0.0
  %2034 = vmatprep.subr.mxu0 0.0
  %2035 = vmatpush1.msra.mxu0 0.0
  %2036 = vmatprep.subr.mxu0 0.0
  %2037 = vmatpush1.msra.mxu0 0.0
  %2038 = vmatprep.subr.mxu0 0.0
  %2039 = vmatpush1.msra.mxu0 0.0
  %2040 = vmatprep.subr.mxu0 0.0
  %2041 = vmatpush1.msra.mxu0 0.0
  %2042 = vmatprep.subr.mxu0 0.0
  %2043 = vmatpush1.msra.mxu0 0.0
  %2044 = vmatprep.subr.mxu0 0.0
  %2045 = vmatpush1.msra.mxu0 0.0
  %2046 = vmatprep.subr.mxu0 0.0
  %2047 = vmatpush1.msra.mxu0 0.0
  %2048 = vmatprep.subr.mxu0 0.0
  %2049 = vmatpush1.msra.mxu0 0.0
  %2050 = vmatprep.subr.mxu0 0.0
  %2051 = vmatpush1.msra.mxu0 0.0
  %2052 = vmatprep.subr.mxu0 0.0
  %2053 = vmatpush1.msra.mxu0 0.0
  %2054 = vmatprep.subr.mxu0 0.0
  %2055 = vmatpush1.msra.mxu0 0.0
  %2056 = vmatprep.mubr.f32.mxu0 0.0
  %2057 = vmatmul.mubr.f32.gmra.mrb[0].mxu0 %v1990
  %v2058 = vpop.f32.mrb[0].mxu0
  %v2059 = vadd.f32 0.0, %v2058
  %v2060 = vpop.f32.mrb[0].mxu0
  %2061 = vdwg.mxu0
  %v2062 = vadd.f32 %v1987, %v2059
  %v2063 = vxor.u32 %v2062, 2147483648
  %v2064 = vmul.f32 %v2063, 1.442695
  %v2065 = vpow.pop %v2064
  %v2066 = vadd.f32 %v2065, 1.0
  %v2067 = vrcp.pop %v2066
  %v2068 = vmul.f32 1.0, %v2067
  %v2069 = vtanh.pop %v2062
  %v2070 = vld [vmem:[#allocation5] sm:$0xff]
  %2072 = vrot.lane.b32.xlu0 %v2070, 32
  %v2073 = vpop.permute.xlu0 %2072
  %v2075 = vmul.f32 %v2068, %v2073
  %2077 = vrot.lane.b32.xlu0 %v2069, 64
  %v2078 = vpop.permute.xlu0 %2077
  %v2080 = vmul.f32 %v2068, %v2078
  %2082 = vrot.lane.b32.xlu0 %v2080, 32
  %v2083 = vpop.permute.xlu0 %2082
  %v2085 = vadd.f32 %v2075, %v2083
  %v2086 = vtanh.pop %v2085
  %2088 = vrot.lane.b32.xlu0 %v2086, 64
  %v2089 = vpop.permute.xlu0 %2088
  %v2091 = vmul.f32 %v2068, %v2089
  %2093 = vrot.lane.b32.xlu0 %v2085, 96
  %v2094 = vpop.permute.xlu0 %2093
  %2096 = vst.msk [vmem:[#allocation5] sm:$0xff] %vm186, %v2094
  %2098 = vrot.lane.b32.xlu0 %v2091, 32
  %v2099 = vpop.permute.xlu0 %2098
  %2101 = vst.msk [vmem:[#allocation4] sm:$0xff] %vm186, %v2099
  %v2102 = vld [vmem:[%s1017] sm:$0xff]
  %v2103 = vld [vmem:[#allocation4] sm:$0xff]
  %v2105 = vsel %vm186, %v2103, 0
  %2107 = vmatprep.subr.mxu0 0.0
  %2108 = vmatpush1.msra.mxu0 %v1293
  %2109 = vmatprep.subr.mxu0 0.0
  %2110 = vmatpush1.msra.mxu0 %v1294
  %2111 = vmatprep.subr.mxu0 0.0
  %2112 = vmatpush1.msra.mxu0 %v1295
  %2113 = vmatprep.subr.mxu0 0.0
  %2114 = vmatpush1.msra.mxu0 %v1296
  %2115 = vmatprep.subr.mxu0 0.0
  %2116 = vmatpush1.msra.mxu0 0.0
  %2117 = vmatprep.subr.mxu0 0.0
  %2118 = vmatpush1.msra.mxu0 0.0
  %2119 = vmatprep.subr.mxu0 0.0
  %2120 = vmatpush1.msra.mxu0 0.0
  %2121 = vmatprep.subr.mxu0 0.0
  %2122 = vmatpush1.msra.mxu0 0.0
  %2123 = vmatprep.subr.mxu0 0.0
  %2124 = vmatpush1.msra.mxu0 0.0
  %2125 = vmatprep.subr.mxu0 0.0
  %2126 = vmatpush1.msra.mxu0 0.0
  %2127 = vmatprep.subr.mxu0 0.0
  %2128 = vmatpush1.msra.mxu0 0.0
  %2129 = vmatprep.subr.mxu0 0.0
  %2130 = vmatpush1.msra.mxu0 0.0
  %2131 = vmatprep.subr.mxu0 0.0
  %2132 = vmatpush1.msra.mxu0 0.0
  %2133 = vmatprep.subr.mxu0 0.0
  %2134 = vmatpush1.msra.mxu0 0.0
  %2135 = vmatprep.subr.mxu0 0.0
  %2136 = vmatpush1.msra.mxu0 0.0
  %2137 = vmatprep.subr.mxu0 0.0
  %2138 = vmatpush1.msra.mxu0 0.0
  %2139 = vmatprep.subr.mxu0 0.0
  %2140 = vmatpush1.msra.mxu0 0.0
  %2141 = vmatprep.subr.mxu0 0.0
  %2142 = vmatpush1.msra.mxu0 0.0
  %2143 = vmatprep.subr.mxu0 0.0
  %2144 = vmatpush1.msra.mxu0 0.0
  %2145 = vmatprep.subr.mxu0 0.0
  %2146 = vmatpush1.msra.mxu0 0.0
  %2147 = vmatprep.subr.mxu0 0.0
  %2148 = vmatpush1.msra.mxu0 0.0
  %2149 = vmatprep.subr.mxu0 0.0
  %2150 = vmatpush1.msra.mxu0 0.0
  %2151 = vmatprep.subr.mxu0 0.0
  %2152 = vmatpush1.msra.mxu0 0.0
  %2153 = vmatprep.subr.mxu0 0.0
  %2154 = vmatpush1.msra.mxu0 0.0
  %2155 = vmatprep.subr.mxu0 0.0
  %2156 = vmatpush1.msra.mxu0 0.0
  %2157 = vmatprep.subr.mxu0 0.0
  %2158 = vmatpush1.msra.mxu0 0.0
  %2159 = vmatprep.subr.mxu0 0.0
  %2160 = vmatpush1.msra.mxu0 0.0
  %2161 = vmatprep.subr.mxu0 0.0
  %2162 = vmatpush1.msra.mxu0 0.0
  %2163 = vmatprep.subr.mxu0 0.0
  %2164 = vmatpush1.msra.mxu0 0.0
  %2165 = vmatprep.subr.mxu0 0.0
  %2166 = vmatpush1.msra.mxu0 0.0
  %2167 = vmatprep.subr.mxu0 0.0
  %2168 = vmatpush1.msra.mxu0 0.0
  %2169 = vmatprep.subr.mxu0 0.0
  %2170 = vmatpush1.msra.mxu0 0.0
  %2171 = vmatprep.mubr.f32.mxu0 0.0
  %2172 = vmatmul.mubr.f32.gmra.mrb[0].mxu0 %v2105
  %v2173 = vpop.f32.mrb[0].mxu0
  %v2174 = vadd.f32 0.0, %v2173
  %v2175 = vpop.f32.mrb[0].mxu0
  %2176 = vdwg.mxu0
  %v2177 = vadd.f32 %v2102, %v2174
  %v2178 = vxor.u32 %v2177, 2147483648
  %v2179 = vmul.f32 %v2178, 1.442695
  %v2180 = vpow.pop %v2179
  %v2181 = vadd.f32 %v2180, 1.0
  %v2182 = vrcp.pop %v2181
  %v2183 = vmul.f32 1.0, %v2182
  %v2184 = vtanh.pop %v2177
  %v2185 = vld [vmem:[#allocation5] sm:$0xff]
  %2187 = vrot.lane.b32.xlu0 %v2185, 32
  %v2188 = vpop.permute.xlu0 %2187
  %v2190 = vmul.f32 %v2183, %v2188
  %2192 = vrot.lane.b32.xlu0 %v2184, 64
  %v2193 = vpop.permute.xlu0 %2192
  %v2195 = vmul.f32 %v2183, %v2193
  %2197 = vrot.lane.b32.xlu0 %v2195, 32
  %v2198 = vpop.permute.xlu0 %2197
  %v2200 = vadd.f32 %v2190, %v2198
  %v2201 = vtanh.pop %v2200
  %2203 = vrot.lane.b32.xlu0 %v2201, 64
  %v2204 = vpop.permute.xlu0 %2203
  %v2206 = vmul.f32 %v2183, %v2204
  %2208 = vrot.lane.b32.xlu0 %v2200, 96
  %v2209 = vpop.permute.xlu0 %2208
  %2211 = vst.msk [vmem:[#allocation5] sm:$0xff] %vm186, %v2209
  %2213 = vrot.lane.b32.xlu0 %v2206, 32
  %v2214 = vpop.permute.xlu0 %2213
  %2216 = vst.msk [vmem:[#allocation4] sm:$0xff] %vm186, %v2214
  %v2217 = vld [vmem:[#allocation4] sm:$0xff]
  %v2218 = vld [vmem:[%s7] sm:$0xff]
  %v2219 = vld [vmem:[%s7 + $0x8] sm:$0xff]
  %v2220 = vld [vmem:[%s7 + $0x10] sm:$0xff]
  %v2221 = vld [vmem:[%s7 + $0x18] sm:$0xff]
  %v2222 = vld [vmem:[%s8] sm:$0x1]
  %v2224 = vlaneseq
  %v2225 = vshrl.u32 %v2224, 7
  %v2226 = vsub.s32 0, %v2225
  %v2227 = vrot.slane %v2222, %v2226
  %v2230 = vsel %vm186, %v2217, 0
  %2232 = vmatprep.subr.mxu0 0.0
  %2233 = vmatpush1.msra.mxu0 %v2218
  %2234 = vmatprep.subr.mxu0 0.0
  %2235 = vmatpush1.msra.mxu0 %v2219
  %2236 = vmatprep.subr.mxu0 0.0
  %2237 = vmatpush1.msra.mxu0 %v2220
  %2238 = vmatprep.subr.mxu0 0.0
  %2239 = vmatpush1.msra.mxu0 %v2221
  %2240 = vmatprep.subr.mxu0 0.0
  %2241 = vmatpush1.msra.mxu0 0.0
  %2242 = vmatprep.subr.mxu0 0.0
  %2243 = vmatpush1.msra.mxu0 0.0
  %2244 = vmatprep.subr.mxu0 0.0
  %2245 = vmatpush1.msra.mxu0 0.0
  %2246 = vmatprep.subr.mxu0 0.0
  %2247 = vmatpush1.msra.mxu0 0.0
  %2248 = vmatprep.subr.mxu0 0.0
  %2249 = vmatpush1.msra.mxu0 0.0
  %2250 = vmatprep.subr.mxu0 0.0
  %2251 = vmatpush1.msra.mxu0 0.0
  %2252 = vmatprep.subr.mxu0 0.0
  %2253 = vmatpush1.msra.mxu0 0.0
  %2254 = vmatprep.subr.mxu0 0.0
  %2255 = vmatpush1.msra.mxu0 0.0
  %2256 = vmatprep.subr.mxu0 0.0
  %2257 = vmatpush1.msra.mxu0 0.0
  %2258 = vmatprep.subr.mxu0 0.0
  %2259 = vmatpush1.msra.mxu0 0.0
  %2260 = vmatprep.subr.mxu0 0.0
  %2261 = vmatpush1.msra.mxu0 0.0
  %2262 = vmatprep.subr.mxu0 0.0
  %2263 = vmatpush1.msra.mxu0 0.0
  %2264 = vmatprep.subr.mxu0 0.0
  %2265 = vmatpush1.msra.mxu0 0.0
  %2266 = vmatprep.subr.mxu0 0.0
  %2267 = vmatpush1.msra.mxu0 0.0
  %2268 = vmatprep.subr.mxu0 0.0
  %2269 = vmatpush1.msra.mxu0 0.0
  %2270 = vmatprep.subr.mxu0 0.0
  %2271 = vmatpush1.msra.mxu0 0.0
  %2272 = vmatprep.subr.mxu0 0.0
  %2273 = vmatpush1.msra.mxu0 0.0
  %2274 = vmatprep.subr.mxu0 0.0
  %2275 = vmatpush1.msra.mxu0 0.0
  %2276 = vmatprep.subr.mxu0 0.0
  %2277 = vmatpush1.msra.mxu0 0.0
  %2278 = vmatprep.subr.mxu0 0.0
  %2279 = vmatpush1.msra.mxu0 0.0
  %2280 = vmatprep.subr.mxu0 0.0
  %2281 = vmatpush1.msra.mxu0 0.0
  %2282 = vmatprep.subr.mxu0 0.0
  %2283 = vmatpush1.msra.mxu0 0.0
  %2284 = vmatprep.subr.mxu0 0.0
  %2285 = vmatpush1.msra.mxu0 0.0
  %2286 = vmatprep.subr.mxu0 0.0
  %2287 = vmatpush1.msra.mxu0 0.0
  %2288 = vmatprep.subr.mxu0 0.0
  %2289 = vmatpush1.msra.mxu0 0.0
  %2290 = vmatprep.subr.mxu0 0.0
  %2291 = vmatpush1.msra.mxu0 0.0
  %2292 = vmatprep.subr.mxu0 0.0
  %2293 = vmatpush1.msra.mxu0 0.0
  %2294 = vmatprep.subr.mxu0 0.0
  %2295 = vmatpush1.msra.mxu0 0.0
  %2296 = vmatprep.mubr.f32.mxu0 0.0
  %2297 = vmatmul.mubr.f32.gmra.mrb[0].mxu0 %v2230
  %v2298 = vpop.f32.mrb[0].mxu0
  %v2299 = vadd.f32 %v2227, %v2298
  %v2300 = vpop.f32.mrb[0].mxu0
  %2301 = vdwg.mxu0
  %vm2302 = vcmask 31744
  %2303 = vst.msk [vmem:[%s9] sm:$0xff] %vm2302, %v2299
  // Predicated region
  $region38: #{lstm_model_forward.1} parent=0 // pred_check
    _
  $region39: #{lstm_model_forward.1} parent=0 // pred_check_branch
    %2305 = sbr.rel (0) target = $region41
  $region40: #{lstm_model_forward.1} parent=0 // pred_region
    _
  $region41: #{lstm_model_forward.1} parent=0 // pred_fallthru
    _
  // Predicated region
  $region42: #{lstm_model_forward.1} parent=0 // pred_check
    _
  $region43: #{lstm_model_forward.1} parent=0 // pred_check_branch
    %2307 = sbr.rel (0) target = $region45
  $region44: #{lstm_model_forward.1} parent=0 // pred_region
    _
  $region45: #{lstm_model_forward.1} parent=0 // pred_fallthru
    _

</llo_original>
